<compile_context>
chip_gen: v5e
topology: v5e:2x2
jax: 0.10.0
libtpu: 0.0.40
codegen_flags: <defaults>
</compile_context>

<pallas_src>
import functools

import jax
import jax.numpy as jnp
from jax.experimental import pallas as pl
from jax.experimental.pallas import tpu as pltpu


# ---------------------------------------------------------------------------
# Pallas kernel: 1x1 conv (matmul over all anchors) + sigmoid + box decode
# for one (batch, row-tile) grid step.
# ---------------------------------------------------------------------------
def detect_level_kernel(x_ref, w_ref, coef_ref, gxy_ref, o_ref, *, na, kp, no):
    # x_ref:    (C, TM)      f32   NCHW activations (spatial flattened), row tile
    # w_ref:    (C, na*kp)   bf16  merged 1x1-conv weights, resident in VMEM
    # coef_ref: (8, na*kp)   f32   rows: 0 bias, 1 A, 2 B, 3 x-mask, 4 y-mask
    # gxy_ref:  (TM, 8)      f32   cols 3/4: ((gx-0.5)*stride, (gy-0.5)*stride)
    # o_ref:    (na, TM, no) f32   decoded detections
    #
    # In-register transpose + bf16 pack of the NCHW tile (HBM-bound kernel,
    # the XLU/VPU work here is hidden under the DMAs).
    x = x_ref[...].T.astype(jnp.bfloat16)                       # (TM, C)
    t = jnp.dot(x, w_ref[...], preferred_element_type=jnp.float32)  # (TM, na*kp)
    t = t + coef_ref[0:1, :]                                    # + bias
    # sigmoid(t) = 0.5 * tanh(0.5 * t) + 0.5  -> single EUP transcendental.
    s = 0.5 * jnp.tanh(0.5 * t) + 0.5
    # Grid offset C: only the xy columns of each anchor block are nonzero
    # (mask rows 3/4 of coef); a tiny MXU matmul replaces lane broadcasts.
    c = jnp.dot(gxy_ref[...], coef_ref[...], preferred_element_type=jnp.float32)
    # A*s + B*s^2 + C, refactored as s*(A + B*s) + C.
    y = s * (coef_ref[1:2, :] + coef_ref[2:3, :] * s) + c
    # Store each anchor's first `no` channels; the slices start on 128-lane
    # boundaries and the minor dim is the full output extent (masked vst).
    for a in range(na):
        o_ref[a] = y[:, a * kp:a * kp + no]


def _pick_tile(nyx, c_in, tm_max, x_tile_budget=4 << 20):
    """Rows-per-step TM (lane dim of the x tile) and padded row count."""
    fit = max(128, (x_tile_budget // (c_in * 4)) // 128 * 128)
    cap = min(tm_max, fit)
    if nyx <= cap:
        return nyx, nyx                          # whole level, no padding
    t = cap // 128 * 128
    while t >= 128:                              # lane-aligned divisor
        if nyx % t == 0:
            return t, nyx
        t -= 128
    t = cap // 128 * 128                         # fall back to row padding
    return t, pl.cdiv(nyx, t) * t


def run_level(x2, w_merged, coef, gxy, *, na, kp, no, tm):
    bs, c_in, nyx_pad = x2.shape
    grid = (bs, nyx_pad // tm)
    kernel = functools.partial(detect_level_kernel, na=na, kp=kp, no=no)
    return pl.pallas_call(
        kernel,
        out_shape=jax.ShapeDtypeStruct((bs, na, nyx_pad, no), jnp.float32),
        grid_spec=pl.GridSpec(
            grid=grid,
            in_specs=[
                # Activations: one (c_in, tm) NCHW block per step.
                pl.BlockSpec((None, c_in, tm), lambda b, m: (b, 0, m)),
                # Weights / coefficients: constant block index -> fetched once
                # per level, resident in VMEM for all grid steps.
                pl.BlockSpec((c_in, na * kp), lambda b, m: (0, 0)),
                pl.BlockSpec((8, na * kp), lambda b, m: (0, 0)),
                pl.BlockSpec((tm, 8), lambda b, m: (m, 0)),
            ],
            out_specs=pl.BlockSpec((None, na, tm, no),
                                   lambda b, m: (b, 0, m, 0)),
        ),
        compiler_params=pltpu.CompilerParams(
            dimension_semantics=("parallel", "parallel"),
            vmem_limit_bytes=32 * 1024 * 1024),
    )(x2, w_merged, coef, gxy)


# ---------------------------------------------------------------------------
# Wrapper implementing Detect.forward
# ---------------------------------------------------------------------------
def detect_forward(xs, weights, biases, anchors, strides, nc, *, tm_max=2048):
    """xs[i]: (bs, ch_i, ny_i, nx_i) NCHW activations, as in PyTorch."""
    no = nc + 5
    na = anchors.shape[1]
    kp = ((no + 127) // 128) * 128               # per-anchor lane-aligned cols
    col = jnp.arange(kp)
    valid = col < no

    z = []
    for i, x in enumerate(xs):
        bs, c_in, ny, nx = x.shape
        nyx = ny * nx
        stride = strides[i]

        # --- merged per-anchor conv weights, zero-padded to kp lanes each ----
        w = weights[i].reshape(c_in, na, no)
        w_pad = jnp.zeros((c_in, na, kp), jnp.float32).at[:, :, :no].set(w)
        w_merged = w_pad.reshape(c_in, na * kp).astype(jnp.bfloat16)

        # --- packed decode coefficients: one (8, na*kp) block per level ------
        #   out = A*s + B*s^2 + C with A = 2*stride (xy) | 0 (wh) | 1 (conf),
        #   B = 4*anchor*stride (wh), C = (grid-0.5)*stride on the xy columns
        #   (applied in-kernel from the compact gxy operand via mask rows 3/4).
        bias_r = jnp.zeros((na, kp), jnp.float32).at[:, :no].set(
            biases[i].reshape(na, no))
        a_r = jnp.where(col < 2, 2.0 * stride,
                        jnp.where(col < 4, 0.0,
                                  jnp.where(valid, 1.0, 0.0)))
        a_r = jnp.broadcast_to(a_r, (na, kp))
        b_r = jnp.where(col[None, :] == 2, 4.0 * stride * anchors[i][:, 0:1],
                        jnp.where(col[None, :] == 3,
                                  4.0 * stride * anchors[i][:, 1:2], 0.0))
        xm = jnp.broadcast_to((col == 0).astype(jnp.float32), (na, kp))
        ym = jnp.broadcast_to((col == 1).astype(jnp.float32), (na, kp))
        zero = jnp.zeros((na, kp), jnp.float32)
        coef = jnp.stack([bias_r, a_r, b_r, xm, ym, zero, zero, zero],
                         axis=0).reshape(8, na * kp)

        # --- compact per-pixel grid offsets (nyx, 8): cols 3/4 match the mask
        #     rows of coef so the kernel's C term is one (tm,8)x(8,na*kp) dot.
        gx = (jnp.arange(nx, dtype=jnp.float32) - 0.5) * stride
        gy = (jnp.arange(ny, dtype=jnp.float32) - 0.5) * stride
        gxy = jnp.zeros((nyx, 8), jnp.float32)
        gxy = gxy.at[:, 3].set(jnp.tile(gx, ny))       # x fastest
        gxy = gxy.at[:, 4].set(jnp.repeat(gy, nx))

        # --- activations stay NCHW / f32: only a free spatial flatten --------
        x2 = x.reshape(bs, c_in, nyx)

        tm, nyx_pad = _pick_tile(nyx, c_in, tm_max)
        if nyx_pad != nyx:                             # rare fallback path
            x2 = jnp.pad(x2, ((0, 0), (0, 0), (0, nyx_pad - nyx)))
            gxy = jnp.pad(gxy, ((0, nyx_pad - nyx), (0, 0)))

        out = run_level(x2, w_merged, coef, gxy, na=na, kp=kp, no=no, tm=tm)
        if nyx_pad != nyx:
            out = out[:, :, :nyx, :]
        # (bs, na, nyx, no) -> (bs, na*nyx, no): contiguous merge, no copy.
        z.append(out.reshape(bs, na * nyx, no))

    # TODO(synk): writing each level straight into one pre-concatenated output
    # (static row-offset out_specs + input_output_aliases, or one multi-level
    # pallas_call with ragged rows) would remove this last concat copy.
    return jnp.concatenate(z, axis=1)


# ---------------------------------------------------------------------------
# Pure-JAX reference (mirrors the PyTorch code path exactly)
# ---------------------------------------------------------------------------
def detect_forward_ref(xs, weights, biases, anchors, strides, nc):
    no = nc + 5
    na = anchors.shape[1]
    z = []
    for i, x in enumerate(xs):
        bs, _, ny, nx = x.shape
        conv = jnp.einsum('bcyx,ck->bkyx', x, weights[i]) + biases[i][None, :, None, None]
        t = conv.reshape(bs, na, no, ny, nx).transpose(0, 1, 3, 4, 2)
        y = jax.nn.sigmoid(t)
        yv, xv = jnp.meshgrid(jnp.arange(ny, dtype=jnp.float32),
                              jnp.arange(nx, dtype=jnp.float32), indexing='ij')
        grid = jnp.stack((xv, yv), 2)[None, None] - 0.5
        ag = (anchors[i] * strides[i]).reshape(1, na, 1, 1, 2)
        xy = (y[..., 0:2] * 2 + grid) * strides[i]
        wh = (y[..., 2:4] * 2) ** 2 * ag
        conf = y[..., 4:]
        yy = jnp.concatenate((xy, wh, conf), axis=-1)
        z.append(yy.reshape(bs, -1, no))
    return jnp.concatenate(z, axis=1)


if __name__ == "__main__":
    # Small, deterministic configuration.
    nc = 80
    no = nc + 5
    anchors_t = ((10, 13, 16, 30, 33, 23), (30, 61, 62, 45, 59, 119))
    nl = len(anchors_t)
    na = len(anchors_t[0]) // 2
    anchors = jnp.asarray(anchors_t, dtype=jnp.float32).reshape(nl, na, 2)
    strides = jnp.asarray([8.0, 16.0], dtype=jnp.float32)
    ch = (8, 16)
    spatial = ((16, 16), (8, 16))    # (ny, nx) per level -> 256 / 128 pixels
    bs = 2

    key = jax.random.PRNGKey(0)
    keys = jax.random.split(key, 3 * nl)

    # Deterministic parameter init (Conv2d(ch_i, na*no, 1) -> W: (ch_i, na*no)).
    weights, biases, xs = [], [], []
    K = na * no
    for i in range(nl):
        weights.append(0.05 * jax.random.normal(keys[3 * i], (ch[i], K), dtype=jnp.float32))
        biases.append(0.05 * jax.random.normal(keys[3 * i + 1], (K,), dtype=jnp.float32))
        ny, nx = spatial[i]
        xs.append(jax.random.normal(keys[3 * i + 2], (bs, ch[i], ny, nx), dtype=jnp.float32))

    detect_fn = jax.jit(functools.partial(detect_forward, nc=nc, tm_max=2048))
    out = jax.block_until_ready(detect_fn(xs, weights, biases, anchors, strides))

    # The kernel intentionally quantizes the matmul operands to bf16 (f32
    # accumulation), so round them identically for the reference; remaining
    # differences are accumulation order and the EUP tanh-vs-logistic forms.
    xs_q = [x.astype(jnp.bfloat16).astype(jnp.float32) for x in xs]
    ws_q = [w.astype(jnp.bfloat16).astype(jnp.float32) for w in weights]
    ref = jax.block_until_ready(
        detect_forward_ref(xs_q, ws_q, biases, anchors, strides, nc))

    expected_rows = sum(na * ny * nx for (ny, nx) in spatial)
    assert out.shape == (bs, expected_rows, no), out.shape
    assert jnp.allclose(out, ref, atol=2e-3, rtol=2e-3), (
        float(jnp.max(jnp.abs(out - ref))))

    print("KERNEL_OK")
</pallas_src>

<mosaic_0001>
module attributes {stable_mosaic.version = 11 : i64} {
  func.func @detect_level_kernel(%arg0: i32, %arg1: i32, %arg2: memref<1x8x256xf32, #tpu.memory_space<vmem>>, %arg3: memref<8x384xbf16, #tpu.memory_space<vmem>>, %arg4: memref<8x384xf32, #tpu.memory_space<vmem>>, %arg5: memref<256x8xf32, #tpu.memory_space<vmem>>, %arg6: memref<1x3x256x85xf32, #tpu.memory_space<vmem>>) attributes {dimension_semantics = [#tpu.dimension_semantics<parallel>, #tpu.dimension_semantics<parallel>], iteration_bounds = array<i64: 2, 1>, scalar_prefetch = 0 : i64, scratch_operands = 0 : i64, tpu.core_type = #tpu.core_type<tc>, window_params = [{transform_indices = @transform_0, window_bounds = array<i64: 1, 8, 256>}, {pipeline_mode = #tpu.pipeline_mode<synchronous>, transform_indices = @transform_1, window_bounds = array<i64: 8, 384>}, {pipeline_mode = #tpu.pipeline_mode<synchronous>, transform_indices = @transform_2, window_bounds = array<i64: 8, 384>}, {transform_indices = @transform_3, window_bounds = array<i64: 256, 8>}, {transform_indices = @transform_4, window_bounds = array<i64: 1, 3, 256, 85>}]} {
    %c0 = arith.constant 0 : index
    %c0_0 = arith.constant 0 : index
    %c0_1 = arith.constant 0 : index
    %0 = vector.load %arg2[%c0, %c0_0, %c0_1] : memref<1x8x256xf32, #tpu.memory_space<vmem>>, vector<1x8x256xf32>
    %1 = vector.shape_cast %0 : vector<1x8x256xf32> to vector<8x256xf32>
    %2 = tpu.transpose %1, [1, 0] : vector<8x256xf32> -> vector<256x8xf32>
    %3 = arith.truncf %2 : vector<256x8xf32> to vector<256x8xbf16>
    %c0_2 = arith.constant 0 : index
    %c0_3 = arith.constant 0 : index
    %4 = vector.load %arg3[%c0_2, %c0_3] : memref<8x384xbf16, #tpu.memory_space<vmem>>, vector<8x384xbf16>
    %cst = arith.constant dense<0.000000e+00> : vector<256x384xf32>
    %5 = tpu.matmul %3, %4, %cst {dimension_numbers = #tpu.dot_dimension_numbers<[1], [0], [0], [1], [0, 0, 1, 1], [], []>} : vector<256x8xbf16>, vector<8x384xbf16>, vector<256x384xf32> -> vector<256x384xf32>
    %c0_4 = arith.constant 0 : index
    %c0_5 = arith.constant 0 : index
    %6 = vector.load %arg4[%c0_4, %c0_5] : memref<8x384xf32, #tpu.memory_space<vmem>>, vector<1x384xf32>
    %7 = vector.broadcast %6 : vector<1x384xf32> to vector<256x384xf32>
    %8 = arith.addf %5, %7 : vector<256x384xf32>
    %cst_6 = arith.constant 5.000000e-01 : f32
    %9 = vector.broadcast %cst_6 : f32 to vector<256x384xf32>
    %10 = arith.mulf %9, %8 : vector<256x384xf32>
    %11 = math.tanh %10 : vector<256x384xf32>
    %cst_7 = arith.constant 5.000000e-01 : f32
    %12 = vector.broadcast %cst_7 : f32 to vector<256x384xf32>
    %13 = arith.mulf %12, %11 : vector<256x384xf32>
    %cst_8 = arith.constant 5.000000e-01 : f32
    %14 = vector.broadcast %cst_8 : f32 to vector<256x384xf32>
    %15 = arith.addf %13, %14 : vector<256x384xf32>
    %c0_9 = arith.constant 0 : index
    %c0_10 = arith.constant 0 : index
    %16 = vector.load %arg5[%c0_9, %c0_10] : memref<256x8xf32, #tpu.memory_space<vmem>>, vector<256x8xf32>
    %c0_11 = arith.constant 0 : index
    %c0_12 = arith.constant 0 : index
    %17 = vector.load %arg4[%c0_11, %c0_12] : memref<8x384xf32, #tpu.memory_space<vmem>>, vector<8x384xf32>
    %cst_13 = arith.constant dense<0.000000e+00> : vector<256x384xf32>
    %18 = tpu.matmul %16, %17, %cst_13 {dimension_numbers = #tpu.dot_dimension_numbers<[1], [0], [0], [1], [0, 0, 1, 1], [], []>} : vector<256x8xf32>, vector<8x384xf32>, vector<256x384xf32> -> vector<256x384xf32>
    %c1 = arith.constant 1 : index
    %c0_14 = arith.constant 0 : index
    %19 = vector.load %arg4[%c1, %c0_14] : memref<8x384xf32, #tpu.memory_space<vmem>>, vector<1x384xf32>
    %c2 = arith.constant 2 : index
    %c0_15 = arith.constant 0 : index
    %20 = vector.load %arg4[%c2, %c0_15] : memref<8x384xf32, #tpu.memory_space<vmem>>, vector<1x384xf32>
    %21 = vector.broadcast %20 : vector<1x384xf32> to vector<256x384xf32>
    %22 = arith.mulf %21, %15 : vector<256x384xf32>
    %23 = vector.broadcast %19 : vector<1x384xf32> to vector<256x384xf32>
    %24 = arith.addf %23, %22 : vector<256x384xf32>
    %25 = arith.mulf %15, %24 : vector<256x384xf32>
    %26 = arith.addf %25, %18 : vector<256x384xf32>
    %27 = vector.extract_strided_slice %26 {offsets = [0, 0], sizes = [256, 85], strides = [1, 1]} : vector<256x384xf32> to vector<256x85xf32>
    %c0_16 = arith.constant 0 : index
    %c0_17 = arith.constant 0 : index
    %c0_18 = arith.constant 0 : index
    %c0_19 = arith.constant 0 : index
    %28 = vector.load %arg6[%c0_16, %c0_17, %c0_18, %c0_19] : memref<1x3x256x85xf32, #tpu.memory_space<vmem>>, vector<1x1x256x85xf32>
    %29 = vector.shape_cast %28 : vector<1x1x256x85xf32> to vector<256x85xf32>
    %30 = vector.shape_cast %27 : vector<256x85xf32> to vector<1x1x256x85xf32>
    tpu.vector_store %arg6[%c0_16, %c0_17, %c0_18, %c0_19], %30 {strides = array<i32>} : memref<1x3x256x85xf32, #tpu.memory_space<vmem>>, vector<1x1x256x85xf32>,
    %31 = vector.extract_strided_slice %26 {offsets = [0, 128], sizes = [256, 85], strides = [1, 1]} : vector<256x384xf32> to vector<256x85xf32>
    %c0_20 = arith.constant 0 : index
    %c1_21 = arith.constant 1 : index
    %c0_22 = arith.constant 0 : index
    %c0_23 = arith.constant 0 : index
    %32 = vector.load %arg6[%c0_20, %c1_21, %c0_22, %c0_23] : memref<1x3x256x85xf32, #tpu.memory_space<vmem>>, vector<1x1x256x85xf32>
    %33 = vector.shape_cast %32 : vector<1x1x256x85xf32> to vector<256x85xf32>
    %34 = vector.shape_cast %31 : vector<256x85xf32> to vector<1x1x256x85xf32>
    tpu.vector_store %arg6[%c0_20, %c1_21, %c0_22, %c0_23], %34 {strides = array<i32>} : memref<1x3x256x85xf32, #tpu.memory_space<vmem>>, vector<1x1x256x85xf32>,
    %35 = vector.extract_strided_slice %26 {offsets = [0, 256], sizes = [256, 85], strides = [1, 1]} : vector<256x384xf32> to vector<256x85xf32>
    %c0_24 = arith.constant 0 : index
    %c2_25 = arith.constant 2 : index
    %c0_26 = arith.constant 0 : index
    %c0_27 = arith.constant 0 : index
    %36 = vector.load %arg6[%c0_24, %c2_25, %c0_26, %c0_27] : memref<1x3x256x85xf32, #tpu.memory_space<vmem>>, vector<1x1x256x85xf32>
    %37 = vector.shape_cast %36 : vector<1x1x256x85xf32> to vector<256x85xf32>
    %38 = vector.shape_cast %35 : vector<256x85xf32> to vector<1x1x256x85xf32>
    tpu.vector_store %arg6[%c0_24, %c2_25, %c0_26, %c0_27], %38 {strides = array<i32>} : memref<1x3x256x85xf32, #tpu.memory_space<vmem>>, vector<1x1x256x85xf32>,
    return
  }
  func.func @transform_0(%arg0: i32, %arg1: i32) -> (i32, i32, i32) {
    %c0_i32 = arith.constant 0 : i32
    %c0_i32_0 = arith.constant 0 : i32
    return %arg0, %c0_i32, %arg1 : i32, i32, i32
  }
  func.func @transform_1(%arg0: i32, %arg1: i32) -> (i32, i32) {
    %c0_i32 = arith.constant 0 : i32
    %c0_i32_0 = arith.constant 0 : i32
    %c0_i32_1 = arith.constant 0 : i32
    return %c0_i32, %c0_i32_0 : i32, i32
  }
  func.func @transform_2(%arg0: i32, %arg1: i32) -> (i32, i32) {
    %c0_i32 = arith.constant 0 : i32
    %c0_i32_0 = arith.constant 0 : i32
    %c0_i32_1 = arith.constant 0 : i32
    return %c0_i32, %c0_i32_0 : i32, i32
  }
  func.func @transform_3(%arg0: i32, %arg1: i32) -> (i32, i32) {
    %c0_i32 = arith.constant 0 : i32
    %c0_i32_0 = arith.constant 0 : i32
    return %arg1, %c0_i32 : i32, i32
  }
  func.func @transform_4(%arg0: i32, %arg1: i32) -> (i32, i32, i32, i32) {
    %c0_i32 = arith.constant 0 : i32
    %c0_i32_0 = arith.constant 0 : i32
    %c0_i32_1 = arith.constant 0 : i32
    return %arg0, %c0_i32, %arg1, %c0_i32_0 : i32, i32, i32, i32
  }
}

module attributes {stable_mosaic.version = 11 : i64} {
  func.func @detect_level_kernel(%arg0: i32, %arg1: i32, %arg2: memref<1x16x128xf32, #tpu.memory_space<vmem>>, %arg3: memref<16x384xbf16, #tpu.memory_space<vmem>>, %arg4: memref<8x384xf32, #tpu.memory_space<vmem>>, %arg5: memref<128x8xf32, #tpu.memory_space<vmem>>, %arg6: memref<1x3x128x85xf32, #tpu.memory_space<vmem>>) attributes {dimension_semantics = [#tpu.dimension_semantics<parallel>, #tpu.dimension_semantics<parallel>], iteration_bounds = array<i64: 2, 1>, scalar_prefetch = 0 : i64, scratch_operands = 0 : i64, tpu.core_type = #tpu.core_type<tc>, window_params = [{transform_indices = @transform_0, window_bounds = array<i64: 1, 16, 128>}, {pipeline_mode = #tpu.pipeline_mode<synchronous>, transform_indices = @transform_1, window_bounds = array<i64: 16, 384>}, {pipeline_mode = #tpu.pipeline_mode<synchronous>, transform_indices = @transform_2, window_bounds = array<i64: 8, 384>}, {transform_indices = @transform_3, window_bounds = array<i64: 128, 8>}, {transform_indices = @transform_4, window_bounds = array<i64: 1, 3, 128, 85>}]} {
    %c0 = arith.constant 0 : index
    %c0_0 = arith.constant 0 : index
    %c0_1 = arith.constant 0 : index
    %0 = vector.load %arg2[%c0, %c0_0, %c0_1] : memref<1x16x128xf32, #tpu.memory_space<vmem>>, vector<1x16x128xf32>
    %1 = vector.shape_cast %0 : vector<1x16x128xf32> to vector<16x128xf32>
    %2 = tpu.transpose %1, [1, 0] : vector<16x128xf32> -> vector<128x16xf32>
    %3 = arith.truncf %2 : vector<128x16xf32> to vector<128x16xbf16>
    %c0_2 = arith.constant 0 : index
    %c0_3 = arith.constant 0 : index
    %4 = vector.load %arg3[%c0_2, %c0_3] : memref<16x384xbf16, #tpu.memory_space<vmem>>, vector<16x384xbf16>
    %cst = arith.constant dense<0.000000e+00> : vector<128x384xf32>
    %5 = tpu.matmul %3, %4, %cst {dimension_numbers = #tpu.dot_dimension_numbers<[1], [0], [0], [1], [0, 0, 1, 1], [], []>} : vector<128x16xbf16>, vector<16x384xbf16>, vector<128x384xf32> -> vector<128x384xf32>
    %c0_4 = arith.constant 0 : index
    %c0_5 = arith.constant 0 : index
    %6 = vector.load %arg4[%c0_4, %c0_5] : memref<8x384xf32, #tpu.memory_space<vmem>>, vector<1x384xf32>
    %7 = vector.broadcast %6 : vector<1x384xf32> to vector<128x384xf32>
    %8 = arith.addf %5, %7 : vector<128x384xf32>
    %cst_6 = arith.constant 5.000000e-01 : f32
    %9 = vector.broadcast %cst_6 : f32 to vector<128x384xf32>
    %10 = arith.mulf %9, %8 : vector<128x384xf32>
    %11 = math.tanh %10 : vector<128x384xf32>
    %cst_7 = arith.constant 5.000000e-01 : f32
    %12 = vector.broadcast %cst_7 : f32 to vector<128x384xf32>
    %13 = arith.mulf %12, %11 : vector<128x384xf32>
    %cst_8 = arith.constant 5.000000e-01 : f32
    %14 = vector.broadcast %cst_8 : f32 to vector<128x384xf32>
    %15 = arith.addf %13, %14 : vector<128x384xf32>
    %c0_9 = arith.constant 0 : index
    %c0_10 = arith.constant 0 : index
    %16 = vector.load %arg5[%c0_9, %c0_10] : memref<128x8xf32, #tpu.memory_space<vmem>>, vector<128x8xf32>
    %c0_11 = arith.constant 0 : index
    %c0_12 = arith.constant 0 : index
    %17 = vector.load %arg4[%c0_11, %c0_12] : memref<8x384xf32, #tpu.memory_space<vmem>>, vector<8x384xf32>
    %cst_13 = arith.constant dense<0.000000e+00> : vector<128x384xf32>
    %18 = tpu.matmul %16, %17, %cst_13 {dimension_numbers = #tpu.dot_dimension_numbers<[1], [0], [0], [1], [0, 0, 1, 1], [], []>} : vector<128x8xf32>, vector<8x384xf32>, vector<128x384xf32> -> vector<128x384xf32>
    %c1 = arith.constant 1 : index
    %c0_14 = arith.constant 0 : index
    %19 = vector.load %arg4[%c1, %c0_14] : memref<8x384xf32, #tpu.memory_space<vmem>>, vector<1x384xf32>
    %c2 = arith.constant 2 : index
    %c0_15 = arith.constant 0 : index
    %20 = vector.load %arg4[%c2, %c0_15] : memref<8x384xf32, #tpu.memory_space<vmem>>, vector<1x384xf32>
    %21 = vector.broadcast %20 : vector<1x384xf32> to vector<128x384xf32>
    %22 = arith.mulf %21, %15 : vector<128x384xf32>
    %23 = vector.broadcast %19 : vector<1x384xf32> to vector<128x384xf32>
    %24 = arith.addf %23, %22 : vector<128x384xf32>
    %25 = arith.mulf %15, %24 : vector<128x384xf32>
    %26 = arith.addf %25, %18 : vector<128x384xf32>
    %27 = vector.extract_strided_slice %26 {offsets = [0, 0], sizes = [128, 85], strides = [1, 1]} : vector<128x384xf32> to vector<128x85xf32>
    %c0_16 = arith.constant 0 : index
    %c0_17 = arith.constant 0 : index
    %c0_18 = arith.constant 0 : index
    %c0_19 = arith.constant 0 : index
    %28 = vector.load %arg6[%c0_16, %c0_17, %c0_18, %c0_19] : memref<1x3x128x85xf32, #tpu.memory_space<vmem>>, vector<1x1x128x85xf32>
    %29 = vector.shape_cast %28 : vector<1x1x128x85xf32> to vector<128x85xf32>
    %30 = vector.shape_cast %27 : vector<128x85xf32> to vector<1x1x128x85xf32>
    tpu.vector_store %arg6[%c0_16, %c0_17, %c0_18, %c0_19], %30 {strides = array<i32>} : memref<1x3x128x85xf32, #tpu.memory_space<vmem>>, vector<1x1x128x85xf32>,
    %31 = vector.extract_strided_slice %26 {offsets = [0, 128], sizes = [128, 85], strides = [1, 1]} : vector<128x384xf32> to vector<128x85xf32>
    %c0_20 = arith.constant 0 : index
    %c1_21 = arith.constant 1 : index
    %c0_22 = arith.constant 0 : index
    %c0_23 = arith.constant 0 : index
    %32 = vector.load %arg6[%c0_20, %c1_21, %c0_22, %c0_23] : memref<1x3x128x85xf32, #tpu.memory_space<vmem>>, vector<1x1x128x85xf32>
    %33 = vector.shape_cast %32 : vector<1x1x128x85xf32> to vector<128x85xf32>
    %34 = vector.shape_cast %31 : vector<128x85xf32> to vector<1x1x128x85xf32>
    tpu.vector_store %arg6[%c0_20, %c1_21, %c0_22, %c0_23], %34 {strides = array<i32>} : memref<1x3x128x85xf32, #tpu.memory_space<vmem>>, vector<1x1x128x85xf32>,
    %35 = vector.extract_strided_slice %26 {offsets = [0, 256], sizes = [128, 85], strides = [1, 1]} : vector<128x384xf32> to vector<128x85xf32>
    %c0_24 = arith.constant 0 : index
    %c2_25 = arith.constant 2 : index
    %c0_26 = arith.constant 0 : index
    %c0_27 = arith.constant 0 : index
    %36 = vector.load %arg6[%c0_24, %c2_25, %c0_26, %c0_27] : memref<1x3x128x85xf32, #tpu.memory_space<vmem>>, vector<1x1x128x85xf32>
    %37 = vector.shape_cast %36 : vector<1x1x128x85xf32> to vector<128x85xf32>
    %38 = vector.shape_cast %35 : vector<128x85xf32> to vector<1x1x128x85xf32>
    tpu.vector_store %arg6[%c0_24, %c2_25, %c0_26, %c0_27], %38 {strides = array<i32>} : memref<1x3x128x85xf32, #tpu.memory_space<vmem>>, vector<1x1x128x85xf32>,
    return
  }
  func.func @transform_0(%arg0: i32, %arg1: i32) -> (i32, i32, i32) {
    %c0_i32 = arith.constant 0 : i32
    %c0_i32_0 = arith.constant 0 : i32
    return %arg0, %c0_i32, %arg1 : i32, i32, i32
  }
  func.func @transform_1(%arg0: i32, %arg1: i32) -> (i32, i32) {
    %c0_i32 = arith.constant 0 : i32
    %c0_i32_0 = arith.constant 0 : i32
    %c0_i32_1 = arith.constant 0 : i32
    return %c0_i32, %c0_i32_0 : i32, i32
  }
  func.func @transform_2(%arg0: i32, %arg1: i32) -> (i32, i32) {
    %c0_i32 = arith.constant 0 : i32
    %c0_i32_0 = arith.constant 0 : i32
    %c0_i32_1 = arith.constant 0 : i32
    return %c0_i32, %c0_i32_0 : i32, i32
  }
  func.func @transform_3(%arg0: i32, %arg1: i32) -> (i32, i32) {
    %c0_i32 = arith.constant 0 : i32
    %c0_i32_0 = arith.constant 0 : i32
    return %arg1, %c0_i32 : i32, i32
  }
  func.func @transform_4(%arg0: i32, %arg1: i32) -> (i32, i32, i32, i32) {
    %c0_i32 = arith.constant 0 : i32
    %c0_i32_0 = arith.constant 0 : i32
    %c0_i32_1 = arith.constant 0 : i32
    return %arg0, %c0_i32, %arg1, %c0_i32_0 : i32, i32, i32, i32
  }
}

</mosaic_0001>

<llo_original>
// kernel: detect_forward.2
$region0: #{detect_forward.2}
  #allocation0 [shape = 'u32[]', space=smem, size = 0x4, offset = 0x4, fixed_abs, tag = 'smem constant byte address 0x4 - core index']
  #allocation1 [shape = 'u32[72,128]{1,0:T(1,128)}', space=vmem, size = 0x9000, scoped, tag = 'internal scratch']
  %s0 = inlined_call_operand.vmem [shape: f32[2,8,256], index: 0, kind: input, shape index: {}]
  %s1 = inlined_call_operand.vmem [shape: bf16[8,384], index: 1, kind: input, shape index: {}]
  %s2 = inlined_call_operand.vmem [shape: f32[8,384], index: 2, kind: input, shape index: {}]
  %s3 = inlined_call_operand.vmem [shape: f32[256,8], index: 3, kind: input, shape index: {}]
  %s4 = inlined_call_operand.vmem [shape: f32[2,3,256,85], index: 4, kind: output, shape index: {}]
  %s5 = sld [smem:[#allocation0]]
  $region49: #{detect_forward.2} parent=0
    _
  %s7 = ssub.s32 1, %s5
  %s8 = scalar_select 0, %s7, %s5
  loop: start=0, step=1, limit=4
  $region2: #{detect_forward.2} parent=0 // loop_pre_header
    _
  $region3: #{detect_forward.2} parent=0 // loop_header
    %s10 = sphi 0, %s14
    %p11 = scmp.ge.s32.totalorder %s10, 4
    %s17 = sphi 0, %s29
    %s18 = sphi 0, %s25
    %s19 = sphi 0, %s17
    %s20 = sphi 0, %s18
    %s21 = sphi 0, %s19
    %s22 = sphi 0, %s20
    %s34 = sphi 0, %s36
    %s37 = sphi 0, %s34
    %s38 = sphi 0, %s37
    %s54 = sphi 0, %s38
    %s58 = sphi 0, %s58
    %s60 = sphi 0, %s58
    %s61 = sphi 0, %s60
    %s75 = sphi 0, %s61
    %s79 = sphi 0, %s79
    %s81 = sphi 0, %s79
    %s82 = sphi 0, %s81
    %s96 = sphi 0, %s82
    %s102 = sphi 0, %s104
    %s105 = sphi 0, %s102
    %s106 = sphi 0, %s105
    %s122 = sphi 0, %s106
    %s130 = sphi 0, %s132
    %s133 = sphi 0, %s130
    %s134 = sphi 0, %s133
    %s150 = sphi 0, %s134
  $region4: #{detect_forward.2} parent=0 // loop_header_branch
    %13 = sbr.rel (%p11) target = $region8
  $region5: #{detect_forward.2} parent=0 // loop_body
    %s15 = ssub.s32 %s10, 1
    %s16 = ssub.s32 %s10, 2
    %s23 = sadd.s32 1, %s18
    %p24 = scmp.ge.s32.totalorder %s23, 1
    %s25 = scalar_select %p24, 0, %s23
    %s26 = sadd.s32 1, %s17
    %s27 = scalar_select %p24, %s26, %s17
    %p28 = scmp.ge.s32.totalorder %s27, 2
    %s29 = scalar_select %p28, 0, %s27
    %s30 = ssub.s32 %s17, %s29
    %s31 = ssub.s32 %s18, %s25
    %s32 = sor.u32 %s30, %s31
    %p33 = scmp.eq.s32.totalorder %s32, 0
    %s35 = sadd.s32 %s34, 1
    %s36 = scalar_select %p33, %s34, %s35
    %p39 = pneg %p33
    %p40 = scmp.eq.s32.totalorder %s10, 1
    %p41 = por %p39, %p40
    %p42 = scmp.ne.s32.totalorder %s34, %s37
    %p43 = scmp.eq.s32.totalorder %s10, 0
    %p44 = por %p42, %p43
    %p45 = scmp.ne.s32.totalorder %s34, %s37
    %p46 = scmp.eq.s32.totalorder %s15, 1
    %p47 = por %p45, %p46
    %p48 = scmp.ne.s32.totalorder %s37, %s38
    %p49 = scmp.eq.s32.totalorder %s15, 0
    %p50 = por %p48, %p49
    %p51 = scmp.ne.s32.totalorder %s37, %s38
    %p52 = scmp.eq.s32.totalorder %s16, 1
    %p53 = por %p51, %p52
    %p55 = scmp.ne.s32.totalorder %s38, %s54
    %p56 = scmp.eq.s32.totalorder %s16, 0
    %p57 = por %p55, %p56
    %s59 = sadd.s32 %s58, 1
    %p62 = scmp.eq.s32.totalorder %s10, 1
    %p63 = scmp.ne.s32.totalorder %s58, %s60
    %p64 = scmp.eq.s32.totalorder %s10, 0
    %p65 = por %p63, %p64
    %p66 = scmp.ne.s32.totalorder %s58, %s60
    %p67 = scmp.eq.s32.totalorder %s15, 1
    %p68 = por %p66, %p67
    %p69 = scmp.ne.s32.totalorder %s60, %s61
    %p70 = scmp.eq.s32.totalorder %s15, 0
    %p71 = por %p69, %p70
    %p72 = scmp.ne.s32.totalorder %s60, %s61
    %p73 = scmp.eq.s32.totalorder %s16, 1
    %p74 = por %p72, %p73
    %p76 = scmp.ne.s32.totalorder %s61, %s75
    %p77 = scmp.eq.s32.totalorder %s16, 0
    %p78 = por %p76, %p77
    %s80 = sadd.s32 %s79, 1
    %p83 = scmp.eq.s32.totalorder %s10, 1
    %p84 = scmp.ne.s32.totalorder %s79, %s81
    %p85 = scmp.eq.s32.totalorder %s10, 0
    %p86 = por %p84, %p85
    %p87 = scmp.ne.s32.totalorder %s79, %s81
    %p88 = scmp.eq.s32.totalorder %s15, 1
    %p89 = por %p87, %p88
    %p90 = scmp.ne.s32.totalorder %s81, %s82
    %p91 = scmp.eq.s32.totalorder %s15, 0
    %p92 = por %p90, %p91
    %p93 = scmp.ne.s32.totalorder %s81, %s82
    %p94 = scmp.eq.s32.totalorder %s16, 1
    %p95 = por %p93, %p94
    %p97 = scmp.ne.s32.totalorder %s82, %s96
    %p98 = scmp.eq.s32.totalorder %s16, 0
    %p99 = por %p97, %p98
    %s100 = ssub.s32 %s18, %s25
    %p101 = scmp.eq.s32.totalorder %s100, 0
    %s103 = sadd.s32 %s102, 1
    %s104 = scalar_select %p101, %s102, %s103
    %p107 = pneg %p101
    %p108 = scmp.eq.s32.totalorder %s10, 1
    %p109 = por %p107, %p108
    %p110 = scmp.ne.s32.totalorder %s102, %s105
    %p111 = scmp.eq.s32.totalorder %s10, 0
    %p112 = por %p110, %p111
    %p113 = scmp.ne.s32.totalorder %s102, %s105
    %p114 = scmp.eq.s32.totalorder %s15, 1
    %p115 = por %p113, %p114
    %p116 = scmp.ne.s32.totalorder %s105, %s106
    %p117 = scmp.eq.s32.totalorder %s15, 0
    %p118 = por %p116, %p117
    %p119 = scmp.ne.s32.totalorder %s105, %s106
    %p120 = scmp.eq.s32.totalorder %s16, 1
    %p121 = por %p119, %p120
    %p123 = scmp.ne.s32.totalorder %s106, %s122
    %p124 = scmp.eq.s32.totalorder %s16, 0
    %p125 = por %p123, %p124
    %s126 = ssub.s32 %s17, %s29
    %s127 = ssub.s32 %s18, %s25
    %s128 = sor.u32 %s126, %s127
    %p129 = scmp.eq.s32.totalorder %s128, 0
    %s131 = sadd.s32 %s130, 1
    %s132 = scalar_select %p129, %s130, %s131
    %p135 = pneg %p129
    %p136 = scmp.eq.s32.totalorder %s10, 1
    %p137 = por %p135, %p136
    %p138 = scmp.ne.s32.totalorder %s130, %s133
    %p139 = scmp.eq.s32.totalorder %s10, 0
    %p140 = por %p138, %p139
    %p141 = scmp.ne.s32.totalorder %s130, %s133
    %p142 = scmp.eq.s32.totalorder %s15, 1
    %p143 = por %p141, %p142
    %p144 = scmp.ne.s32.totalorder %s133, %s134
    %p145 = scmp.eq.s32.totalorder %s15, 0
    %p146 = por %p144, %p145
    %p147 = scmp.ne.s32.totalorder %s133, %s134
    %p148 = scmp.eq.s32.totalorder %s16, 1
    %p149 = por %p147, %p148
    %p151 = scmp.ne.s32.totalorder %s134, %s150
    %p152 = scmp.eq.s32.totalorder %s16, 0
    %p153 = por %p151, %p152
    %p154 = scmp.le.s32.totalorder 1, %s10
    %p155 = scmp.lt.s32.totalorder %s10, 3
    %p156 = pnand %p154, %p155
    %p157 = pneg %p156
    // Predicated region
    $region9: #{detect_forward.2} parent=5 // pred_check
      _
    $region10: #{detect_forward.2} parent=5 // pred_check_branch
      %159 = sbr.rel (%p156) target = $region12
    $region11: #{detect_forward.2} parent=5 // pred_region
      %s160 = ssub.s32 %s10, 1
      // Predicated region
      $region13: #{detect_forward.2} parent=11 // pred_check
        %p161 = pneg %p71
      $region14: #{detect_forward.2} parent=11 // pred_check_branch
        %163 = sbr.rel (%p161) target = $region16
      $region15: #{detect_forward.2} parent=11 // pred_region
        _
      $region16: #{detect_forward.2} parent=11 // pred_fallthru
        _
      // Predicated region
      $region17: #{detect_forward.2} parent=11 // pred_check
        %p164 = pneg %p92
      $region18: #{detect_forward.2} parent=11 // pred_check_branch
        %166 = sbr.rel (%p164) target = $region20
      $region19: #{detect_forward.2} parent=11 // pred_region
        _
      $region20: #{detect_forward.2} parent=11 // pred_fallthru
        _
      // Predicated region
      $region21: #{detect_forward.2} parent=11 // pred_check
        %p167 = pneg %p118
      $region22: #{detect_forward.2} parent=11 // pred_check_branch
        %169 = sbr.rel (%p167) target = $region24
      $region23: #{detect_forward.2} parent=11 // pred_region
        %s170 = smul.u32 32, %s20
        %p171 = scmp.lt.s32.totalorder %s170, 31
        %s172 = scalar_select %p171, %s170, 31
        %s173 = smul.addr %s172, 8
        %s174 = scalar_lea.vmem %s3, %s173
        %s175 = smul.u32 32, %s20
      $region24: #{detect_forward.2} parent=11 // pred_fallthru
        _
    $region12: #{detect_forward.2} parent=5 // pred_fallthru
      _
    %p176 = scmp.lt.s32.totalorder %s10, 2
    // Predicated region
    $region25: #{detect_forward.2} parent=5 // pred_check
      %p177 = pneg %p176
    $region26: #{detect_forward.2} parent=5 // pred_check_branch
      %179 = sbr.rel (%p177) target = $region28
    $region27: #{detect_forward.2} parent=5 // pred_region
      // Predicated region
      $region29: #{detect_forward.2} parent=27 // pred_check
        %p180 = pneg %p44
      $region30: #{detect_forward.2} parent=27 // pred_check_branch
        %182 = sbr.rel (%p180) target = $region32
      $region31: #{detect_forward.2} parent=27 // pred_region
        %s183 = smul.u32 2, %s18
        %p184 = scmp.lt.s32.totalorder %s17, 1
        %s185 = scalar_select %p184, %s17, 1
        %p186 = scmp.lt.s32.totalorder %s183, 1
        %s187 = scalar_select %p186, %s183, 1
        %s188 = smul.addr %s185, 2
        %s189 = sadd.s32 %s187, %s188
        %s190 = smul.addr %s189, 8
        %s191 = scalar_lea.vmem %s0, %s190
        %s192 = smul.u32 2, %s18
      $region32: #{detect_forward.2} parent=27 // pred_fallthru
        _
    $region28: #{detect_forward.2} parent=5 // pred_fallthru
      _
    %p193 = scmp.le.s32.totalorder 1, %s10
    %p194 = scmp.lt.s32.totalorder %s10, 3
    %p195 = pnand %p193, %p194
    %p196 = pneg %p195
    // Predicated region
    $region33: #{detect_forward.2} parent=5 // pred_check
      _
    $region34: #{detect_forward.2} parent=5 // pred_check_branch
      %198 = sbr.rel (%p195) target = $region36
    $region35: #{detect_forward.2} parent=5 // pred_region
      %s199 = ssub.s32 %s10, 1
      %s200 = smul.u32 2, %s20
      %p201 = scmp.lt.s32.totalorder %s19, 1
      %s202 = scalar_select %p201, %s19, 1
      %p203 = scmp.lt.s32.totalorder %s200, 1
      %s204 = scalar_select %p203, %s200, 1
      %s205 = smul.addr %s202, 2
      %s206 = sadd.s32 %s204, %s205
      %s207 = smul.addr %s206, 8
      %s208 = scalar_lea.vmem %s0, %s207
      %p209 = pneg %p50
      %p210 = pneg %p47
      %p211 = pneg %p71
      %p212 = pneg %p68
      %p213 = pneg %p92
      %p214 = pneg %p89
      %s215 = smul.u32 32, %s20
      %p216 = scmp.lt.s32.totalorder %s215, 31
      %s217 = scalar_select %p216, %s215, 31
      %s218 = smul.addr %s217, 8
      %s219 = scalar_lea.vmem %s3, %s218
      %p220 = pneg %p118
      %p221 = pneg %p115
      %p222 = pneg %p146
      %p223 = pneg %p143
      %s224 = smul.u32 32, %s20
      %p225 = scmp.lt.s32.totalorder %s19, 1
      %s226 = scalar_select %p225, %s19, 1
      %p227 = scmp.lt.s32.totalorder %s224, 31
      %s228 = scalar_select %p227, %s224, 31
      %s229 = smul.addr %s226, 96
      %s230 = sadd.s32 %s228, %s229
      %s231 = smul.addr %s230, 8
      %s232 = scalar_lea.vmem %s4, %s231
      %s233 = smul.u32 2, %s20
      %p234 = scmp.lt.s32.totalorder %s19, 1
      %s235 = scalar_select %p234, %s19, 1
      %p236 = scmp.lt.s32.totalorder %s233, 1
      %s237 = scalar_select %p236, %s233, 1
      %s238 = smul.addr %s235, 2
      %s239 = sadd.s32 %s237, %s238
      %s240 = smul.addr %s239, 8
      %s241 = scalar_lea.vmem %s0, %s240
      %s242 = smul.u32 2, %s20
      %s243 = smul.u32 32, %s20
      %p244 = scmp.lt.s32.totalorder %s243, 31
      %s245 = scalar_select %p244, %s243, 31
      %s246 = smul.addr %s245, 8
      %s247 = scalar_lea.vmem %s3, %s246
      %s248 = smul.u32 32, %s20
      %s249 = smul.u32 32, %s20
      %p250 = scmp.lt.s32.totalorder %s19, 1
      %s251 = scalar_select %p250, %s19, 1
      %p252 = scmp.lt.s32.totalorder %s249, 31
      %s253 = scalar_select %p252, %s249, 31
      %s254 = smul.addr %s251, 96
      %s255 = sadd.s32 %s253, %s254
      %s256 = smul.addr %s255, 8
      %s257 = scalar_lea.vmem %s4, %s256
      %s258 = smul.u32 32, %s20
      %v260 = vld [vmem:[%s241] sm:$0xff]
      %v261 = vld [vmem:[%s241 + $0x8] sm:$0xff]
      %262 = vxpose.xlu0.b32.start [1/16] %v260, 128
      %263 = vxpose.xlu0.b32.cont [2/16] 0.0, 128
      %264 = vxpose.xlu0.b32.cont [3/16] 0.0, 128
      %265 = vxpose.xlu0.b32.cont [4/16] 0.0, 128
      %266 = vxpose.xlu0.b32.cont [5/16] 0.0, 128
      %267 = vxpose.xlu0.b32.cont [6/16] 0.0, 128
      %268 = vxpose.xlu0.b32.cont [7/16] 0.0, 128
      %269 = vxpose.xlu0.b32.cont [8/16] 0.0, 128
      %270 = vxpose.xlu0.b32.cont [9/16] 0.0, 128
      %271 = vxpose.xlu0.b32.cont [10/16] 0.0, 128
      %272 = vxpose.xlu0.b32.cont [11/16] 0.0, 128
      %273 = vxpose.xlu0.b32.cont [12/16] 0.0, 128
      %274 = vxpose.xlu0.b32.cont [13/16] 0.0, 128
      %275 = vxpose.xlu0.b32.cont [14/16] 0.0, 128
      %276 = vxpose.xlu0.b32.cont [15/16] 0.0, 128
      %277 = vxpose.xlu0.b32.end [16/16] 0.0, 128
      %v278 = vpop.trf.xlu0
      %v279 = vpop.trf.xlu0
      %v280 = vpop.trf.xlu0
      %v281 = vpop.trf.xlu0
      %v282 = vpop.trf.xlu0
      %v283 = vpop.trf.xlu0
      %v284 = vpop.trf.xlu0
      %v285 = vpop.trf.xlu0
      %v286 = vpop.trf.xlu0
      %v287 = vpop.trf.xlu0
      %v288 = vpop.trf.xlu0
      %v289 = vpop.trf.xlu0
      %v290 = vpop.trf.xlu0
      %v291 = vpop.trf.xlu0
      %v292 = vpop.trf.xlu0
      %v293 = vpop.trf.xlu0
      %294 = vxpose.xlu0.b32.start [1/16] %v261, 128
      %295 = vxpose.xlu0.b32.cont [2/16] 0.0, 128
      %296 = vxpose.xlu0.b32.cont [3/16] 0.0, 128
      %297 = vxpose.xlu0.b32.cont [4/16] 0.0, 128
      %298 = vxpose.xlu0.b32.cont [5/16] 0.0, 128
      %299 = vxpose.xlu0.b32.cont [6/16] 0.0, 128
      %300 = vxpose.xlu0.b32.cont [7/16] 0.0, 128
      %301 = vxpose.xlu0.b32.cont [8/16] 0.0, 128
      %302 = vxpose.xlu0.b32.cont [9/16] 0.0, 128
      %303 = vxpose.xlu0.b32.cont [10/16] 0.0, 128
      %304 = vxpose.xlu0.b32.cont [11/16] 0.0, 128
      %305 = vxpose.xlu0.b32.cont [12/16] 0.0, 128
      %306 = vxpose.xlu0.b32.cont [13/16] 0.0, 128
      %307 = vxpose.xlu0.b32.cont [14/16] 0.0, 128
      %308 = vxpose.xlu0.b32.cont [15/16] 0.0, 128
      %309 = vxpose.xlu0.b32.end [16/16] 0.0, 128
      %v310 = vpop.trf.xlu0
      %v311 = vpop.trf.xlu0
      %v312 = vpop.trf.xlu0
      %v313 = vpop.trf.xlu0
      %v314 = vpop.trf.xlu0
      %v315 = vpop.trf.xlu0
      %v316 = vpop.trf.xlu0
      %v317 = vpop.trf.xlu0
      %v318 = vpop.trf.xlu0
      %v319 = vpop.trf.xlu0
      %v320 = vpop.trf.xlu0
      %v321 = vpop.trf.xlu0
      %v322 = vpop.trf.xlu0
      %v323 = vpop.trf.xlu0
      %v324 = vpop.trf.xlu0
      %v325 = vpop.trf.xlu0
      %v326 = vpack.c.bf16 %v279, %v278
      %v327 = vpack.c.bf16 %v281, %v280
      %v328 = vpack.c.bf16 %v283, %v282
      %v329 = vpack.c.bf16 %v285, %v284
      %v330 = vpack.c.bf16 %v287, %v286
      %v331 = vpack.c.bf16 %v289, %v288
      %v332 = vpack.c.bf16 %v291, %v290
      %v333 = vpack.c.bf16 %v293, %v292
      %v334 = vpack.c.bf16 %v311, %v310
      %v335 = vpack.c.bf16 %v313, %v312
      %v336 = vpack.c.bf16 %v315, %v314
      %v337 = vpack.c.bf16 %v317, %v316
      %v338 = vpack.c.bf16 %v319, %v318
      %v339 = vpack.c.bf16 %v321, %v320
      %v340 = vpack.c.bf16 %v323, %v322
      %v341 = vpack.c.bf16 %v325, %v324
      %v342 = vld [vmem:[%s1] sm:$0xff]
      %v343 = vld [vmem:[%s1 + $0x8] sm:$0xf]
      %v344 = vld [vmem:[%s2] ss:$8 sm:$0x7]
      %v346 = vperm.slane %v344, 0
      %v347 = vperm.slane %v344, 1
      %v348 = vperm.slane %v344, 2
      %v354 = vunpack.c.l.b16 %v342
      %v355 = vunpack.c.h.b16 %v342
      %v356 = vunpack.c.l.b16 %v343
      %v357 = vpack.c.b16 %v354, %v354
      %v358 = vpack.c.b16 %v355, %v355
      %v359 = vpack.c.b16 %v356, %v356
      %vm360 = vcmask 64512
      %v362 = vsel %vm360, %v326, 0
      %v365 = vsel %vm360, %v327, 0
      %v368 = vsel %vm360, %v328, 0
      %v371 = vsel %vm360, %v329, 0
      %v374 = vsel %vm360, %v330, 0
      %v377 = vsel %vm360, %v331, 0
      %v380 = vsel %vm360, %v332, 0
      %v383 = vsel %vm360, %v333, 0
      %v386 = vsel %vm360, %v334, 0
      %v389 = vsel %vm360, %v335, 0
      %v392 = vsel %vm360, %v336, 0
      %v395 = vsel %vm360, %v337, 0
      %v398 = vsel %vm360, %v338, 0
      %v401 = vsel %vm360, %v339, 0
      %v404 = vsel %vm360, %v340, 0
      %v407 = vsel %vm360, %v341, 0
      %vm409 = vcmask 1043456
      %v411 = vsel %vm409, %v357, 0
      %v414 = vsel %vm409, %v358, 0
      %v417 = vsel %vm409, %v359, 0
      %419 = vmatpush.bf16.msra.mxu0 0
      %420 = vmatpush.bf16.msra.mxu0 0
      %421 = vmatpush.bf16.msra.mxu0 0
      %422 = vmatpush.bf16.msra.mxu0 0
      %423 = vmatpush.bf16.msra.mxu0 0
      %424 = vmatpush.bf16.msra.mxu0 0
      %425 = vmatpush.bf16.msra.mxu0 0
      %426 = vmatpush.bf16.msra.mxu0 %v411
      %427 = vmatmul.bf16.gmra.mxu0 %v362
      %v428 = vpop.f32.mrf.mxu0
      %v429 = vadd.f32 %v346, %v428
      %v430 = vpop.f32.mrf.mxu0
      %v431 = vadd.f32 %v346, %v430
      %432 = vmatmul.bf16.gmra.mxu0 %v365
      %v433 = vpop.f32.mrf.mxu0
      %v434 = vadd.f32 %v346, %v433
      %v435 = vpop.f32.mrf.mxu0
      %v436 = vadd.f32 %v346, %v435
      %437 = vmatmul.bf16.gmra.mxu0 %v368
      %v438 = vpop.f32.mrf.mxu0
      %v439 = vadd.f32 %v346, %v438
      %v440 = vpop.f32.mrf.mxu0
      %v441 = vadd.f32 %v346, %v440
      %442 = vmatmul.bf16.gmra.mxu0 %v371
      %v443 = vpop.f32.mrf.mxu0
      %v444 = vadd.f32 %v346, %v443
      %v445 = vpop.f32.mrf.mxu0
      %v446 = vadd.f32 %v346, %v445
      %447 = vmatmul.bf16.gmra.mxu0 %v374
      %v448 = vpop.f32.mrf.mxu0
      %v449 = vadd.f32 %v346, %v448
      %v450 = vpop.f32.mrf.mxu0
      %v451 = vadd.f32 %v346, %v450
      %452 = vmatmul.bf16.gmra.mxu0 %v377
      %v453 = vpop.f32.mrf.mxu0
      %v454 = vadd.f32 %v346, %v453
      %v455 = vpop.f32.mrf.mxu0
      %v456 = vadd.f32 %v346, %v455
      %457 = vmatmul.bf16.gmra.mxu0 %v380
      %v458 = vpop.f32.mrf.mxu0
      %v459 = vadd.f32 %v346, %v458
      %v460 = vpop.f32.mrf.mxu0
      %v461 = vadd.f32 %v346, %v460
      %462 = vmatmul.bf16.gmra.mxu0 %v383
      %v463 = vpop.f32.mrf.mxu0
      %v464 = vadd.f32 %v346, %v463
      %v465 = vpop.f32.mrf.mxu0
      %v466 = vadd.f32 %v346, %v465
      %467 = vmatmul.bf16.gmra.mxu0 %v386
      %v468 = vpop.f32.mrf.mxu0
      %v469 = vadd.f32 %v346, %v468
      %v470 = vpop.f32.mrf.mxu0
      %v471 = vadd.f32 %v346, %v470
      %472 = vmatmul.bf16.gmra.mxu0 %v389
      %v473 = vpop.f32.mrf.mxu0
      %v474 = vadd.f32 %v346, %v473
      %v475 = vpop.f32.mrf.mxu0
      %v476 = vadd.f32 %v346, %v475
      %477 = vmatmul.bf16.gmra.mxu0 %v392
      %v478 = vpop.f32.mrf.mxu0
      %v479 = vadd.f32 %v346, %v478
      %v480 = vpop.f32.mrf.mxu0
      %v481 = vadd.f32 %v346, %v480
      %482 = vmatmul.bf16.gmra.mxu0 %v395
      %v483 = vpop.f32.mrf.mxu0
      %v484 = vadd.f32 %v346, %v483
      %v485 = vpop.f32.mrf.mxu0
      %v486 = vadd.f32 %v346, %v485
      %487 = vmatmul.bf16.gmra.mxu0 %v398
      %v488 = vpop.f32.mrf.mxu0
      %v489 = vadd.f32 %v346, %v488
      %v490 = vpop.f32.mrf.mxu0
      %v491 = vadd.f32 %v346, %v490
      %492 = vmatmul.bf16.gmra.mxu0 %v401
      %v493 = vpop.f32.mrf.mxu0
      %v494 = vadd.f32 %v346, %v493
      %v495 = vpop.f32.mrf.mxu0
      %v496 = vadd.f32 %v346, %v495
      %497 = vmatmul.bf16.gmra.mxu0 %v404
      %v498 = vpop.f32.mrf.mxu0
      %v499 = vadd.f32 %v346, %v498
      %v500 = vpop.f32.mrf.mxu0
      %v501 = vadd.f32 %v346, %v500
      %502 = vmatmul.bf16.gmra.mxu0 %v407
      %v503 = vpop.f32.mrf.mxu0
      %v504 = vadd.f32 %v346, %v503
      %v505 = vpop.f32.mrf.mxu0
      %v506 = vadd.f32 %v346, %v505
      %507 = vdwg.mxu0
      %508 = vmatpush.bf16.msra.mxu0 0
      %509 = vmatpush.bf16.msra.mxu0 0
      %510 = vmatpush.bf16.msra.mxu0 0
      %511 = vmatpush.bf16.msra.mxu0 0
      %512 = vmatpush.bf16.msra.mxu0 0
      %513 = vmatpush.bf16.msra.mxu0 0
      %514 = vmatpush.bf16.msra.mxu0 0
      %515 = vmatpush.bf16.msra.mxu0 %v414
      %516 = vmatmul.bf16.gmra.mxu0 %v362
      %v517 = vpop.f32.mrf.mxu0
      %v518 = vadd.f32 %v347, %v517
      %v519 = vpop.f32.mrf.mxu0
      %v520 = vadd.f32 %v347, %v519
      %521 = vmatmul.bf16.gmra.mxu0 %v365
      %v522 = vpop.f32.mrf.mxu0
      %v523 = vadd.f32 %v347, %v522
      %v524 = vpop.f32.mrf.mxu0
      %v525 = vadd.f32 %v347, %v524
      %526 = vmatmul.bf16.gmra.mxu0 %v368
      %v527 = vpop.f32.mrf.mxu0
      %v528 = vadd.f32 %v347, %v527
      %v529 = vpop.f32.mrf.mxu0
      %v530 = vadd.f32 %v347, %v529
      %531 = vmatmul.bf16.gmra.mxu0 %v371
      %v532 = vpop.f32.mrf.mxu0
      %v533 = vadd.f32 %v347, %v532
      %v534 = vpop.f32.mrf.mxu0
      %v535 = vadd.f32 %v347, %v534
      %536 = vmatmul.bf16.gmra.mxu0 %v374
      %v537 = vpop.f32.mrf.mxu0
      %v538 = vadd.f32 %v347, %v537
      %v539 = vpop.f32.mrf.mxu0
      %v540 = vadd.f32 %v347, %v539
      %541 = vmatmul.bf16.gmra.mxu0 %v377
      %v542 = vpop.f32.mrf.mxu0
      %v543 = vadd.f32 %v347, %v542
      %v544 = vpop.f32.mrf.mxu0
      %v545 = vadd.f32 %v347, %v544
      %546 = vmatmul.bf16.gmra.mxu0 %v380
      %v547 = vpop.f32.mrf.mxu0
      %v548 = vadd.f32 %v347, %v547
      %v549 = vpop.f32.mrf.mxu0
      %v550 = vadd.f32 %v347, %v549
      %551 = vmatmul.bf16.gmra.mxu0 %v383
      %v552 = vpop.f32.mrf.mxu0
      %v553 = vadd.f32 %v347, %v552
      %v554 = vpop.f32.mrf.mxu0
      %v555 = vadd.f32 %v347, %v554
      %556 = vmatmul.bf16.gmra.mxu0 %v386
      %v557 = vpop.f32.mrf.mxu0
      %v558 = vadd.f32 %v347, %v557
      %v559 = vpop.f32.mrf.mxu0
      %v560 = vadd.f32 %v347, %v559
      %561 = vmatmul.bf16.gmra.mxu0 %v389
      %v562 = vpop.f32.mrf.mxu0
      %v563 = vadd.f32 %v347, %v562
      %v564 = vpop.f32.mrf.mxu0
      %v565 = vadd.f32 %v347, %v564
      %566 = vmatmul.bf16.gmra.mxu0 %v392
      %v567 = vpop.f32.mrf.mxu0
      %v568 = vadd.f32 %v347, %v567
      %v569 = vpop.f32.mrf.mxu0
      %v570 = vadd.f32 %v347, %v569
      %571 = vmatmul.bf16.gmra.mxu0 %v395
      %v572 = vpop.f32.mrf.mxu0
      %v573 = vadd.f32 %v347, %v572
      %v574 = vpop.f32.mrf.mxu0
      %v575 = vadd.f32 %v347, %v574
      %576 = vmatmul.bf16.gmra.mxu0 %v398
      %v577 = vpop.f32.mrf.mxu0
      %v578 = vadd.f32 %v347, %v577
      %v579 = vpop.f32.mrf.mxu0
      %v580 = vadd.f32 %v347, %v579
      %581 = vmatmul.bf16.gmra.mxu0 %v401
      %v582 = vpop.f32.mrf.mxu0
      %v583 = vadd.f32 %v347, %v582
      %v584 = vpop.f32.mrf.mxu0
      %v585 = vadd.f32 %v347, %v584
      %586 = vmatmul.bf16.gmra.mxu0 %v404
      %v587 = vpop.f32.mrf.mxu0
      %v588 = vadd.f32 %v347, %v587
      %v589 = vpop.f32.mrf.mxu0
      %v590 = vadd.f32 %v347, %v589
      %591 = vmatmul.bf16.gmra.mxu0 %v407
      %v592 = vpop.f32.mrf.mxu0
      %v593 = vadd.f32 %v347, %v592
      %v594 = vpop.f32.mrf.mxu0
      %v595 = vadd.f32 %v347, %v594
      %596 = vdwg.mxu0
      %597 = vmatpush.bf16.msra.mxu0 0
      %598 = vmatpush.bf16.msra.mxu0 0
      %599 = vmatpush.bf16.msra.mxu0 0
      %600 = vmatpush.bf16.msra.mxu0 0
      %601 = vmatpush.bf16.msra.mxu0 0
      %602 = vmatpush.bf16.msra.mxu0 0
      %603 = vmatpush.bf16.msra.mxu0 0
      %604 = vmatpush.bf16.msra.mxu0 %v417
      %605 = vmatmul.bf16.gmra.mxu0 %v362
      %v606 = vpop.f32.mrf.mxu0
      %v607 = vadd.f32 %v348, %v606
      %v608 = vpop.f32.mrf.mxu0
      %v609 = vadd.f32 %v348, %v608
      %610 = vmatmul.bf16.gmra.mxu0 %v365
      %v611 = vpop.f32.mrf.mxu0
      %v612 = vadd.f32 %v348, %v611
      %v613 = vpop.f32.mrf.mxu0
      %v614 = vadd.f32 %v348, %v613
      %615 = vmatmul.bf16.gmra.mxu0 %v368
      %v616 = vpop.f32.mrf.mxu0
      %v617 = vadd.f32 %v348, %v616
      %v618 = vpop.f32.mrf.mxu0
      %v619 = vadd.f32 %v348, %v618
      %620 = vmatmul.bf16.gmra.mxu0 %v371
      %v621 = vpop.f32.mrf.mxu0
      %v622 = vadd.f32 %v348, %v621
      %v623 = vpop.f32.mrf.mxu0
      %v624 = vadd.f32 %v348, %v623
      %625 = vmatmul.bf16.gmra.mxu0 %v374
      %v626 = vpop.f32.mrf.mxu0
      %v627 = vadd.f32 %v348, %v626
      %v628 = vpop.f32.mrf.mxu0
      %v629 = vadd.f32 %v348, %v628
      %630 = vmatmul.bf16.gmra.mxu0 %v377
      %v631 = vpop.f32.mrf.mxu0
      %v632 = vadd.f32 %v348, %v631
      %v633 = vpop.f32.mrf.mxu0
      %v634 = vadd.f32 %v348, %v633
      %635 = vmatmul.bf16.gmra.mxu0 %v380
      %v636 = vpop.f32.mrf.mxu0
      %v637 = vadd.f32 %v348, %v636
      %v638 = vpop.f32.mrf.mxu0
      %v639 = vadd.f32 %v348, %v638
      %640 = vmatmul.bf16.gmra.mxu0 %v383
      %v641 = vpop.f32.mrf.mxu0
      %v642 = vadd.f32 %v348, %v641
      %v643 = vpop.f32.mrf.mxu0
      %v644 = vadd.f32 %v348, %v643
      %645 = vmatmul.bf16.gmra.mxu0 %v386
      %v646 = vpop.f32.mrf.mxu0
      %v647 = vadd.f32 %v348, %v646
      %v648 = vpop.f32.mrf.mxu0
      %v649 = vadd.f32 %v348, %v648
      %650 = vmatmul.bf16.gmra.mxu0 %v389
      %v651 = vpop.f32.mrf.mxu0
      %v652 = vadd.f32 %v348, %v651
      %v653 = vpop.f32.mrf.mxu0
      %v654 = vadd.f32 %v348, %v653
      %655 = vmatmul.bf16.gmra.mxu0 %v392
      %v656 = vpop.f32.mrf.mxu0
      %v657 = vadd.f32 %v348, %v656
      %v658 = vpop.f32.mrf.mxu0
      %v659 = vadd.f32 %v348, %v658
      %660 = vmatmul.bf16.gmra.mxu0 %v395
      %v661 = vpop.f32.mrf.mxu0
      %v662 = vadd.f32 %v348, %v661
      %v663 = vpop.f32.mrf.mxu0
      %v664 = vadd.f32 %v348, %v663
      %665 = vmatmul.bf16.gmra.mxu0 %v398
      %v666 = vpop.f32.mrf.mxu0
      %v667 = vadd.f32 %v348, %v666
      %v668 = vpop.f32.mrf.mxu0
      %v669 = vadd.f32 %v348, %v668
      %670 = vmatmul.bf16.gmra.mxu0 %v401
      %v671 = vpop.f32.mrf.mxu0
      %v672 = vadd.f32 %v348, %v671
      %v673 = vpop.f32.mrf.mxu0
      %v674 = vadd.f32 %v348, %v673
      %675 = vmatmul.bf16.gmra.mxu0 %v404
      %v676 = vpop.f32.mrf.mxu0
      %v677 = vadd.f32 %v348, %v676
      %v678 = vpop.f32.mrf.mxu0
      %v679 = vadd.f32 %v348, %v678
      %680 = vmatmul.bf16.gmra.mxu0 %v407
      %v681 = vpop.f32.mrf.mxu0
      %v682 = vadd.f32 %v348, %v681
      %v683 = vpop.f32.mrf.mxu0
      %v684 = vadd.f32 %v348, %v683
      %685 = vdwg.mxu0
      %v686 = vmul.f32 %v429, 0.5
      %v687 = vmul.f32 %v518, 0.5
      %v688 = vmul.f32 %v607, 0.5
      %v689 = vmul.f32 %v431, 0.5
      %v690 = vmul.f32 %v520, 0.5
      %v691 = vmul.f32 %v609, 0.5
      %v692 = vmul.f32 %v434, 0.5
      %v693 = vmul.f32 %v523, 0.5
      %v694 = vmul.f32 %v612, 0.5
      %v695 = vmul.f32 %v436, 0.5
      %v696 = vmul.f32 %v525, 0.5
      %v697 = vmul.f32 %v614, 0.5
      %v698 = vmul.f32 %v439, 0.5
      %v699 = vmul.f32 %v528, 0.5
      %v700 = vmul.f32 %v617, 0.5
      %v701 = vmul.f32 %v441, 0.5
      %v702 = vmul.f32 %v530, 0.5
      %v703 = vmul.f32 %v619, 0.5
      %v704 = vmul.f32 %v444, 0.5
      %v705 = vmul.f32 %v533, 0.5
      %v706 = vmul.f32 %v622, 0.5
      %v707 = vmul.f32 %v446, 0.5
      %v708 = vmul.f32 %v535, 0.5
      %v709 = vmul.f32 %v624, 0.5
      %v710 = vmul.f32 %v449, 0.5
      %v711 = vmul.f32 %v538, 0.5
      %v712 = vmul.f32 %v627, 0.5
      %v713 = vmul.f32 %v451, 0.5
      %v714 = vmul.f32 %v540, 0.5
      %v715 = vmul.f32 %v629, 0.5
      %v716 = vmul.f32 %v454, 0.5
      %v717 = vmul.f32 %v543, 0.5
      %v718 = vmul.f32 %v632, 0.5
      %v719 = vmul.f32 %v456, 0.5
      %v720 = vmul.f32 %v545, 0.5
      %v721 = vmul.f32 %v634, 0.5
      %v722 = vmul.f32 %v459, 0.5
      %v723 = vmul.f32 %v548, 0.5
      %v724 = vmul.f32 %v637, 0.5
      %v725 = vmul.f32 %v461, 0.5
      %v726 = vmul.f32 %v550, 0.5
      %v727 = vmul.f32 %v639, 0.5
      %v728 = vmul.f32 %v464, 0.5
      %v729 = vmul.f32 %v553, 0.5
      %v730 = vmul.f32 %v642, 0.5
      %v731 = vmul.f32 %v466, 0.5
      %v732 = vmul.f32 %v555, 0.5
      %v733 = vmul.f32 %v644, 0.5
      %v734 = vmul.f32 %v469, 0.5
      %v735 = vmul.f32 %v558, 0.5
      %v736 = vmul.f32 %v647, 0.5
      %v737 = vmul.f32 %v471, 0.5
      %v738 = vmul.f32 %v560, 0.5
      %v739 = vmul.f32 %v649, 0.5
      %v740 = vmul.f32 %v474, 0.5
      %v741 = vmul.f32 %v563, 0.5
      %v742 = vmul.f32 %v652, 0.5
      %v743 = vmul.f32 %v476, 0.5
      %v744 = vmul.f32 %v565, 0.5
      %v745 = vmul.f32 %v654, 0.5
      %v746 = vmul.f32 %v479, 0.5
      %v747 = vmul.f32 %v568, 0.5
      %v748 = vmul.f32 %v657, 0.5
      %v749 = vmul.f32 %v481, 0.5
      %v750 = vmul.f32 %v570, 0.5
      %v751 = vmul.f32 %v659, 0.5
      %v752 = vmul.f32 %v484, 0.5
      %v753 = vmul.f32 %v573, 0.5
      %v754 = vmul.f32 %v662, 0.5
      %v755 = vmul.f32 %v486, 0.5
      %v756 = vmul.f32 %v575, 0.5
      %v757 = vmul.f32 %v664, 0.5
      %v758 = vmul.f32 %v489, 0.5
      %v759 = vmul.f32 %v578, 0.5
      %v760 = vmul.f32 %v667, 0.5
      %v761 = vmul.f32 %v491, 0.5
      %v762 = vmul.f32 %v580, 0.5
      %v763 = vmul.f32 %v669, 0.5
      %v764 = vmul.f32 %v494, 0.5
      %v765 = vmul.f32 %v583, 0.5
      %v766 = vmul.f32 %v672, 0.5
      %v767 = vmul.f32 %v496, 0.5
      %v768 = vmul.f32 %v585, 0.5
      %v769 = vmul.f32 %v674, 0.5
      %v770 = vmul.f32 %v499, 0.5
      %v771 = vmul.f32 %v588, 0.5
      %v772 = vmul.f32 %v677, 0.5
      %v773 = vmul.f32 %v501, 0.5
      %v774 = vmul.f32 %v590, 0.5
      %v775 = vmul.f32 %v679, 0.5
      %v776 = vmul.f32 %v504, 0.5
      %v777 = vmul.f32 %v593, 0.5
      %v778 = vmul.f32 %v682, 0.5
      %v779 = vmul.f32 %v506, 0.5
      %v780 = vmul.f32 %v595, 0.5
      %v781 = vmul.f32 %v684, 0.5
      %v782 = vtanh.pop %v686
      %v783 = vtanh.pop %v687
      %v784 = vtanh.pop %v688
      %v785 = vtanh.pop %v689
      %v786 = vtanh.pop %v690
      %v787 = vtanh.pop %v691
      %v788 = vtanh.pop %v692
      %v789 = vtanh.pop %v693
      %v790 = vtanh.pop %v694
      %v791 = vtanh.pop %v695
      %v792 = vtanh.pop %v696
      %v793 = vtanh.pop %v697
      %v794 = vtanh.pop %v698
      %v795 = vtanh.pop %v699
      %v796 = vtanh.pop %v700
      %v797 = vtanh.pop %v701
      %v798 = vtanh.pop %v702
      %v799 = vtanh.pop %v703
      %v800 = vtanh.pop %v704
      %v801 = vtanh.pop %v705
      %v802 = vtanh.pop %v706
      %v803 = vtanh.pop %v707
      %v804 = vtanh.pop %v708
      %v805 = vtanh.pop %v709
      %v806 = vtanh.pop %v710
      %v807 = vtanh.pop %v711
      %v808 = vtanh.pop %v712
      %v809 = vtanh.pop %v713
      %v810 = vtanh.pop %v714
      %v811 = vtanh.pop %v715
      %v812 = vtanh.pop %v716
      %v813 = vtanh.pop %v717
      %v814 = vtanh.pop %v718
      %v815 = vtanh.pop %v719
      %v816 = vtanh.pop %v720
      %v817 = vtanh.pop %v721
      %v818 = vtanh.pop %v722
      %v819 = vtanh.pop %v723
      %v820 = vtanh.pop %v724
      %v821 = vtanh.pop %v725
      %v822 = vtanh.pop %v726
      %v823 = vtanh.pop %v727
      %v824 = vtanh.pop %v728
      %v825 = vtanh.pop %v729
      %v826 = vtanh.pop %v730
      %v827 = vtanh.pop %v731
      %v828 = vtanh.pop %v732
      %v829 = vtanh.pop %v733
      %v830 = vtanh.pop %v734
      %v831 = vtanh.pop %v735
      %v832 = vtanh.pop %v736
      %v833 = vtanh.pop %v737
      %v834 = vtanh.pop %v738
      %v835 = vtanh.pop %v739
      %v836 = vtanh.pop %v740
      %v837 = vtanh.pop %v741
      %v838 = vtanh.pop %v742
      %v839 = vtanh.pop %v743
      %v840 = vtanh.pop %v744
      %v841 = vtanh.pop %v745
      %v842 = vtanh.pop %v746
      %v843 = vtanh.pop %v747
      %v844 = vtanh.pop %v748
      %v845 = vtanh.pop %v749
      %v846 = vtanh.pop %v750
      %v847 = vtanh.pop %v751
      %v848 = vtanh.pop %v752
      %v849 = vtanh.pop %v753
      %v850 = vtanh.pop %v754
      %v851 = vtanh.pop %v755
      %v852 = vtanh.pop %v756
      %v853 = vtanh.pop %v757
      %v854 = vtanh.pop %v758
      %v855 = vtanh.pop %v759
      %v856 = vtanh.pop %v760
      %v857 = vtanh.pop %v761
      %v858 = vtanh.pop %v762
      %v859 = vtanh.pop %v763
      %v860 = vtanh.pop %v764
      %v861 = vtanh.pop %v765
      %v862 = vtanh.pop %v766
      %v863 = vtanh.pop %v767
      %v864 = vtanh.pop %v768
      %v865 = vtanh.pop %v769
      %v866 = vtanh.pop %v770
      %v867 = vtanh.pop %v771
      %v868 = vtanh.pop %v772
      %v869 = vtanh.pop %v773
      %v870 = vtanh.pop %v774
      %v871 = vtanh.pop %v775
      %v872 = vtanh.pop %v776
      %v873 = vtanh.pop %v777
      %v874 = vtanh.pop %v778
      %v875 = vtanh.pop %v779
      %v876 = vtanh.pop %v780
      %v877 = vtanh.pop %v781
      %v878 = vmul.f32 %v782, 0.5
      %v879 = vmul.f32 %v783, 0.5
      %v880 = vmul.f32 %v784, 0.5
      %v881 = vmul.f32 %v785, 0.5
      %v882 = vmul.f32 %v786, 0.5
      %v883 = vmul.f32 %v787, 0.5
      %v884 = vmul.f32 %v788, 0.5
      %v885 = vmul.f32 %v789, 0.5
      %v886 = vmul.f32 %v790, 0.5
      %v887 = vmul.f32 %v791, 0.5
      %v888 = vmul.f32 %v792, 0.5
      %v889 = vmul.f32 %v793, 0.5
      %v890 = vmul.f32 %v794, 0.5
      %v891 = vmul.f32 %v795, 0.5
      %v892 = vmul.f32 %v796, 0.5
      %v893 = vmul.f32 %v797, 0.5
      %v894 = vmul.f32 %v798, 0.5
      %v895 = vmul.f32 %v799, 0.5
      %v896 = vmul.f32 %v800, 0.5
      %v897 = vmul.f32 %v801, 0.5
      %v898 = vmul.f32 %v802, 0.5
      %v899 = vmul.f32 %v803, 0.5
      %v900 = vmul.f32 %v804, 0.5
      %v901 = vmul.f32 %v805, 0.5
      %v902 = vmul.f32 %v806, 0.5
      %v903 = vmul.f32 %v807, 0.5
      %v904 = vmul.f32 %v808, 0.5
      %v905 = vmul.f32 %v809, 0.5
      %v906 = vmul.f32 %v810, 0.5
      %v907 = vmul.f32 %v811, 0.5
      %v908 = vmul.f32 %v812, 0.5
      %v909 = vmul.f32 %v813, 0.5
      %v910 = vmul.f32 %v814, 0.5
      %v911 = vmul.f32 %v815, 0.5
      %v912 = vmul.f32 %v816, 0.5
      %v913 = vmul.f32 %v817, 0.5
      %v914 = vmul.f32 %v818, 0.5
      %v915 = vmul.f32 %v819, 0.5
      %v916 = vmul.f32 %v820, 0.5
      %v917 = vmul.f32 %v821, 0.5
      %v918 = vmul.f32 %v822, 0.5
      %v919 = vmul.f32 %v823, 0.5
      %v920 = vmul.f32 %v824, 0.5
      %v921 = vmul.f32 %v825, 0.5
      %v922 = vmul.f32 %v826, 0.5
      %v923 = vmul.f32 %v827, 0.5
      %v924 = vmul.f32 %v828, 0.5
      %v925 = vmul.f32 %v829, 0.5
      %v926 = vmul.f32 %v830, 0.5
      %v927 = vmul.f32 %v831, 0.5
      %v928 = vmul.f32 %v832, 0.5
      %v929 = vmul.f32 %v833, 0.5
      %v930 = vmul.f32 %v834, 0.5
      %v931 = vmul.f32 %v835, 0.5
      %v932 = vmul.f32 %v836, 0.5
      %v933 = vmul.f32 %v837, 0.5
      %v934 = vmul.f32 %v838, 0.5
      %v935 = vmul.f32 %v839, 0.5
      %v936 = vmul.f32 %v840, 0.5
      %v937 = vmul.f32 %v841, 0.5
      %v938 = vmul.f32 %v842, 0.5
      %v939 = vmul.f32 %v843, 0.5
      %v940 = vmul.f32 %v844, 0.5
      %v941 = vmul.f32 %v845, 0.5
      %v942 = vmul.f32 %v846, 0.5
      %v943 = vmul.f32 %v847, 0.5
      %v944 = vmul.f32 %v848, 0.5
      %v945 = vmul.f32 %v849, 0.5
      %v946 = vmul.f32 %v850, 0.5
      %v947 = vmul.f32 %v851, 0.5
      %v948 = vmul.f32 %v852, 0.5
      %v949 = vmul.f32 %v853, 0.5
      %v950 = vmul.f32 %v854, 0.5
      %v951 = vmul.f32 %v855, 0.5
      %v952 = vmul.f32 %v856, 0.5
      %v953 = vmul.f32 %v857, 0.5
      %v954 = vmul.f32 %v858, 0.5
      %v955 = vmul.f32 %v859, 0.5
      %v956 = vmul.f32 %v860, 0.5
      %v957 = vmul.f32 %v861, 0.5
      %v958 = vmul.f32 %v862, 0.5
      %v959 = vmul.f32 %v863, 0.5
      %v960 = vmul.f32 %v864, 0.5
      %v961 = vmul.f32 %v865, 0.5
      %v962 = vmul.f32 %v866, 0.5
      %v963 = vmul.f32 %v867, 0.5
      %v964 = vmul.f32 %v868, 0.5
      %v965 = vmul.f32 %v869, 0.5
      %v966 = vmul.f32 %v870, 0.5
      %v967 = vmul.f32 %v871, 0.5
      %v968 = vmul.f32 %v872, 0.5
      %v969 = vmul.f32 %v873, 0.5
      %v970 = vmul.f32 %v874, 0.5
      %v971 = vmul.f32 %v875, 0.5
      %v972 = vmul.f32 %v876, 0.5
      %v973 = vmul.f32 %v877, 0.5
      %v974 = vadd.f32 %v878, 0.5
      %v975 = vadd.f32 %v879, 0.5
      %v976 = vadd.f32 %v880, 0.5
      %v977 = vadd.f32 %v881, 0.5
      %v978 = vadd.f32 %v882, 0.5
      %v979 = vadd.f32 %v883, 0.5
      %v980 = vadd.f32 %v884, 0.5
      %v981 = vadd.f32 %v885, 0.5
      %v982 = vadd.f32 %v886, 0.5
      %v983 = vadd.f32 %v887, 0.5
      %v984 = vadd.f32 %v888, 0.5
      %v985 = vadd.f32 %v889, 0.5
      %v986 = vadd.f32 %v890, 0.5
      %v987 = vadd.f32 %v891, 0.5
      %v988 = vadd.f32 %v892, 0.5
      %v989 = vadd.f32 %v893, 0.5
      %v990 = vadd.f32 %v894, 0.5
      %v991 = vadd.f32 %v895, 0.5
      %v992 = vadd.f32 %v896, 0.5
      %v993 = vadd.f32 %v897, 0.5
      %v994 = vadd.f32 %v898, 0.5
      %v995 = vadd.f32 %v899, 0.5
      %v996 = vadd.f32 %v900, 0.5
      %v997 = vadd.f32 %v901, 0.5
      %v998 = vadd.f32 %v902, 0.5
      %v999 = vadd.f32 %v903, 0.5
      %v1000 = vadd.f32 %v904, 0.5
      %v1001 = vadd.f32 %v905, 0.5
      %v1002 = vadd.f32 %v906, 0.5
      %v1003 = vadd.f32 %v907, 0.5
      %v1004 = vadd.f32 %v908, 0.5
      %v1005 = vadd.f32 %v909, 0.5
      %v1006 = vadd.f32 %v910, 0.5
      %v1007 = vadd.f32 %v911, 0.5
      %v1008 = vadd.f32 %v912, 0.5
      %v1009 = vadd.f32 %v913, 0.5
      %v1010 = vadd.f32 %v914, 0.5
      %v1011 = vadd.f32 %v915, 0.5
      %v1012 = vadd.f32 %v916, 0.5
      %v1013 = vadd.f32 %v917, 0.5
      %v1014 = vadd.f32 %v918, 0.5
      %v1015 = vadd.f32 %v919, 0.5
      %v1016 = vadd.f32 %v920, 0.5
      %v1017 = vadd.f32 %v921, 0.5
      %v1018 = vadd.f32 %v922, 0.5
      %v1019 = vadd.f32 %v923, 0.5
      %v1020 = vadd.f32 %v924, 0.5
      %v1021 = vadd.f32 %v925, 0.5
      %v1022 = vadd.f32 %v926, 0.5
      %v1023 = vadd.f32 %v927, 0.5
      %v1024 = vadd.f32 %v928, 0.5
      %v1025 = vadd.f32 %v929, 0.5
      %v1026 = vadd.f32 %v930, 0.5
      %v1027 = vadd.f32 %v931, 0.5
      %v1028 = vadd.f32 %v932, 0.5
      %v1029 = vadd.f32 %v933, 0.5
      %v1030 = vadd.f32 %v934, 0.5
      %v1031 = vadd.f32 %v935, 0.5
      %v1032 = vadd.f32 %v936, 0.5
      %v1033 = vadd.f32 %v937, 0.5
      %v1034 = vadd.f32 %v938, 0.5
      %v1035 = vadd.f32 %v939, 0.5
      %v1036 = vadd.f32 %v940, 0.5
      %v1037 = vadd.f32 %v941, 0.5
      %v1038 = vadd.f32 %v942, 0.5
      %v1039 = vadd.f32 %v943, 0.5
      %v1040 = vadd.f32 %v944, 0.5
      %v1041 = vadd.f32 %v945, 0.5
      %v1042 = vadd.f32 %v946, 0.5
      %v1043 = vadd.f32 %v947, 0.5
      %v1044 = vadd.f32 %v948, 0.5
      %v1045 = vadd.f32 %v949, 0.5
      %v1046 = vadd.f32 %v950, 0.5
      %v1047 = vadd.f32 %v951, 0.5
      %v1048 = vadd.f32 %v952, 0.5
      %v1049 = vadd.f32 %v953, 0.5
      %v1050 = vadd.f32 %v954, 0.5
      %v1051 = vadd.f32 %v955, 0.5
      %v1052 = vadd.f32 %v956, 0.5
      %v1053 = vadd.f32 %v957, 0.5
      %v1054 = vadd.f32 %v958, 0.5
      %v1055 = vadd.f32 %v959, 0.5
      %v1056 = vadd.f32 %v960, 0.5
      %v1057 = vadd.f32 %v961, 0.5
      %v1058 = vadd.f32 %v962, 0.5
      %v1059 = vadd.f32 %v963, 0.5
      %v1060 = vadd.f32 %v964, 0.5
      %v1061 = vadd.f32 %v965, 0.5
      %v1062 = vadd.f32 %v966, 0.5
      %v1063 = vadd.f32 %v967, 0.5
      %v1064 = vadd.f32 %v968, 0.5
      %v1065 = vadd.f32 %v969, 0.5
      %v1066 = vadd.f32 %v970, 0.5
      %v1067 = vadd.f32 %v971, 0.5
      %v1068 = vadd.f32 %v972, 0.5
      %v1069 = vadd.f32 %v973, 0.5
      %v1070 = vld [vmem:[%s247] sm:$0xff]
      %v1071 = vld [vmem:[%s247 + $0x8] sm:$0xff]
      %v1072 = vld [vmem:[%s247 + $0x10] sm:$0xff]
      %v1073 = vld [vmem:[%s247 + $0x18] sm:$0xff]
      %v1074 = vld [vmem:[%s247 + $0x20] sm:$0xff]
      %v1075 = vld [vmem:[%s247 + $0x28] sm:$0xff]
      %v1076 = vld [vmem:[%s247 + $0x30] sm:$0xff]
      %v1077 = vld [vmem:[%s247 + $0x38] sm:$0xff]
      %v1078 = vld [vmem:[%s247 + $0x40] sm:$0xff]
      %v1079 = vld [vmem:[%s247 + $0x48] sm:$0xff]
      %v1080 = vld [vmem:[%s247 + $0x50] sm:$0xff]
      %v1081 = vld [vmem:[%s247 + $0x58] sm:$0xff]
      %v1082 = vld [vmem:[%s247 + $0x60] sm:$0xff]
      %v1083 = vld [vmem:[%s247 + $0x68] sm:$0xff]
      %v1084 = vld [vmem:[%s247 + $0x70] sm:$0xff]
      %v1085 = vld [vmem:[%s247 + $0x78] sm:$0xff]
      %v1086 = vld [vmem:[%s247 + $0x80] sm:$0xff]
      %v1087 = vld [vmem:[%s247 + $0x88] sm:$0xff]
      %v1088 = vld [vmem:[%s247 + $0x90] sm:$0xff]
      %v1089 = vld [vmem:[%s247 + $0x98] sm:$0xff]
      %v1090 = vld [vmem:[%s247 + $0xa0] sm:$0xff]
      %v1091 = vld [vmem:[%s247 + $0xa8] sm:$0xff]
      %v1092 = vld [vmem:[%s247 + $0xb0] sm:$0xff]
      %v1093 = vld [vmem:[%s247 + $0xb8] sm:$0xff]
      %v1094 = vld [vmem:[%s247 + $0xc0] sm:$0xff]
      %v1095 = vld [vmem:[%s247 + $0xc8] sm:$0xff]
      %v1096 = vld [vmem:[%s247 + $0xd0] sm:$0xff]
      %v1097 = vld [vmem:[%s247 + $0xd8] sm:$0xff]
      %v1098 = vld [vmem:[%s247 + $0xe0] sm:$0xff]
      %v1099 = vld [vmem:[%s247 + $0xe8] sm:$0xff]
      %v1100 = vld [vmem:[%s247 + $0xf0] sm:$0xff]
      %v1101 = vld [vmem:[%s247 + $0xf8] sm:$0xff]
      %v1102 = vld [vmem:[%s2] sm:$0xff]
      %v1103 = vld [vmem:[%s2 + $0x8] sm:$0xff]
      %v1104 = vld [vmem:[%s2 + $0x10] sm:$0xff]
      %v1106 = vsel %vm360, %v1070, 0
      %v1109 = vsel %vm360, %v1071, 0
      %v1112 = vsel %vm360, %v1072, 0
      %v1115 = vsel %vm360, %v1073, 0
      %v1118 = vsel %vm360, %v1074, 0
      %v1121 = vsel %vm360, %v1075, 0
      %v1124 = vsel %vm360, %v1076, 0
      %v1127 = vsel %vm360, %v1077, 0
      %v1130 = vsel %vm360, %v1078, 0
      %v1133 = vsel %vm360, %v1079, 0
      %v1136 = vsel %vm360, %v1080, 0
      %v1139 = vsel %vm360, %v1081, 0
      %v1142 = vsel %vm360, %v1082, 0
      %v1145 = vsel %vm360, %v1083, 0
      %v1148 = vsel %vm360, %v1084, 0
      %v1151 = vsel %vm360, %v1085, 0
      %v1154 = vsel %vm360, %v1086, 0
      %v1157 = vsel %vm360, %v1087, 0
      %v1160 = vsel %vm360, %v1088, 0
      %v1163 = vsel %vm360, %v1089, 0
      %v1166 = vsel %vm360, %v1090, 0
      %v1169 = vsel %vm360, %v1091, 0
      %v1172 = vsel %vm360, %v1092, 0
      %v1175 = vsel %vm360, %v1093, 0
      %v1178 = vsel %vm360, %v1094, 0
      %v1181 = vsel %vm360, %v1095, 0
      %v1184 = vsel %vm360, %v1096, 0
      %v1187 = vsel %vm360, %v1097, 0
      %v1190 = vsel %vm360, %v1098, 0
      %v1193 = vsel %vm360, %v1099, 0
      %v1196 = vsel %vm360, %v1100, 0
      %v1199 = vsel %vm360, %v1101, 0
      %1201 = vmatpush.msra.mxu0 0.0
      %1202 = vmatpush.msra.mxu0 0.0
      %1203 = vmatpush.msra.mxu0 0.0
      %1204 = vmatpush.msra.mxu0 0.0
      %1205 = vmatpush.msra.mxu0 0.0
      %1206 = vmatpush.msra.mxu0 0.0
      %1207 = vmatpush.msra.mxu0 0.0
      %1208 = vmatpush.msra.mxu0 0.0
      %1209 = vmatpush.msra.mxu0 0.0
      %1210 = vmatpush.msra.mxu0 0.0
      %1211 = vmatpush.msra.mxu0 0.0
      %1212 = vmatpush.msra.mxu0 0.0
      %1213 = vmatpush.msra.mxu0 0.0
      %1214 = vmatpush.msra.mxu0 0.0
      %1215 = vmatpush.msra.mxu0 0.0
      %1216 = vmatpush.msra.mxu0 %v1102
      %1217 = vmatmul.f32.gmra.mxu0 %v1106
      %v1218 = vpop.f32.mrf.mxu0
      %v1219 = vadd.f32 0.0, %v1218
      %1220 = vmatmul.f32.gmra.mxu0 %v1109
      %v1221 = vpop.f32.mrf.mxu0
      %v1222 = vadd.f32 0.0, %v1221
      %1223 = vmatmul.f32.gmra.mxu0 %v1112
      %v1224 = vpop.f32.mrf.mxu0
      %v1225 = vadd.f32 0.0, %v1224
      %1226 = vmatmul.f32.gmra.mxu0 %v1115
      %v1227 = vpop.f32.mrf.mxu0
      %v1228 = vadd.f32 0.0, %v1227
      %1229 = vmatmul.f32.gmra.mxu0 %v1118
      %v1230 = vpop.f32.mrf.mxu0
      %v1231 = vadd.f32 0.0, %v1230
      %1232 = vmatmul.f32.gmra.mxu0 %v1121
      %v1233 = vpop.f32.mrf.mxu0
      %v1234 = vadd.f32 0.0, %v1233
      %1235 = vmatmul.f32.gmra.mxu0 %v1124
      %v1236 = vpop.f32.mrf.mxu0
      %v1237 = vadd.f32 0.0, %v1236
      %1238 = vmatmul.f32.gmra.mxu0 %v1127
      %v1239 = vpop.f32.mrf.mxu0
      %v1240 = vadd.f32 0.0, %v1239
      %1241 = vmatmul.f32.gmra.mxu0 %v1130
      %v1242 = vpop.f32.mrf.mxu0
      %v1243 = vadd.f32 0.0, %v1242
      %1244 = vmatmul.f32.gmra.mxu0 %v1133
      %v1245 = vpop.f32.mrf.mxu0
      %v1246 = vadd.f32 0.0, %v1245
      %1247 = vmatmul.f32.gmra.mxu0 %v1136
      %v1248 = vpop.f32.mrf.mxu0
      %v1249 = vadd.f32 0.0, %v1248
      %1250 = vmatmul.f32.gmra.mxu0 %v1139
      %v1251 = vpop.f32.mrf.mxu0
      %v1252 = vadd.f32 0.0, %v1251
      %1253 = vmatmul.f32.gmra.mxu0 %v1142
      %v1254 = vpop.f32.mrf.mxu0
      %v1255 = vadd.f32 0.0, %v1254
      %1256 = vmatmul.f32.gmra.mxu0 %v1145
      %v1257 = vpop.f32.mrf.mxu0
      %v1258 = vadd.f32 0.0, %v1257
      %1259 = vmatmul.f32.gmra.mxu0 %v1148
      %v1260 = vpop.f32.mrf.mxu0
      %v1261 = vadd.f32 0.0, %v1260
      %1262 = vmatmul.f32.gmra.mxu0 %v1151
      %v1263 = vpop.f32.mrf.mxu0
      %v1264 = vadd.f32 0.0, %v1263
      %1265 = vmatmul.f32.gmra.mxu0 %v1154
      %v1266 = vpop.f32.mrf.mxu0
      %v1267 = vadd.f32 0.0, %v1266
      %1268 = vmatmul.f32.gmra.mxu0 %v1157
      %v1269 = vpop.f32.mrf.mxu0
      %v1270 = vadd.f32 0.0, %v1269
      %1271 = vmatmul.f32.gmra.mxu0 %v1160
      %v1272 = vpop.f32.mrf.mxu0
      %v1273 = vadd.f32 0.0, %v1272
      %1274 = vmatmul.f32.gmra.mxu0 %v1163
      %v1275 = vpop.f32.mrf.mxu0
      %v1276 = vadd.f32 0.0, %v1275
      %1277 = vmatmul.f32.gmra.mxu0 %v1166
      %v1278 = vpop.f32.mrf.mxu0
      %v1279 = vadd.f32 0.0, %v1278
      %1280 = vmatmul.f32.gmra.mxu0 %v1169
      %v1281 = vpop.f32.mrf.mxu0
      %v1282 = vadd.f32 0.0, %v1281
      %1283 = vmatmul.f32.gmra.mxu0 %v1172
      %v1284 = vpop.f32.mrf.mxu0
      %v1285 = vadd.f32 0.0, %v1284
      %1286 = vmatmul.f32.gmra.mxu0 %v1175
      %v1287 = vpop.f32.mrf.mxu0
      %v1288 = vadd.f32 0.0, %v1287
      %1289 = vmatmul.f32.gmra.mxu0 %v1178
      %v1290 = vpop.f32.mrf.mxu0
      %v1291 = vadd.f32 0.0, %v1290
      %1292 = vmatmul.f32.gmra.mxu0 %v1181
      %v1293 = vpop.f32.mrf.mxu0
      %v1294 = vadd.f32 0.0, %v1293
      %1295 = vmatmul.f32.gmra.mxu0 %v1184
      %v1296 = vpop.f32.mrf.mxu0
      %v1297 = vadd.f32 0.0, %v1296
      %1298 = vmatmul.f32.gmra.mxu0 %v1187
      %v1299 = vpop.f32.mrf.mxu0
      %v1300 = vadd.f32 0.0, %v1299
      %1301 = vmatmul.f32.gmra.mxu0 %v1190
      %v1302 = vpop.f32.mrf.mxu0
      %v1303 = vadd.f32 0.0, %v1302
      %1304 = vmatmul.f32.gmra.mxu0 %v1193
      %v1305 = vpop.f32.mrf.mxu0
      %v1306 = vadd.f32 0.0, %v1305
      %1307 = vmatmul.f32.gmra.mxu0 %v1196
      %v1308 = vpop.f32.mrf.mxu0
      %v1309 = vadd.f32 0.0, %v1308
      %1310 = vmatmul.f32.gmra.mxu0 %v1199
      %v1311 = vpop.f32.mrf.mxu0
      %v1312 = vadd.f32 0.0, %v1311
      %1313 = vdwg.mxu0
      %1314 = vmatpush.msra.mxu0 0.0
      %1315 = vmatpush.msra.mxu0 0.0
      %1316 = vmatpush.msra.mxu0 0.0
      %1317 = vmatpush.msra.mxu0 0.0
      %1318 = vmatpush.msra.mxu0 0.0
      %1319 = vmatpush.msra.mxu0 0.0
      %1320 = vmatpush.msra.mxu0 0.0
      %1321 = vmatpush.msra.mxu0 0.0
      %1322 = vmatpush.msra.mxu0 0.0
      %1323 = vmatpush.msra.mxu0 0.0
      %1324 = vmatpush.msra.mxu0 0.0
      %1325 = vmatpush.msra.mxu0 0.0
      %1326 = vmatpush.msra.mxu0 0.0
      %1327 = vmatpush.msra.mxu0 0.0
      %1328 = vmatpush.msra.mxu0 0.0
      %1329 = vmatpush.msra.mxu0 %v1103
      %1330 = vmatmul.f32.gmra.mxu0 %v1106
      %v1331 = vpop.f32.mrf.mxu0
      %v1332 = vadd.f32 0.0, %v1331
      %1333 = vmatmul.f32.gmra.mxu0 %v1109
      %v1334 = vpop.f32.mrf.mxu0
      %v1335 = vadd.f32 0.0, %v1334
      %1336 = vmatmul.f32.gmra.mxu0 %v1112
      %v1337 = vpop.f32.mrf.mxu0
      %v1338 = vadd.f32 0.0, %v1337
      %1339 = vmatmul.f32.gmra.mxu0 %v1115
      %v1340 = vpop.f32.mrf.mxu0
      %v1341 = vadd.f32 0.0, %v1340
      %1342 = vmatmul.f32.gmra.mxu0 %v1118
      %v1343 = vpop.f32.mrf.mxu0
      %v1344 = vadd.f32 0.0, %v1343
      %1345 = vmatmul.f32.gmra.mxu0 %v1121
      %v1346 = vpop.f32.mrf.mxu0
      %v1347 = vadd.f32 0.0, %v1346
      %1348 = vmatmul.f32.gmra.mxu0 %v1124
      %v1349 = vpop.f32.mrf.mxu0
      %v1350 = vadd.f32 0.0, %v1349
      %1351 = vmatmul.f32.gmra.mxu0 %v1127
      %v1352 = vpop.f32.mrf.mxu0
      %v1353 = vadd.f32 0.0, %v1352
      %1354 = vmatmul.f32.gmra.mxu0 %v1130
      %v1355 = vpop.f32.mrf.mxu0
      %v1356 = vadd.f32 0.0, %v1355
      %1357 = vmatmul.f32.gmra.mxu0 %v1133
      %v1358 = vpop.f32.mrf.mxu0
      %v1359 = vadd.f32 0.0, %v1358
      %1360 = vmatmul.f32.gmra.mxu0 %v1136
      %v1361 = vpop.f32.mrf.mxu0
      %v1362 = vadd.f32 0.0, %v1361
      %1363 = vmatmul.f32.gmra.mxu0 %v1139
      %v1364 = vpop.f32.mrf.mxu0
      %v1365 = vadd.f32 0.0, %v1364
      %1366 = vmatmul.f32.gmra.mxu0 %v1142
      %v1367 = vpop.f32.mrf.mxu0
      %v1368 = vadd.f32 0.0, %v1367
      %1369 = vmatmul.f32.gmra.mxu0 %v1145
      %v1370 = vpop.f32.mrf.mxu0
      %v1371 = vadd.f32 0.0, %v1370
      %1372 = vmatmul.f32.gmra.mxu0 %v1148
      %v1373 = vpop.f32.mrf.mxu0
      %v1374 = vadd.f32 0.0, %v1373
      %1375 = vmatmul.f32.gmra.mxu0 %v1151
      %v1376 = vpop.f32.mrf.mxu0
      %v1377 = vadd.f32 0.0, %v1376
      %1378 = vmatmul.f32.gmra.mxu0 %v1154
      %v1379 = vpop.f32.mrf.mxu0
      %v1380 = vadd.f32 0.0, %v1379
      %1381 = vmatmul.f32.gmra.mxu0 %v1157
      %v1382 = vpop.f32.mrf.mxu0
      %v1383 = vadd.f32 0.0, %v1382
      %1384 = vmatmul.f32.gmra.mxu0 %v1160
      %v1385 = vpop.f32.mrf.mxu0
      %v1386 = vadd.f32 0.0, %v1385
      %1387 = vmatmul.f32.gmra.mxu0 %v1163
      %v1388 = vpop.f32.mrf.mxu0
      %v1389 = vadd.f32 0.0, %v1388
      %1390 = vmatmul.f32.gmra.mxu0 %v1166
      %v1391 = vpop.f32.mrf.mxu0
      %v1392 = vadd.f32 0.0, %v1391
      %1393 = vmatmul.f32.gmra.mxu0 %v1169
      %v1394 = vpop.f32.mrf.mxu0
      %v1395 = vadd.f32 0.0, %v1394
      %1396 = vmatmul.f32.gmra.mxu0 %v1172
      %v1397 = vpop.f32.mrf.mxu0
      %v1398 = vadd.f32 0.0, %v1397
      %1399 = vmatmul.f32.gmra.mxu0 %v1175
      %v1400 = vpop.f32.mrf.mxu0
      %v1401 = vadd.f32 0.0, %v1400
      %1402 = vmatmul.f32.gmra.mxu0 %v1178
      %v1403 = vpop.f32.mrf.mxu0
      %v1404 = vadd.f32 0.0, %v1403
      %1405 = vmatmul.f32.gmra.mxu0 %v1181
      %v1406 = vpop.f32.mrf.mxu0
      %v1407 = vadd.f32 0.0, %v1406
      %1408 = vmatmul.f32.gmra.mxu0 %v1184
      %v1409 = vpop.f32.mrf.mxu0
      %v1410 = vadd.f32 0.0, %v1409
      %1411 = vmatmul.f32.gmra.mxu0 %v1187
      %v1412 = vpop.f32.mrf.mxu0
      %v1413 = vadd.f32 0.0, %v1412
      %1414 = vmatmul.f32.gmra.mxu0 %v1190
      %v1415 = vpop.f32.mrf.mxu0
      %v1416 = vadd.f32 0.0, %v1415
      %1417 = vmatmul.f32.gmra.mxu0 %v1193
      %v1418 = vpop.f32.mrf.mxu0
      %v1419 = vadd.f32 0.0, %v1418
      %1420 = vmatmul.f32.gmra.mxu0 %v1196
      %v1421 = vpop.f32.mrf.mxu0
      %v1422 = vadd.f32 0.0, %v1421
      %1423 = vmatmul.f32.gmra.mxu0 %v1199
      %v1424 = vpop.f32.mrf.mxu0
      %v1425 = vadd.f32 0.0, %v1424
      %1426 = vdwg.mxu0
      %1427 = vmatpush.msra.mxu0 0.0
      %1428 = vmatpush.msra.mxu0 0.0
      %1429 = vmatpush.msra.mxu0 0.0
      %1430 = vmatpush.msra.mxu0 0.0
      %1431 = vmatpush.msra.mxu0 0.0
      %1432 = vmatpush.msra.mxu0 0.0
      %1433 = vmatpush.msra.mxu0 0.0
      %1434 = vmatpush.msra.mxu0 0.0
      %1435 = vmatpush.msra.mxu0 0.0
      %1436 = vmatpush.msra.mxu0 0.0
      %1437 = vmatpush.msra.mxu0 0.0
      %1438 = vmatpush.msra.mxu0 0.0
      %1439 = vmatpush.msra.mxu0 0.0
      %1440 = vmatpush.msra.mxu0 0.0
      %1441 = vmatpush.msra.mxu0 0.0
      %1442 = vmatpush.msra.mxu0 %v1104
      %1443 = vmatmul.f32.gmra.mxu0 %v1106
      %v1444 = vpop.f32.mrf.mxu0
      %v1445 = vadd.f32 0.0, %v1444
      %1446 = vmatmul.f32.gmra.mxu0 %v1109
      %v1447 = vpop.f32.mrf.mxu0
      %v1448 = vadd.f32 0.0, %v1447
      %1449 = vmatmul.f32.gmra.mxu0 %v1112
      %v1450 = vpop.f32.mrf.mxu0
      %v1451 = vadd.f32 0.0, %v1450
      %1452 = vmatmul.f32.gmra.mxu0 %v1115
      %v1453 = vpop.f32.mrf.mxu0
      %v1454 = vadd.f32 0.0, %v1453
      %1455 = vmatmul.f32.gmra.mxu0 %v1118
      %v1456 = vpop.f32.mrf.mxu0
      %v1457 = vadd.f32 0.0, %v1456
      %1458 = vmatmul.f32.gmra.mxu0 %v1121
      %v1459 = vpop.f32.mrf.mxu0
      %v1460 = vadd.f32 0.0, %v1459
      %1461 = vmatmul.f32.gmra.mxu0 %v1124
      %v1462 = vpop.f32.mrf.mxu0
      %v1463 = vadd.f32 0.0, %v1462
      %1464 = vmatmul.f32.gmra.mxu0 %v1127
      %v1465 = vpop.f32.mrf.mxu0
      %v1466 = vadd.f32 0.0, %v1465
      %1467 = vmatmul.f32.gmra.mxu0 %v1130
      %v1468 = vpop.f32.mrf.mxu0
      %v1469 = vadd.f32 0.0, %v1468
      %1470 = vmatmul.f32.gmra.mxu0 %v1133
      %v1471 = vpop.f32.mrf.mxu0
      %v1472 = vadd.f32 0.0, %v1471
      %1473 = vmatmul.f32.gmra.mxu0 %v1136
      %v1474 = vpop.f32.mrf.mxu0
      %v1475 = vadd.f32 0.0, %v1474
      %1476 = vmatmul.f32.gmra.mxu0 %v1139
      %v1477 = vpop.f32.mrf.mxu0
      %v1478 = vadd.f32 0.0, %v1477
      %1479 = vmatmul.f32.gmra.mxu0 %v1142
      %v1480 = vpop.f32.mrf.mxu0
      %v1481 = vadd.f32 0.0, %v1480
      %1482 = vmatmul.f32.gmra.mxu0 %v1145
      %v1483 = vpop.f32.mrf.mxu0
      %v1484 = vadd.f32 0.0, %v1483
      %1485 = vmatmul.f32.gmra.mxu0 %v1148
      %v1486 = vpop.f32.mrf.mxu0
      %v1487 = vadd.f32 0.0, %v1486
      %1488 = vmatmul.f32.gmra.mxu0 %v1151
      %v1489 = vpop.f32.mrf.mxu0
      %v1490 = vadd.f32 0.0, %v1489
      %1491 = vmatmul.f32.gmra.mxu0 %v1154
      %v1492 = vpop.f32.mrf.mxu0
      %v1493 = vadd.f32 0.0, %v1492
      %1494 = vmatmul.f32.gmra.mxu0 %v1157
      %v1495 = vpop.f32.mrf.mxu0
      %v1496 = vadd.f32 0.0, %v1495
      %1497 = vmatmul.f32.gmra.mxu0 %v1160
      %v1498 = vpop.f32.mrf.mxu0
      %v1499 = vadd.f32 0.0, %v1498
      %1500 = vmatmul.f32.gmra.mxu0 %v1163
      %v1501 = vpop.f32.mrf.mxu0
      %v1502 = vadd.f32 0.0, %v1501
      %1503 = vmatmul.f32.gmra.mxu0 %v1166
      %v1504 = vpop.f32.mrf.mxu0
      %v1505 = vadd.f32 0.0, %v1504
      %1506 = vmatmul.f32.gmra.mxu0 %v1169
      %v1507 = vpop.f32.mrf.mxu0
      %v1508 = vadd.f32 0.0, %v1507
      %1509 = vmatmul.f32.gmra.mxu0 %v1172
      %v1510 = vpop.f32.mrf.mxu0
      %v1511 = vadd.f32 0.0, %v1510
      %1512 = vmatmul.f32.gmra.mxu0 %v1175
      %v1513 = vpop.f32.mrf.mxu0
      %v1514 = vadd.f32 0.0, %v1513
      %1515 = vmatmul.f32.gmra.mxu0 %v1178
      %v1516 = vpop.f32.mrf.mxu0
      %v1517 = vadd.f32 0.0, %v1516
      %1518 = vmatmul.f32.gmra.mxu0 %v1181
      %v1519 = vpop.f32.mrf.mxu0
      %v1520 = vadd.f32 0.0, %v1519
      %1521 = vmatmul.f32.gmra.mxu0 %v1184
      %v1522 = vpop.f32.mrf.mxu0
      %v1523 = vadd.f32 0.0, %v1522
      %1524 = vmatmul.f32.gmra.mxu0 %v1187
      %v1525 = vpop.f32.mrf.mxu0
      %v1526 = vadd.f32 0.0, %v1525
      %1527 = vmatmul.f32.gmra.mxu0 %v1190
      %v1528 = vpop.f32.mrf.mxu0
      %v1529 = vadd.f32 0.0, %v1528
      %1530 = vmatmul.f32.gmra.mxu0 %v1193
      %v1531 = vpop.f32.mrf.mxu0
      %v1532 = vadd.f32 0.0, %v1531
      %1533 = vmatmul.f32.gmra.mxu0 %v1196
      %v1534 = vpop.f32.mrf.mxu0
      %v1535 = vadd.f32 0.0, %v1534
      %1536 = vmatmul.f32.gmra.mxu0 %v1199
      %v1537 = vpop.f32.mrf.mxu0
      %v1538 = vadd.f32 0.0, %v1537
      %1539 = vdwg.mxu0
      %s1540 = scalar_lea.vmem %s2, 1
      %v1541 = vld [vmem:[%s1540] ss:$8 sm:$0x7]
      %s1542 = scalar_lea.vmem %s2, 2
      %v1543 = vld [vmem:[%s1542] ss:$8 sm:$0x7]
      %v1545 = vperm.slane %v1543, 0
      %v1546 = vperm.slane %v1543, 1
      %v1547 = vperm.slane %v1543, 2
      %v1551 = vmul.f32 %v1545, %v974
      %v1552 = vmul.f32 %v1546, %v975
      %v1553 = vmul.f32 %v1547, %v976
      %v1554 = vmul.f32 %v1545, %v977
      %v1555 = vmul.f32 %v1546, %v978
      %v1556 = vmul.f32 %v1547, %v979
      %v1557 = vmul.f32 %v1545, %v980
      %v1558 = vmul.f32 %v1546, %v981
      %v1559 = vmul.f32 %v1547, %v982
      %v1560 = vmul.f32 %v1545, %v983
      %v1561 = vmul.f32 %v1546, %v984
      %v1562 = vmul.f32 %v1547, %v985
      %v1563 = vmul.f32 %v1545, %v986
      %v1564 = vmul.f32 %v1546, %v987
      %v1565 = vmul.f32 %v1547, %v988
      %v1566 = vmul.f32 %v1545, %v989
      %v1567 = vmul.f32 %v1546, %v990
      %v1568 = vmul.f32 %v1547, %v991
      %v1569 = vmul.f32 %v1545, %v992
      %v1570 = vmul.f32 %v1546, %v993
      %v1571 = vmul.f32 %v1547, %v994
      %v1572 = vmul.f32 %v1545, %v995
      %v1573 = vmul.f32 %v1546, %v996
      %v1574 = vmul.f32 %v1547, %v997
      %v1575 = vmul.f32 %v1545, %v998
      %v1576 = vmul.f32 %v1546, %v999
      %v1577 = vmul.f32 %v1547, %v1000
      %v1578 = vmul.f32 %v1545, %v1001
      %v1579 = vmul.f32 %v1546, %v1002
      %v1580 = vmul.f32 %v1547, %v1003
      %v1581 = vmul.f32 %v1545, %v1004
      %v1582 = vmul.f32 %v1546, %v1005
      %v1583 = vmul.f32 %v1547, %v1006
      %v1584 = vmul.f32 %v1545, %v1007
      %v1585 = vmul.f32 %v1546, %v1008
      %v1586 = vmul.f32 %v1547, %v1009
      %v1587 = vmul.f32 %v1545, %v1010
      %v1588 = vmul.f32 %v1546, %v1011
      %v1589 = vmul.f32 %v1547, %v1012
      %v1590 = vmul.f32 %v1545, %v1013
      %v1591 = vmul.f32 %v1546, %v1014
      %v1592 = vmul.f32 %v1547, %v1015
      %v1593 = vmul.f32 %v1545, %v1016
      %v1594 = vmul.f32 %v1546, %v1017
      %v1595 = vmul.f32 %v1547, %v1018
      %v1596 = vmul.f32 %v1545, %v1019
      %v1597 = vmul.f32 %v1546, %v1020
      %v1598 = vmul.f32 %v1547, %v1021
      %v1599 = vmul.f32 %v1545, %v1022
      %v1600 = vmul.f32 %v1546, %v1023
      %v1601 = vmul.f32 %v1547, %v1024
      %v1602 = vmul.f32 %v1545, %v1025
      %v1603 = vmul.f32 %v1546, %v1026
      %v1604 = vmul.f32 %v1547, %v1027
      %v1605 = vmul.f32 %v1545, %v1028
      %v1606 = vmul.f32 %v1546, %v1029
      %v1607 = vmul.f32 %v1547, %v1030
      %v1608 = vmul.f32 %v1545, %v1031
      %v1609 = vmul.f32 %v1546, %v1032
      %v1610 = vmul.f32 %v1547, %v1033
      %v1611 = vmul.f32 %v1545, %v1034
      %v1612 = vmul.f32 %v1546, %v1035
      %v1613 = vmul.f32 %v1547, %v1036
      %v1614 = vmul.f32 %v1545, %v1037
      %v1615 = vmul.f32 %v1546, %v1038
      %v1616 = vmul.f32 %v1547, %v1039
      %v1617 = vmul.f32 %v1545, %v1040
      %v1618 = vmul.f32 %v1546, %v1041
      %v1619 = vmul.f32 %v1547, %v1042
      %v1620 = vmul.f32 %v1545, %v1043
      %v1621 = vmul.f32 %v1546, %v1044
      %v1622 = vmul.f32 %v1547, %v1045
      %v1623 = vmul.f32 %v1545, %v1046
      %v1624 = vmul.f32 %v1546, %v1047
      %v1625 = vmul.f32 %v1547, %v1048
      %v1626 = vmul.f32 %v1545, %v1049
      %v1627 = vmul.f32 %v1546, %v1050
      %v1628 = vmul.f32 %v1547, %v1051
      %v1629 = vmul.f32 %v1545, %v1052
      %v1630 = vmul.f32 %v1546, %v1053
      %v1631 = vmul.f32 %v1547, %v1054
      %v1632 = vmul.f32 %v1545, %v1055
      %v1633 = vmul.f32 %v1546, %v1056
      %v1634 = vmul.f32 %v1547, %v1057
      %v1635 = vmul.f32 %v1545, %v1058
      %v1636 = vmul.f32 %v1546, %v1059
      %v1637 = vmul.f32 %v1547, %v1060
      %v1638 = vmul.f32 %v1545, %v1061
      %v1639 = vmul.f32 %v1546, %v1062
      %v1640 = vmul.f32 %v1547, %v1063
      %v1641 = vmul.f32 %v1545, %v1064
      %v1642 = vmul.f32 %v1546, %v1065
      %v1643 = vmul.f32 %v1547, %v1066
      %v1644 = vmul.f32 %v1545, %v1067
      %v1645 = vmul.f32 %v1546, %v1068
      %v1646 = vmul.f32 %v1547, %v1069
      %v1648 = vperm.slane %v1541, 0
      %v1649 = vperm.slane %v1541, 1
      %v1650 = vperm.slane %v1541, 2
      %v1654 = vadd.f32 %v1648, %v1551
      %v1655 = vadd.f32 %v1649, %v1552
      %v1656 = vadd.f32 %v1650, %v1553
      %v1657 = vadd.f32 %v1648, %v1554
      %v1658 = vadd.f32 %v1649, %v1555
      %v1659 = vadd.f32 %v1650, %v1556
      %v1660 = vadd.f32 %v1648, %v1557
      %v1661 = vadd.f32 %v1649, %v1558
      %v1662 = vadd.f32 %v1650, %v1559
      %v1663 = vadd.f32 %v1648, %v1560
      %v1664 = vadd.f32 %v1649, %v1561
      %v1665 = vadd.f32 %v1650, %v1562
      %v1666 = vadd.f32 %v1648, %v1563
      %v1667 = vadd.f32 %v1649, %v1564
      %v1668 = vadd.f32 %v1650, %v1565
      %v1669 = vadd.f32 %v1648, %v1566
      %v1670 = vadd.f32 %v1649, %v1567
      %v1671 = vadd.f32 %v1650, %v1568
      %v1672 = vadd.f32 %v1648, %v1569
      %v1673 = vadd.f32 %v1649, %v1570
      %v1674 = vadd.f32 %v1650, %v1571
      %v1675 = vadd.f32 %v1648, %v1572
      %v1676 = vadd.f32 %v1649, %v1573
      %v1677 = vadd.f32 %v1650, %v1574
      %v1678 = vadd.f32 %v1648, %v1575
      %v1679 = vadd.f32 %v1649, %v1576
      %v1680 = vadd.f32 %v1650, %v1577
      %v1681 = vadd.f32 %v1648, %v1578
      %v1682 = vadd.f32 %v1649, %v1579
      %v1683 = vadd.f32 %v1650, %v1580
      %v1684 = vadd.f32 %v1648, %v1581
      %v1685 = vadd.f32 %v1649, %v1582
      %v1686 = vadd.f32 %v1650, %v1583
      %v1687 = vadd.f32 %v1648, %v1584
      %v1688 = vadd.f32 %v1649, %v1585
      %v1689 = vadd.f32 %v1650, %v1586
      %v1690 = vadd.f32 %v1648, %v1587
      %v1691 = vadd.f32 %v1649, %v1588
      %v1692 = vadd.f32 %v1650, %v1589
      %v1693 = vadd.f32 %v1648, %v1590
      %v1694 = vadd.f32 %v1649, %v1591
      %v1695 = vadd.f32 %v1650, %v1592
      %v1696 = vadd.f32 %v1648, %v1593
      %v1697 = vadd.f32 %v1649, %v1594
      %v1698 = vadd.f32 %v1650, %v1595
      %v1699 = vadd.f32 %v1648, %v1596
      %v1700 = vadd.f32 %v1649, %v1597
      %v1701 = vadd.f32 %v1650, %v1598
      %v1702 = vadd.f32 %v1648, %v1599
      %v1703 = vadd.f32 %v1649, %v1600
      %v1704 = vadd.f32 %v1650, %v1601
      %v1705 = vadd.f32 %v1648, %v1602
      %v1706 = vadd.f32 %v1649, %v1603
      %v1707 = vadd.f32 %v1650, %v1604
      %v1708 = vadd.f32 %v1648, %v1605
      %v1709 = vadd.f32 %v1649, %v1606
      %v1710 = vadd.f32 %v1650, %v1607
      %v1711 = vadd.f32 %v1648, %v1608
      %v1712 = vadd.f32 %v1649, %v1609
      %v1713 = vadd.f32 %v1650, %v1610
      %v1714 = vadd.f32 %v1648, %v1611
      %v1715 = vadd.f32 %v1649, %v1612
      %v1716 = vadd.f32 %v1650, %v1613
      %v1717 = vadd.f32 %v1648, %v1614
      %v1718 = vadd.f32 %v1649, %v1615
      %v1719 = vadd.f32 %v1650, %v1616
      %v1720 = vadd.f32 %v1648, %v1617
      %v1721 = vadd.f32 %v1649, %v1618
      %v1722 = vadd.f32 %v1650, %v1619
      %v1723 = vadd.f32 %v1648, %v1620
      %v1724 = vadd.f32 %v1649, %v1621
      %v1725 = vadd.f32 %v1650, %v1622
      %v1726 = vadd.f32 %v1648, %v1623
      %v1727 = vadd.f32 %v1649, %v1624
      %v1728 = vadd.f32 %v1650, %v1625
      %v1729 = vadd.f32 %v1648, %v1626
      %v1730 = vadd.f32 %v1649, %v1627
      %v1731 = vadd.f32 %v1650, %v1628
      %v1732 = vadd.f32 %v1648, %v1629
      %v1733 = vadd.f32 %v1649, %v1630
      %v1734 = vadd.f32 %v1650, %v1631
      %v1735 = vadd.f32 %v1648, %v1632
      %v1736 = vadd.f32 %v1649, %v1633
      %v1737 = vadd.f32 %v1650, %v1634
      %v1738 = vadd.f32 %v1648, %v1635
      %v1739 = vadd.f32 %v1649, %v1636
      %v1740 = vadd.f32 %v1650, %v1637
      %v1741 = vadd.f32 %v1648, %v1638
      %v1742 = vadd.f32 %v1649, %v1639
      %v1743 = vadd.f32 %v1650, %v1640
      %v1744 = vadd.f32 %v1648, %v1641
      %v1745 = vadd.f32 %v1649, %v1642
      %v1746 = vadd.f32 %v1650, %v1643
      %v1747 = vadd.f32 %v1648, %v1644
      %v1748 = vadd.f32 %v1649, %v1645
      %v1749 = vadd.f32 %v1650, %v1646
      %v1750 = vmul.f32 %v974, %v1654
      %v1751 = vmul.f32 %v975, %v1655
      %v1752 = vmul.f32 %v976, %v1656
      %v1753 = vmul.f32 %v977, %v1657
      %v1754 = vmul.f32 %v978, %v1658
      %v1755 = vmul.f32 %v979, %v1659
      %v1756 = vmul.f32 %v980, %v1660
      %v1757 = vmul.f32 %v981, %v1661
      %v1758 = vmul.f32 %v982, %v1662
      %v1759 = vmul.f32 %v983, %v1663
      %v1760 = vmul.f32 %v984, %v1664
      %v1761 = vmul.f32 %v985, %v1665
      %v1762 = vmul.f32 %v986, %v1666
      %v1763 = vmul.f32 %v987, %v1667
      %v1764 = vmul.f32 %v988, %v1668
      %v1765 = vmul.f32 %v989, %v1669
      %v1766 = vmul.f32 %v990, %v1670
      %v1767 = vmul.f32 %v991, %v1671
      %v1768 = vmul.f32 %v992, %v1672
      %v1769 = vmul.f32 %v993, %v1673
      %v1770 = vmul.f32 %v994, %v1674
      %v1771 = vmul.f32 %v995, %v1675
      %v1772 = vmul.f32 %v996, %v1676
      %v1773 = vmul.f32 %v997, %v1677
      %v1774 = vmul.f32 %v998, %v1678
      %v1775 = vmul.f32 %v999, %v1679
      %v1776 = vmul.f32 %v1000, %v1680
      %v1777 = vmul.f32 %v1001, %v1681
      %v1778 = vmul.f32 %v1002, %v1682
      %v1779 = vmul.f32 %v1003, %v1683
      %v1780 = vmul.f32 %v1004, %v1684
      %v1781 = vmul.f32 %v1005, %v1685
      %v1782 = vmul.f32 %v1006, %v1686
      %v1783 = vmul.f32 %v1007, %v1687
      %v1784 = vmul.f32 %v1008, %v1688
      %v1785 = vmul.f32 %v1009, %v1689
      %v1786 = vmul.f32 %v1010, %v1690
      %v1787 = vmul.f32 %v1011, %v1691
      %v1788 = vmul.f32 %v1012, %v1692
      %v1789 = vmul.f32 %v1013, %v1693
      %v1790 = vmul.f32 %v1014, %v1694
      %v1791 = vmul.f32 %v1015, %v1695
      %v1792 = vmul.f32 %v1016, %v1696
      %v1793 = vmul.f32 %v1017, %v1697
      %v1794 = vmul.f32 %v1018, %v1698
      %v1795 = vmul.f32 %v1019, %v1699
      %v1796 = vmul.f32 %v1020, %v1700
      %v1797 = vmul.f32 %v1021, %v1701
      %v1798 = vmul.f32 %v1022, %v1702
      %v1799 = vmul.f32 %v1023, %v1703
      %v1800 = vmul.f32 %v1024, %v1704
      %v1801 = vmul.f32 %v1025, %v1705
      %v1802 = vmul.f32 %v1026, %v1706
      %v1803 = vmul.f32 %v1027, %v1707
      %v1804 = vmul.f32 %v1028, %v1708
      %v1805 = vmul.f32 %v1029, %v1709
      %v1806 = vmul.f32 %v1030, %v1710
      %v1807 = vmul.f32 %v1031, %v1711
      %v1808 = vmul.f32 %v1032, %v1712
      %v1809 = vmul.f32 %v1033, %v1713
      %v1810 = vmul.f32 %v1034, %v1714
      %v1811 = vmul.f32 %v1035, %v1715
      %v1812 = vmul.f32 %v1036, %v1716
      %v1813 = vmul.f32 %v1037, %v1717
      %v1814 = vmul.f32 %v1038, %v1718
      %v1815 = vmul.f32 %v1039, %v1719
      %v1816 = vmul.f32 %v1040, %v1720
      %v1817 = vmul.f32 %v1041, %v1721
      %v1818 = vmul.f32 %v1042, %v1722
      %v1819 = vmul.f32 %v1043, %v1723
      %v1820 = vmul.f32 %v1044, %v1724
      %v1821 = vmul.f32 %v1045, %v1725
      %v1822 = vmul.f32 %v1046, %v1726
      %v1823 = vmul.f32 %v1047, %v1727
      %v1824 = vmul.f32 %v1048, %v1728
      %v1825 = vmul.f32 %v1049, %v1729
      %v1826 = vmul.f32 %v1050, %v1730
      %v1827 = vmul.f32 %v1051, %v1731
      %v1828 = vmul.f32 %v1052, %v1732
      %v1829 = vmul.f32 %v1053, %v1733
      %v1830 = vmul.f32 %v1054, %v1734
      %v1831 = vmul.f32 %v1055, %v1735
      %v1832 = vmul.f32 %v1056, %v1736
      %v1833 = vmul.f32 %v1057, %v1737
      %v1834 = vmul.f32 %v1058, %v1738
      %v1835 = vmul.f32 %v1059, %v1739
      %v1836 = vmul.f32 %v1060, %v1740
      %v1837 = vmul.f32 %v1061, %v1741
      %v1838 = vmul.f32 %v1062, %v1742
      %v1839 = vmul.f32 %v1063, %v1743
      %v1840 = vmul.f32 %v1064, %v1744
      %v1841 = vmul.f32 %v1065, %v1745
      %v1842 = vmul.f32 %v1066, %v1746
      %v1843 = vmul.f32 %v1067, %v1747
      %v1844 = vmul.f32 %v1068, %v1748
      %v1845 = vmul.f32 %v1069, %v1749
      %v1846 = vadd.f32 %v1750, %v1219
      %v1847 = vadd.f32 %v1751, %v1332
      %v1848 = vadd.f32 %v1752, %v1445
      %v1849 = vadd.f32 %v1753, %v1222
      %v1850 = vadd.f32 %v1754, %v1335
      %v1851 = vadd.f32 %v1755, %v1448
      %v1852 = vadd.f32 %v1756, %v1225
      %v1853 = vadd.f32 %v1757, %v1338
      %v1854 = vadd.f32 %v1758, %v1451
      %v1855 = vadd.f32 %v1759, %v1228
      %v1856 = vadd.f32 %v1760, %v1341
      %v1857 = vadd.f32 %v1761, %v1454
      %v1858 = vadd.f32 %v1762, %v1231
      %v1859 = vadd.f32 %v1763, %v1344
      %v1860 = vadd.f32 %v1764, %v1457
      %v1861 = vadd.f32 %v1765, %v1234
      %v1862 = vadd.f32 %v1766, %v1347
      %v1863 = vadd.f32 %v1767, %v1460
      %v1864 = vadd.f32 %v1768, %v1237
      %v1865 = vadd.f32 %v1769, %v1350
      %v1866 = vadd.f32 %v1770, %v1463
      %v1867 = vadd.f32 %v1771, %v1240
      %v1868 = vadd.f32 %v1772, %v1353
      %v1869 = vadd.f32 %v1773, %v1466
      %v1870 = vadd.f32 %v1774, %v1243
      %v1871 = vadd.f32 %v1775, %v1356
      %v1872 = vadd.f32 %v1776, %v1469
      %v1873 = vadd.f32 %v1777, %v1246
      %v1874 = vadd.f32 %v1778, %v1359
      %v1875 = vadd.f32 %v1779, %v1472
      %v1876 = vadd.f32 %v1780, %v1249
      %v1877 = vadd.f32 %v1781, %v1362
      %v1878 = vadd.f32 %v1782, %v1475
      %v1879 = vadd.f32 %v1783, %v1252
      %v1880 = vadd.f32 %v1784, %v1365
      %v1881 = vadd.f32 %v1785, %v1478
      %v1882 = vadd.f32 %v1786, %v1255
      %v1883 = vadd.f32 %v1787, %v1368
      %v1884 = vadd.f32 %v1788, %v1481
      %v1885 = vadd.f32 %v1789, %v1258
      %v1886 = vadd.f32 %v1790, %v1371
      %v1887 = vadd.f32 %v1791, %v1484
      %v1888 = vadd.f32 %v1792, %v1261
      %v1889 = vadd.f32 %v1793, %v1374
      %v1890 = vadd.f32 %v1794, %v1487
      %v1891 = vadd.f32 %v1795, %v1264
      %v1892 = vadd.f32 %v1796, %v1377
      %v1893 = vadd.f32 %v1797, %v1490
      %v1894 = vadd.f32 %v1798, %v1267
      %v1895 = vadd.f32 %v1799, %v1380
      %v1896 = vadd.f32 %v1800, %v1493
      %v1897 = vadd.f32 %v1801, %v1270
      %v1898 = vadd.f32 %v1802, %v1383
      %v1899 = vadd.f32 %v1803, %v1496
      %v1900 = vadd.f32 %v1804, %v1273
      %v1901 = vadd.f32 %v1805, %v1386
      %v1902 = vadd.f32 %v1806, %v1499
      %v1903 = vadd.f32 %v1807, %v1276
      %v1904 = vadd.f32 %v1808, %v1389
      %v1905 = vadd.f32 %v1809, %v1502
      %v1906 = vadd.f32 %v1810, %v1279
      %v1907 = vadd.f32 %v1811, %v1392
      %v1908 = vadd.f32 %v1812, %v1505
      %v1909 = vadd.f32 %v1813, %v1282
      %v1910 = vadd.f32 %v1814, %v1395
      %v1911 = vadd.f32 %v1815, %v1508
      %v1912 = vadd.f32 %v1816, %v1285
      %v1913 = vadd.f32 %v1817, %v1398
      %v1914 = vadd.f32 %v1818, %v1511
      %v1915 = vadd.f32 %v1819, %v1288
      %v1916 = vadd.f32 %v1820, %v1401
      %v1917 = vadd.f32 %v1821, %v1514
      %v1918 = vadd.f32 %v1822, %v1291
      %v1919 = vadd.f32 %v1823, %v1404
      %v1920 = vadd.f32 %v1824, %v1517
      %v1921 = vadd.f32 %v1825, %v1294
      %v1922 = vadd.f32 %v1826, %v1407
      %v1923 = vadd.f32 %v1827, %v1520
      %v1924 = vadd.f32 %v1828, %v1297
      %v1925 = vadd.f32 %v1829, %v1410
      %v1926 = vadd.f32 %v1830, %v1523
      %v1927 = vadd.f32 %v1831, %v1300
      %v1928 = vadd.f32 %v1832, %v1413
      %v1929 = vadd.f32 %v1833, %v1526
      %v1930 = vadd.f32 %v1834, %v1303
      %v1931 = vadd.f32 %v1835, %v1416
      %v1932 = vadd.f32 %v1836, %v1529
      %v1933 = vadd.f32 %v1837, %v1306
      %v1934 = vadd.f32 %v1838, %v1419
      %v1935 = vadd.f32 %v1839, %v1532
      %v1936 = vadd.f32 %v1840, %v1309
      %v1937 = vadd.f32 %v1841, %v1422
      %v1938 = vadd.f32 %v1842, %v1535
      %v1939 = vadd.f32 %v1843, %v1312
      %v1940 = vadd.f32 %v1844, %v1425
      %v1941 = vadd.f32 %v1845, %v1538
      %vm1942 = vcmask 695296
      %1943 = vst.msk [vmem:[%s257] sm:$0xff] %vm1942, %v1846
      %1944 = vst.msk [vmem:[%s257 + $0x8] sm:$0xff] %vm1942, %v1849
      %1945 = vst.msk [vmem:[%s257 + $0x10] sm:$0xff] %vm1942, %v1852
      %1946 = vst.msk [vmem:[%s257 + $0x18] sm:$0xff] %vm1942, %v1855
      %1947 = vst.msk [vmem:[%s257 + $0x20] sm:$0xff] %vm1942, %v1858
      %1948 = vst.msk [vmem:[%s257 + $0x28] sm:$0xff] %vm1942, %v1861
      %1949 = vst.msk [vmem:[%s257 + $0x30] sm:$0xff] %vm1942, %v1864
      %1950 = vst.msk [vmem:[%s257 + $0x38] sm:$0xff] %vm1942, %v1867
      %1951 = vst.msk [vmem:[%s257 + $0x40] sm:$0xff] %vm1942, %v1870
      %1952 = vst.msk [vmem:[%s257 + $0x48] sm:$0xff] %vm1942, %v1873
      %1953 = vst.msk [vmem:[%s257 + $0x50] sm:$0xff] %vm1942, %v1876
      %1954 = vst.msk [vmem:[%s257 + $0x58] sm:$0xff] %vm1942, %v1879
      %1955 = vst.msk [vmem:[%s257 + $0x60] sm:$0xff] %vm1942, %v1882
      %1956 = vst.msk [vmem:[%s257 + $0x68] sm:$0xff] %vm1942, %v1885
      %1957 = vst.msk [vmem:[%s257 + $0x70] sm:$0xff] %vm1942, %v1888
      %1958 = vst.msk [vmem:[%s257 + $0x78] sm:$0xff] %vm1942, %v1891
      %1959 = vst.msk [vmem:[%s257 + $0x80] sm:$0xff] %vm1942, %v1894
      %1960 = vst.msk [vmem:[%s257 + $0x88] sm:$0xff] %vm1942, %v1897
      %1961 = vst.msk [vmem:[%s257 + $0x90] sm:$0xff] %vm1942, %v1900
      %1962 = vst.msk [vmem:[%s257 + $0x98] sm:$0xff] %vm1942, %v1903
      %1963 = vst.msk [vmem:[%s257 + $0xa0] sm:$0xff] %vm1942, %v1906
      %1964 = vst.msk [vmem:[%s257 + $0xa8] sm:$0xff] %vm1942, %v1909
      %1965 = vst.msk [vmem:[%s257 + $0xb0] sm:$0xff] %vm1942, %v1912
      %1966 = vst.msk [vmem:[%s257 + $0xb8] sm:$0xff] %vm1942, %v1915
      %1967 = vst.msk [vmem:[%s257 + $0xc0] sm:$0xff] %vm1942, %v1918
      %1968 = vst.msk [vmem:[%s257 + $0xc8] sm:$0xff] %vm1942, %v1921
      %1969 = vst.msk [vmem:[%s257 + $0xd0] sm:$0xff] %vm1942, %v1924
      %1970 = vst.msk [vmem:[%s257 + $0xd8] sm:$0xff] %vm1942, %v1927
      %1971 = vst.msk [vmem:[%s257 + $0xe0] sm:$0xff] %vm1942, %v1930
      %1972 = vst.msk [vmem:[%s257 + $0xe8] sm:$0xff] %vm1942, %v1933
      %1973 = vst.msk [vmem:[%s257 + $0xf0] sm:$0xff] %vm1942, %v1936
      %1974 = vst.msk [vmem:[%s257 + $0xf8] sm:$0xff] %vm1942, %v1939
      %s1975 = scalar_lea.vmem %s257, 256
      %1976 = vst.msk [vmem:[%s1975] sm:$0xff] %vm1942, %v1847
      %1977 = vst.msk [vmem:[%s1975 + $0x8] sm:$0xff] %vm1942, %v1850
      %1978 = vst.msk [vmem:[%s1975 + $0x10] sm:$0xff] %vm1942, %v1853
      %1979 = vst.msk [vmem:[%s1975 + $0x18] sm:$0xff] %vm1942, %v1856
      %1980 = vst.msk [vmem:[%s1975 + $0x20] sm:$0xff] %vm1942, %v1859
      %1981 = vst.msk [vmem:[%s1975 + $0x28] sm:$0xff] %vm1942, %v1862
      %1982 = vst.msk [vmem:[%s1975 + $0x30] sm:$0xff] %vm1942, %v1865
      %1983 = vst.msk [vmem:[%s1975 + $0x38] sm:$0xff] %vm1942, %v1868
      %1984 = vst.msk [vmem:[%s1975 + $0x40] sm:$0xff] %vm1942, %v1871
      %1985 = vst.msk [vmem:[%s1975 + $0x48] sm:$0xff] %vm1942, %v1874
      %1986 = vst.msk [vmem:[%s1975 + $0x50] sm:$0xff] %vm1942, %v1877
      %1987 = vst.msk [vmem:[%s1975 + $0x58] sm:$0xff] %vm1942, %v1880
      %1988 = vst.msk [vmem:[%s1975 + $0x60] sm:$0xff] %vm1942, %v1883
      %1989 = vst.msk [vmem:[%s1975 + $0x68] sm:$0xff] %vm1942, %v1886
      %1990 = vst.msk [vmem:[%s1975 + $0x70] sm:$0xff] %vm1942, %v1889
      %1991 = vst.msk [vmem:[%s1975 + $0x78] sm:$0xff] %vm1942, %v1892
      %1992 = vst.msk [vmem:[%s1975 + $0x80] sm:$0xff] %vm1942, %v1895
      %1993 = vst.msk [vmem:[%s1975 + $0x88] sm:$0xff] %vm1942, %v1898
      %1994 = vst.msk [vmem:[%s1975 + $0x90] sm:$0xff] %vm1942, %v1901
      %1995 = vst.msk [vmem:[%s1975 + $0x98] sm:$0xff] %vm1942, %v1904
      %1996 = vst.msk [vmem:[%s1975 + $0xa0] sm:$0xff] %vm1942, %v1907
      %1997 = vst.msk [vmem:[%s1975 + $0xa8] sm:$0xff] %vm1942, %v1910
      %1998 = vst.msk [vmem:[%s1975 + $0xb0] sm:$0xff] %vm1942, %v1913
      %1999 = vst.msk [vmem:[%s1975 + $0xb8] sm:$0xff] %vm1942, %v1916
      %2000 = vst.msk [vmem:[%s1975 + $0xc0] sm:$0xff] %vm1942, %v1919
      %2001 = vst.msk [vmem:[%s1975 + $0xc8] sm:$0xff] %vm1942, %v1922
      %2002 = vst.msk [vmem:[%s1975 + $0xd0] sm:$0xff] %vm1942, %v1925
      %2003 = vst.msk [vmem:[%s1975 + $0xd8] sm:$0xff] %vm1942, %v1928
      %2004 = vst.msk [vmem:[%s1975 + $0xe0] sm:$0xff] %vm1942, %v1931
      %2005 = vst.msk [vmem:[%s1975 + $0xe8] sm:$0xff] %vm1942, %v1934
      %2006 = vst.msk [vmem:[%s1975 + $0xf0] sm:$0xff] %vm1942, %v1937
      %2007 = vst.msk [vmem:[%s1975 + $0xf8] sm:$0xff] %vm1942, %v1940
      %s2008 = scalar_lea.vmem %s257, 512
      %2009 = vst.msk [vmem:[%s2008] sm:$0xff] %vm1942, %v1848
      %2010 = vst.msk [vmem:[%s2008 + $0x8] sm:$0xff] %vm1942, %v1851
      %2011 = vst.msk [vmem:[%s2008 + $0x10] sm:$0xff] %vm1942, %v1854
      %2012 = vst.msk [vmem:[%s2008 + $0x18] sm:$0xff] %vm1942, %v1857
      %2013 = vst.msk [vmem:[%s2008 + $0x20] sm:$0xff] %vm1942, %v1860
      %2014 = vst.msk [vmem:[%s2008 + $0x28] sm:$0xff] %vm1942, %v1863
      %2015 = vst.msk [vmem:[%s2008 + $0x30] sm:$0xff] %vm1942, %v1866
      %2016 = vst.msk [vmem:[%s2008 + $0x38] sm:$0xff] %vm1942, %v1869
      %2017 = vst.msk [vmem:[%s2008 + $0x40] sm:$0xff] %vm1942, %v1872
      %2018 = vst.msk [vmem:[%s2008 + $0x48] sm:$0xff] %vm1942, %v1875
      %2019 = vst.msk [vmem:[%s2008 + $0x50] sm:$0xff] %vm1942, %v1878
      %2020 = vst.msk [vmem:[%s2008 + $0x58] sm:$0xff] %vm1942, %v1881
      %2021 = vst.msk [vmem:[%s2008 + $0x60] sm:$0xff] %vm1942, %v1884
      %2022 = vst.msk [vmem:[%s2008 + $0x68] sm:$0xff] %vm1942, %v1887
      %2023 = vst.msk [vmem:[%s2008 + $0x70] sm:$0xff] %vm1942, %v1890
      %2024 = vst.msk [vmem:[%s2008 + $0x78] sm:$0xff] %vm1942, %v1893
      %2025 = vst.msk [vmem:[%s2008 + $0x80] sm:$0xff] %vm1942, %v1896
      %2026 = vst.msk [vmem:[%s2008 + $0x88] sm:$0xff] %vm1942, %v1899
      %2027 = vst.msk [vmem:[%s2008 + $0x90] sm:$0xff] %vm1942, %v1902
      %2028 = vst.msk [vmem:[%s2008 + $0x98] sm:$0xff] %vm1942, %v1905
      %2029 = vst.msk [vmem:[%s2008 + $0xa0] sm:$0xff] %vm1942, %v1908
      %2030 = vst.msk [vmem:[%s2008 + $0xa8] sm:$0xff] %vm1942, %v1911
      %2031 = vst.msk [vmem:[%s2008 + $0xb0] sm:$0xff] %vm1942, %v1914
      %2032 = vst.msk [vmem:[%s2008 + $0xb8] sm:$0xff] %vm1942, %v1917
      %2033 = vst.msk [vmem:[%s2008 + $0xc0] sm:$0xff] %vm1942, %v1920
      %2034 = vst.msk [vmem:[%s2008 + $0xc8] sm:$0xff] %vm1942, %v1923
      %2035 = vst.msk [vmem:[%s2008 + $0xd0] sm:$0xff] %vm1942, %v1926
      %2036 = vst.msk [vmem:[%s2008 + $0xd8] sm:$0xff] %vm1942, %v1929
      %2037 = vst.msk [vmem:[%s2008 + $0xe0] sm:$0xff] %vm1942, %v1932
      %2038 = vst.msk [vmem:[%s2008 + $0xe8] sm:$0xff] %vm1942, %v1935
      %2039 = vst.msk [vmem:[%s2008 + $0xf0] sm:$0xff] %vm1942, %v1938
      %2040 = vst.msk [vmem:[%s2008 + $0xf8] sm:$0xff] %vm1942, %v1941
      %s2041 = smul.u32 32, %s20
      %p2042 = scmp.lt.s32.totalorder %s19, 1
      %s2043 = scalar_select %p2042, %s19, 1
      %p2044 = scmp.lt.s32.totalorder %s2041, 31
      %s2045 = scalar_select %p2044, %s2041, 31
      %s2046 = smul.addr %s2043, 96
      %s2047 = sadd.s32 %s2045, %s2046
      %s2048 = smul.addr %s2047, 8
      %s2049 = scalar_lea.vmem %s4, %s2048
      // Predicated region
      $region37: #{detect_forward.2} parent=35 // pred_check
        %p2050 = pneg %p143
      $region38: #{detect_forward.2} parent=35 // pred_check_branch
        %2052 = sbr.rel (%p2050) target = $region40
      $region39: #{detect_forward.2} parent=35 // pred_region
        %s2053 = smul.u32 32, %s20
      $region40: #{detect_forward.2} parent=35 // pred_fallthru
        _
    $region36: #{detect_forward.2} parent=5 // pred_fallthru
      _
    %p2054 = scmp.le.s32.totalorder 2, %s10
    // Predicated region
    $region41: #{detect_forward.2} parent=5 // pred_check
      %p2055 = pneg %p2054
    $region42: #{detect_forward.2} parent=5 // pred_check_branch
      %2057 = sbr.rel (%p2055) target = $region44
    $region43: #{detect_forward.2} parent=5 // pred_region
      %s2058 = ssub.s32 %s10, 2
      // Predicated region
      $region45: #{detect_forward.2} parent=43 // pred_check
        %p2059 = pneg %p149
      $region46: #{detect_forward.2} parent=43 // pred_check_branch
        %2061 = sbr.rel (%p2059) target = $region48
      $region47: #{detect_forward.2} parent=43 // pred_region
        %s2062 = smul.u32 32, %s22
        %p2063 = scmp.lt.s32.totalorder %s21, 1
        %s2064 = scalar_select %p2063, %s21, 1
        %p2065 = scmp.lt.s32.totalorder %s2062, 31
        %s2066 = scalar_select %p2065, %s2062, 31
        %s2067 = smul.addr %s2064, 96
        %s2068 = sadd.s32 %s2066, %s2067
        %s2069 = smul.addr %s2068, 8
        %s2070 = scalar_lea.vmem %s4, %s2069
      $region48: #{detect_forward.2} parent=43 // pred_fallthru
        _
    $region44: #{detect_forward.2} parent=5 // pred_fallthru
      _
  $region6: #{detect_forward.2} parent=0 // loop_footer
    %s14 = sadd.s32 1, %s10
  $region7: #{detect_forward.2} parent=0 // loop_footer_branch
    %9 = sbr.rel target = $region3
  $region8: #{detect_forward.2} parent=0 // loop_exit
    _

// kernel: detect_forward.3
$region0: #{detect_forward.3}
  #allocation0 [shape = 'u32[]', space=smem, size = 0x4, offset = 0x4, fixed_abs, tag = 'smem constant byte address 0x4 - core index']
  #allocation1 [shape = 'u32[72,128]{1,0:T(1,128)}', space=vmem, size = 0x9000, scoped, tag = 'internal scratch']
  %s0 = inlined_call_operand.vmem [shape: f32[2,16,128], index: 0, kind: input, shape index: {}]
  %s1 = inlined_call_operand.vmem [shape: bf16[16,384], index: 1, kind: input, shape index: {}]
  %s2 = inlined_call_operand.vmem [shape: f32[8,384], index: 2, kind: input, shape index: {}]
  %s3 = inlined_call_operand.vmem [shape: f32[128,8], index: 3, kind: input, shape index: {}]
  %s4 = inlined_call_operand.vmem [shape: f32[2,3,128,85], index: 4, kind: output, shape index: {}]
  %s5 = sld [smem:[#allocation0]]
  $region49: #{detect_forward.3} parent=0
    _
  %s7 = ssub.s32 1, %s5
  %s8 = scalar_select 0, %s7, %s5
  loop: start=0, step=1, limit=4
  $region2: #{detect_forward.3} parent=0 // loop_pre_header
    _
  $region3: #{detect_forward.3} parent=0 // loop_header
    %s10 = sphi 0, %s14
    %p11 = scmp.ge.s32.totalorder %s10, 4
    %s17 = sphi 0, %s29
    %s18 = sphi 0, %s25
    %s19 = sphi 0, %s17
    %s20 = sphi 0, %s18
    %s21 = sphi 0, %s19
    %s22 = sphi 0, %s20
    %s34 = sphi 0, %s36
    %s37 = sphi 0, %s34
    %s38 = sphi 0, %s37
    %s54 = sphi 0, %s38
    %s58 = sphi 0, %s58
    %s60 = sphi 0, %s58
    %s61 = sphi 0, %s60
    %s75 = sphi 0, %s61
    %s79 = sphi 0, %s79
    %s81 = sphi 0, %s79
    %s82 = sphi 0, %s81
    %s96 = sphi 0, %s82
    %s102 = sphi 0, %s104
    %s105 = sphi 0, %s102
    %s106 = sphi 0, %s105
    %s122 = sphi 0, %s106
    %s130 = sphi 0, %s132
    %s133 = sphi 0, %s130
    %s134 = sphi 0, %s133
    %s150 = sphi 0, %s134
  $region4: #{detect_forward.3} parent=0 // loop_header_branch
    %13 = sbr.rel (%p11) target = $region8
  $region5: #{detect_forward.3} parent=0 // loop_body
    %s15 = ssub.s32 %s10, 1
    %s16 = ssub.s32 %s10, 2
    %s23 = sadd.s32 1, %s18
    %p24 = scmp.ge.s32.totalorder %s23, 1
    %s25 = scalar_select %p24, 0, %s23
    %s26 = sadd.s32 1, %s17
    %s27 = scalar_select %p24, %s26, %s17
    %p28 = scmp.ge.s32.totalorder %s27, 2
    %s29 = scalar_select %p28, 0, %s27
    %s30 = ssub.s32 %s17, %s29
    %s31 = ssub.s32 %s18, %s25
    %s32 = sor.u32 %s30, %s31
    %p33 = scmp.eq.s32.totalorder %s32, 0
    %s35 = sadd.s32 %s34, 1
    %s36 = scalar_select %p33, %s34, %s35
    %p39 = pneg %p33
    %p40 = scmp.eq.s32.totalorder %s10, 1
    %p41 = por %p39, %p40
    %p42 = scmp.ne.s32.totalorder %s34, %s37
    %p43 = scmp.eq.s32.totalorder %s10, 0
    %p44 = por %p42, %p43
    %p45 = scmp.ne.s32.totalorder %s34, %s37
    %p46 = scmp.eq.s32.totalorder %s15, 1
    %p47 = por %p45, %p46
    %p48 = scmp.ne.s32.totalorder %s37, %s38
    %p49 = scmp.eq.s32.totalorder %s15, 0
    %p50 = por %p48, %p49
    %p51 = scmp.ne.s32.totalorder %s37, %s38
    %p52 = scmp.eq.s32.totalorder %s16, 1
    %p53 = por %p51, %p52
    %p55 = scmp.ne.s32.totalorder %s38, %s54
    %p56 = scmp.eq.s32.totalorder %s16, 0
    %p57 = por %p55, %p56
    %s59 = sadd.s32 %s58, 1
    %p62 = scmp.eq.s32.totalorder %s10, 1
    %p63 = scmp.ne.s32.totalorder %s58, %s60
    %p64 = scmp.eq.s32.totalorder %s10, 0
    %p65 = por %p63, %p64
    %p66 = scmp.ne.s32.totalorder %s58, %s60
    %p67 = scmp.eq.s32.totalorder %s15, 1
    %p68 = por %p66, %p67
    %p69 = scmp.ne.s32.totalorder %s60, %s61
    %p70 = scmp.eq.s32.totalorder %s15, 0
    %p71 = por %p69, %p70
    %p72 = scmp.ne.s32.totalorder %s60, %s61
    %p73 = scmp.eq.s32.totalorder %s16, 1
    %p74 = por %p72, %p73
    %p76 = scmp.ne.s32.totalorder %s61, %s75
    %p77 = scmp.eq.s32.totalorder %s16, 0
    %p78 = por %p76, %p77
    %s80 = sadd.s32 %s79, 1
    %p83 = scmp.eq.s32.totalorder %s10, 1
    %p84 = scmp.ne.s32.totalorder %s79, %s81
    %p85 = scmp.eq.s32.totalorder %s10, 0
    %p86 = por %p84, %p85
    %p87 = scmp.ne.s32.totalorder %s79, %s81
    %p88 = scmp.eq.s32.totalorder %s15, 1
    %p89 = por %p87, %p88
    %p90 = scmp.ne.s32.totalorder %s81, %s82
    %p91 = scmp.eq.s32.totalorder %s15, 0
    %p92 = por %p90, %p91
    %p93 = scmp.ne.s32.totalorder %s81, %s82
    %p94 = scmp.eq.s32.totalorder %s16, 1
    %p95 = por %p93, %p94
    %p97 = scmp.ne.s32.totalorder %s82, %s96
    %p98 = scmp.eq.s32.totalorder %s16, 0
    %p99 = por %p97, %p98
    %s100 = ssub.s32 %s18, %s25
    %p101 = scmp.eq.s32.totalorder %s100, 0
    %s103 = sadd.s32 %s102, 1
    %s104 = scalar_select %p101, %s102, %s103
    %p107 = pneg %p101
    %p108 = scmp.eq.s32.totalorder %s10, 1
    %p109 = por %p107, %p108
    %p110 = scmp.ne.s32.totalorder %s102, %s105
    %p111 = scmp.eq.s32.totalorder %s10, 0
    %p112 = por %p110, %p111
    %p113 = scmp.ne.s32.totalorder %s102, %s105
    %p114 = scmp.eq.s32.totalorder %s15, 1
    %p115 = por %p113, %p114
    %p116 = scmp.ne.s32.totalorder %s105, %s106
    %p117 = scmp.eq.s32.totalorder %s15, 0
    %p118 = por %p116, %p117
    %p119 = scmp.ne.s32.totalorder %s105, %s106
    %p120 = scmp.eq.s32.totalorder %s16, 1
    %p121 = por %p119, %p120
    %p123 = scmp.ne.s32.totalorder %s106, %s122
    %p124 = scmp.eq.s32.totalorder %s16, 0
    %p125 = por %p123, %p124
    %s126 = ssub.s32 %s17, %s29
    %s127 = ssub.s32 %s18, %s25
    %s128 = sor.u32 %s126, %s127
    %p129 = scmp.eq.s32.totalorder %s128, 0
    %s131 = sadd.s32 %s130, 1
    %s132 = scalar_select %p129, %s130, %s131
    %p135 = pneg %p129
    %p136 = scmp.eq.s32.totalorder %s10, 1
    %p137 = por %p135, %p136
    %p138 = scmp.ne.s32.totalorder %s130, %s133
    %p139 = scmp.eq.s32.totalorder %s10, 0
    %p140 = por %p138, %p139
    %p141 = scmp.ne.s32.totalorder %s130, %s133
    %p142 = scmp.eq.s32.totalorder %s15, 1
    %p143 = por %p141, %p142
    %p144 = scmp.ne.s32.totalorder %s133, %s134
    %p145 = scmp.eq.s32.totalorder %s15, 0
    %p146 = por %p144, %p145
    %p147 = scmp.ne.s32.totalorder %s133, %s134
    %p148 = scmp.eq.s32.totalorder %s16, 1
    %p149 = por %p147, %p148
    %p151 = scmp.ne.s32.totalorder %s134, %s150
    %p152 = scmp.eq.s32.totalorder %s16, 0
    %p153 = por %p151, %p152
    %p154 = scmp.le.s32.totalorder 1, %s10
    %p155 = scmp.lt.s32.totalorder %s10, 3
    %p156 = pnand %p154, %p155
    %p157 = pneg %p156
    // Predicated region
    $region9: #{detect_forward.3} parent=5 // pred_check
      _
    $region10: #{detect_forward.3} parent=5 // pred_check_branch
      %159 = sbr.rel (%p156) target = $region12
    $region11: #{detect_forward.3} parent=5 // pred_region
      %s160 = ssub.s32 %s10, 1
      // Predicated region
      $region13: #{detect_forward.3} parent=11 // pred_check
        %p161 = pneg %p71
      $region14: #{detect_forward.3} parent=11 // pred_check_branch
        %163 = sbr.rel (%p161) target = $region16
      $region15: #{detect_forward.3} parent=11 // pred_region
        _
      $region16: #{detect_forward.3} parent=11 // pred_fallthru
        _
      // Predicated region
      $region17: #{detect_forward.3} parent=11 // pred_check
        %p164 = pneg %p92
      $region18: #{detect_forward.3} parent=11 // pred_check_branch
        %166 = sbr.rel (%p164) target = $region20
      $region19: #{detect_forward.3} parent=11 // pred_region
        _
      $region20: #{detect_forward.3} parent=11 // pred_fallthru
        _
      // Predicated region
      $region21: #{detect_forward.3} parent=11 // pred_check
        %p167 = pneg %p118
      $region22: #{detect_forward.3} parent=11 // pred_check_branch
        %169 = sbr.rel (%p167) target = $region24
      $region23: #{detect_forward.3} parent=11 // pred_region
        %s170 = smul.u32 16, %s20
        %p171 = scmp.lt.s32.totalorder %s170, 15
        %s172 = scalar_select %p171, %s170, 15
        %s173 = smul.addr %s172, 8
        %s174 = scalar_lea.vmem %s3, %s173
        %s175 = smul.u32 16, %s20
      $region24: #{detect_forward.3} parent=11 // pred_fallthru
        _
    $region12: #{detect_forward.3} parent=5 // pred_fallthru
      _
    %p176 = scmp.lt.s32.totalorder %s10, 2
    // Predicated region
    $region25: #{detect_forward.3} parent=5 // pred_check
      %p177 = pneg %p176
    $region26: #{detect_forward.3} parent=5 // pred_check_branch
      %179 = sbr.rel (%p177) target = $region28
    $region27: #{detect_forward.3} parent=5 // pred_region
      // Predicated region
      $region29: #{detect_forward.3} parent=27 // pred_check
        %p180 = pneg %p44
      $region30: #{detect_forward.3} parent=27 // pred_check_branch
        %182 = sbr.rel (%p180) target = $region32
      $region31: #{detect_forward.3} parent=27 // pred_region
        %p183 = scmp.lt.s32.totalorder %s17, 1
        %s184 = scalar_select %p183, %s17, 1
        %p185 = scmp.lt.s32.totalorder %s18, 0
        %s186 = scalar_select %p185, %s18, 0
        %s187 = smul.addr %s184, 2
        %s188 = sadd.s32 %s186, %s187
        %s189 = smul.addr %s188, 8
        %s190 = scalar_lea.vmem %s0, %s189
      $region32: #{detect_forward.3} parent=27 // pred_fallthru
        _
    $region28: #{detect_forward.3} parent=5 // pred_fallthru
      _
    %p191 = scmp.le.s32.totalorder 1, %s10
    %p192 = scmp.lt.s32.totalorder %s10, 3
    %p193 = pnand %p191, %p192
    %p194 = pneg %p193
    // Predicated region
    $region33: #{detect_forward.3} parent=5 // pred_check
      _
    $region34: #{detect_forward.3} parent=5 // pred_check_branch
      %196 = sbr.rel (%p193) target = $region36
    $region35: #{detect_forward.3} parent=5 // pred_region
      %s197 = ssub.s32 %s10, 1
      %p198 = scmp.lt.s32.totalorder %s19, 1
      %s199 = scalar_select %p198, %s19, 1
      %p200 = scmp.lt.s32.totalorder %s20, 0
      %s201 = scalar_select %p200, %s20, 0
      %s202 = smul.addr %s199, 2
      %s203 = sadd.s32 %s201, %s202
      %s204 = smul.addr %s203, 8
      %s205 = scalar_lea.vmem %s0, %s204
      %p206 = pneg %p50
      %p207 = pneg %p47
      %p208 = pneg %p71
      %p209 = pneg %p68
      %p210 = pneg %p92
      %p211 = pneg %p89
      %s212 = smul.u32 16, %s20
      %p213 = scmp.lt.s32.totalorder %s212, 15
      %s214 = scalar_select %p213, %s212, 15
      %s215 = smul.addr %s214, 8
      %s216 = scalar_lea.vmem %s3, %s215
      %p217 = pneg %p118
      %p218 = pneg %p115
      %p219 = pneg %p146
      %p220 = pneg %p143
      %s221 = smul.u32 16, %s20
      %p222 = scmp.lt.s32.totalorder %s19, 1
      %s223 = scalar_select %p222, %s19, 1
      %p224 = scmp.lt.s32.totalorder %s221, 15
      %s225 = scalar_select %p224, %s221, 15
      %s226 = smul.addr %s223, 48
      %s227 = sadd.s32 %s225, %s226
      %s228 = smul.addr %s227, 8
      %s229 = scalar_lea.vmem %s4, %s228
      %p230 = scmp.lt.s32.totalorder %s19, 1
      %s231 = scalar_select %p230, %s19, 1
      %p232 = scmp.lt.s32.totalorder %s20, 0
      %s233 = scalar_select %p232, %s20, 0
      %s234 = smul.addr %s231, 2
      %s235 = sadd.s32 %s233, %s234
      %s236 = smul.addr %s235, 8
      %s237 = scalar_lea.vmem %s0, %s236
      %s238 = smul.u32 16, %s20
      %p239 = scmp.lt.s32.totalorder %s238, 15
      %s240 = scalar_select %p239, %s238, 15
      %s241 = smul.addr %s240, 8
      %s242 = scalar_lea.vmem %s3, %s241
      %s243 = smul.u32 16, %s20
      %s244 = smul.u32 16, %s20
      %p245 = scmp.lt.s32.totalorder %s19, 1
      %s246 = scalar_select %p245, %s19, 1
      %p247 = scmp.lt.s32.totalorder %s244, 15
      %s248 = scalar_select %p247, %s244, 15
      %s249 = smul.addr %s246, 48
      %s250 = sadd.s32 %s248, %s249
      %s251 = smul.addr %s250, 8
      %s252 = scalar_lea.vmem %s4, %s251
      %s253 = smul.u32 16, %s20
      %v255 = vld [vmem:[%s237] sm:$0xff]
      %v256 = vld [vmem:[%s237 + $0x8] sm:$0xff]
      %257 = vxpose.xlu0.b32.start [1/16] %v255, 128
      %258 = vxpose.xlu0.b32.cont [2/16] %v256, 128
      %259 = vxpose.xlu0.b32.cont [3/16] 0.0, 128
      %260 = vxpose.xlu0.b32.cont [4/16] 0.0, 128
      %261 = vxpose.xlu0.b32.cont [5/16] 0.0, 128
      %262 = vxpose.xlu0.b32.cont [6/16] 0.0, 128
      %263 = vxpose.xlu0.b32.cont [7/16] 0.0, 128
      %264 = vxpose.xlu0.b32.cont [8/16] 0.0, 128
      %265 = vxpose.xlu0.b32.cont [9/16] 0.0, 128
      %266 = vxpose.xlu0.b32.cont [10/16] 0.0, 128
      %267 = vxpose.xlu0.b32.cont [11/16] 0.0, 128
      %268 = vxpose.xlu0.b32.cont [12/16] 0.0, 128
      %269 = vxpose.xlu0.b32.cont [13/16] 0.0, 128
      %270 = vxpose.xlu0.b32.cont [14/16] 0.0, 128
      %271 = vxpose.xlu0.b32.cont [15/16] 0.0, 128
      %272 = vxpose.xlu0.b32.end [16/16] 0.0, 128
      %v273 = vpop.trf.xlu0
      %v274 = vpop.trf.xlu0
      %v275 = vpop.trf.xlu0
      %v276 = vpop.trf.xlu0
      %v277 = vpop.trf.xlu0
      %v278 = vpop.trf.xlu0
      %v279 = vpop.trf.xlu0
      %v280 = vpop.trf.xlu0
      %v281 = vpop.trf.xlu0
      %v282 = vpop.trf.xlu0
      %v283 = vpop.trf.xlu0
      %v284 = vpop.trf.xlu0
      %v285 = vpop.trf.xlu0
      %v286 = vpop.trf.xlu0
      %v287 = vpop.trf.xlu0
      %v288 = vpop.trf.xlu0
      %v289 = vpack.c.bf16 %v274, %v273
      %v290 = vpack.c.bf16 %v276, %v275
      %v291 = vpack.c.bf16 %v278, %v277
      %v292 = vpack.c.bf16 %v280, %v279
      %v293 = vpack.c.bf16 %v282, %v281
      %v294 = vpack.c.bf16 %v284, %v283
      %v295 = vpack.c.bf16 %v286, %v285
      %v296 = vpack.c.bf16 %v288, %v287
      %v297 = vld [vmem:[%s1] sm:$0xff]
      %v298 = vld [vmem:[%s1 + $0x8] sm:$0xf]
      %v299 = vld [vmem:[%s1 + $0xc] sm:$0xff]
      %v300 = vld [vmem:[%s1 + $0x14] sm:$0xf]
      %v301 = vld [vmem:[%s2] ss:$8 sm:$0x7]
      %v303 = vperm.slane %v301, 0
      %v304 = vperm.slane %v301, 1
      %v305 = vperm.slane %v301, 2
      %v313 = vunpack.c.l.b16 %v297
      %v314 = vunpack.c.h.b16 %v297
      %v315 = vunpack.c.l.b16 %v298
      %v316 = vunpack.c.l.b16 %v299
      %v317 = vunpack.c.h.b16 %v299
      %v318 = vunpack.c.l.b16 %v300
      %v319 = vpack.c.b16 %v316, %v313
      %v320 = vpack.c.b16 %v317, %v314
      %v321 = vpack.c.b16 %v318, %v315
      %vm325 = vcmask 130048
      %v327 = vsel %vm325, %v289, 0
      %v330 = vsel %vm325, %v290, 0
      %v333 = vsel %vm325, %v291, 0
      %v336 = vsel %vm325, %v292, 0
      %v339 = vsel %vm325, %v293, 0
      %v342 = vsel %vm325, %v294, 0
      %v345 = vsel %vm325, %v295, 0
      %v348 = vsel %vm325, %v296, 0
      %350 = vmatpush.bf16.msra.mxu0 0
      %351 = vmatpush.bf16.msra.mxu0 0
      %352 = vmatpush.bf16.msra.mxu0 0
      %353 = vmatpush.bf16.msra.mxu0 0
      %354 = vmatpush.bf16.msra.mxu0 0
      %355 = vmatpush.bf16.msra.mxu0 0
      %356 = vmatpush.bf16.msra.mxu0 0
      %357 = vmatpush.bf16.msra.mxu0 %v319
      %358 = vmatmul.bf16.gmra.mxu0 %v327
      %v359 = vpop.f32.mrf.mxu0
      %v360 = vadd.f32 %v303, %v359
      %v361 = vpop.f32.mrf.mxu0
      %v362 = vadd.f32 %v303, %v361
      %363 = vmatmul.bf16.gmra.mxu0 %v330
      %v364 = vpop.f32.mrf.mxu0
      %v365 = vadd.f32 %v303, %v364
      %v366 = vpop.f32.mrf.mxu0
      %v367 = vadd.f32 %v303, %v366
      %368 = vmatmul.bf16.gmra.mxu0 %v333
      %v369 = vpop.f32.mrf.mxu0
      %v370 = vadd.f32 %v303, %v369
      %v371 = vpop.f32.mrf.mxu0
      %v372 = vadd.f32 %v303, %v371
      %373 = vmatmul.bf16.gmra.mxu0 %v336
      %v374 = vpop.f32.mrf.mxu0
      %v375 = vadd.f32 %v303, %v374
      %v376 = vpop.f32.mrf.mxu0
      %v377 = vadd.f32 %v303, %v376
      %378 = vmatmul.bf16.gmra.mxu0 %v339
      %v379 = vpop.f32.mrf.mxu0
      %v380 = vadd.f32 %v303, %v379
      %v381 = vpop.f32.mrf.mxu0
      %v382 = vadd.f32 %v303, %v381
      %383 = vmatmul.bf16.gmra.mxu0 %v342
      %v384 = vpop.f32.mrf.mxu0
      %v385 = vadd.f32 %v303, %v384
      %v386 = vpop.f32.mrf.mxu0
      %v387 = vadd.f32 %v303, %v386
      %388 = vmatmul.bf16.gmra.mxu0 %v345
      %v389 = vpop.f32.mrf.mxu0
      %v390 = vadd.f32 %v303, %v389
      %v391 = vpop.f32.mrf.mxu0
      %v392 = vadd.f32 %v303, %v391
      %393 = vmatmul.bf16.gmra.mxu0 %v348
      %v394 = vpop.f32.mrf.mxu0
      %v395 = vadd.f32 %v303, %v394
      %v396 = vpop.f32.mrf.mxu0
      %v397 = vadd.f32 %v303, %v396
      %398 = vdwg.mxu0
      %399 = vmatpush.bf16.msra.mxu0 0
      %400 = vmatpush.bf16.msra.mxu0 0
      %401 = vmatpush.bf16.msra.mxu0 0
      %402 = vmatpush.bf16.msra.mxu0 0
      %403 = vmatpush.bf16.msra.mxu0 0
      %404 = vmatpush.bf16.msra.mxu0 0
      %405 = vmatpush.bf16.msra.mxu0 0
      %406 = vmatpush.bf16.msra.mxu0 %v320
      %407 = vmatmul.bf16.gmra.mxu0 %v327
      %v408 = vpop.f32.mrf.mxu0
      %v409 = vadd.f32 %v304, %v408
      %v410 = vpop.f32.mrf.mxu0
      %v411 = vadd.f32 %v304, %v410
      %412 = vmatmul.bf16.gmra.mxu0 %v330
      %v413 = vpop.f32.mrf.mxu0
      %v414 = vadd.f32 %v304, %v413
      %v415 = vpop.f32.mrf.mxu0
      %v416 = vadd.f32 %v304, %v415
      %417 = vmatmul.bf16.gmra.mxu0 %v333
      %v418 = vpop.f32.mrf.mxu0
      %v419 = vadd.f32 %v304, %v418
      %v420 = vpop.f32.mrf.mxu0
      %v421 = vadd.f32 %v304, %v420
      %422 = vmatmul.bf16.gmra.mxu0 %v336
      %v423 = vpop.f32.mrf.mxu0
      %v424 = vadd.f32 %v304, %v423
      %v425 = vpop.f32.mrf.mxu0
      %v426 = vadd.f32 %v304, %v425
      %427 = vmatmul.bf16.gmra.mxu0 %v339
      %v428 = vpop.f32.mrf.mxu0
      %v429 = vadd.f32 %v304, %v428
      %v430 = vpop.f32.mrf.mxu0
      %v431 = vadd.f32 %v304, %v430
      %432 = vmatmul.bf16.gmra.mxu0 %v342
      %v433 = vpop.f32.mrf.mxu0
      %v434 = vadd.f32 %v304, %v433
      %v435 = vpop.f32.mrf.mxu0
      %v436 = vadd.f32 %v304, %v435
      %437 = vmatmul.bf16.gmra.mxu0 %v345
      %v438 = vpop.f32.mrf.mxu0
      %v439 = vadd.f32 %v304, %v438
      %v440 = vpop.f32.mrf.mxu0
      %v441 = vadd.f32 %v304, %v440
      %442 = vmatmul.bf16.gmra.mxu0 %v348
      %v443 = vpop.f32.mrf.mxu0
      %v444 = vadd.f32 %v304, %v443
      %v445 = vpop.f32.mrf.mxu0
      %v446 = vadd.f32 %v304, %v445
      %447 = vdwg.mxu0
      %448 = vmatpush.bf16.msra.mxu0 0
      %449 = vmatpush.bf16.msra.mxu0 0
      %450 = vmatpush.bf16.msra.mxu0 0
      %451 = vmatpush.bf16.msra.mxu0 0
      %452 = vmatpush.bf16.msra.mxu0 0
      %453 = vmatpush.bf16.msra.mxu0 0
      %454 = vmatpush.bf16.msra.mxu0 0
      %455 = vmatpush.bf16.msra.mxu0 %v321
      %456 = vmatmul.bf16.gmra.mxu0 %v327
      %v457 = vpop.f32.mrf.mxu0
      %v458 = vadd.f32 %v305, %v457
      %v459 = vpop.f32.mrf.mxu0
      %v460 = vadd.f32 %v305, %v459
      %461 = vmatmul.bf16.gmra.mxu0 %v330
      %v462 = vpop.f32.mrf.mxu0
      %v463 = vadd.f32 %v305, %v462
      %v464 = vpop.f32.mrf.mxu0
      %v465 = vadd.f32 %v305, %v464
      %466 = vmatmul.bf16.gmra.mxu0 %v333
      %v467 = vpop.f32.mrf.mxu0
      %v468 = vadd.f32 %v305, %v467
      %v469 = vpop.f32.mrf.mxu0
      %v470 = vadd.f32 %v305, %v469
      %471 = vmatmul.bf16.gmra.mxu0 %v336
      %v472 = vpop.f32.mrf.mxu0
      %v473 = vadd.f32 %v305, %v472
      %v474 = vpop.f32.mrf.mxu0
      %v475 = vadd.f32 %v305, %v474
      %476 = vmatmul.bf16.gmra.mxu0 %v339
      %v477 = vpop.f32.mrf.mxu0
      %v478 = vadd.f32 %v305, %v477
      %v479 = vpop.f32.mrf.mxu0
      %v480 = vadd.f32 %v305, %v479
      %481 = vmatmul.bf16.gmra.mxu0 %v342
      %v482 = vpop.f32.mrf.mxu0
      %v483 = vadd.f32 %v305, %v482
      %v484 = vpop.f32.mrf.mxu0
      %v485 = vadd.f32 %v305, %v484
      %486 = vmatmul.bf16.gmra.mxu0 %v345
      %v487 = vpop.f32.mrf.mxu0
      %v488 = vadd.f32 %v305, %v487
      %v489 = vpop.f32.mrf.mxu0
      %v490 = vadd.f32 %v305, %v489
      %491 = vmatmul.bf16.gmra.mxu0 %v348
      %v492 = vpop.f32.mrf.mxu0
      %v493 = vadd.f32 %v305, %v492
      %v494 = vpop.f32.mrf.mxu0
      %v495 = vadd.f32 %v305, %v494
      %496 = vdwg.mxu0
      %v497 = vmul.f32 %v360, 0.5
      %v498 = vmul.f32 %v409, 0.5
      %v499 = vmul.f32 %v458, 0.5
      %v500 = vmul.f32 %v362, 0.5
      %v501 = vmul.f32 %v411, 0.5
      %v502 = vmul.f32 %v460, 0.5
      %v503 = vmul.f32 %v365, 0.5
      %v504 = vmul.f32 %v414, 0.5
      %v505 = vmul.f32 %v463, 0.5
      %v506 = vmul.f32 %v367, 0.5
      %v507 = vmul.f32 %v416, 0.5
      %v508 = vmul.f32 %v465, 0.5
      %v509 = vmul.f32 %v370, 0.5
      %v510 = vmul.f32 %v419, 0.5
      %v511 = vmul.f32 %v468, 0.5
      %v512 = vmul.f32 %v372, 0.5
      %v513 = vmul.f32 %v421, 0.5
      %v514 = vmul.f32 %v470, 0.5
      %v515 = vmul.f32 %v375, 0.5
      %v516 = vmul.f32 %v424, 0.5
      %v517 = vmul.f32 %v473, 0.5
      %v518 = vmul.f32 %v377, 0.5
      %v519 = vmul.f32 %v426, 0.5
      %v520 = vmul.f32 %v475, 0.5
      %v521 = vmul.f32 %v380, 0.5
      %v522 = vmul.f32 %v429, 0.5
      %v523 = vmul.f32 %v478, 0.5
      %v524 = vmul.f32 %v382, 0.5
      %v525 = vmul.f32 %v431, 0.5
      %v526 = vmul.f32 %v480, 0.5
      %v527 = vmul.f32 %v385, 0.5
      %v528 = vmul.f32 %v434, 0.5
      %v529 = vmul.f32 %v483, 0.5
      %v530 = vmul.f32 %v387, 0.5
      %v531 = vmul.f32 %v436, 0.5
      %v532 = vmul.f32 %v485, 0.5
      %v533 = vmul.f32 %v390, 0.5
      %v534 = vmul.f32 %v439, 0.5
      %v535 = vmul.f32 %v488, 0.5
      %v536 = vmul.f32 %v392, 0.5
      %v537 = vmul.f32 %v441, 0.5
      %v538 = vmul.f32 %v490, 0.5
      %v539 = vmul.f32 %v395, 0.5
      %v540 = vmul.f32 %v444, 0.5
      %v541 = vmul.f32 %v493, 0.5
      %v542 = vmul.f32 %v397, 0.5
      %v543 = vmul.f32 %v446, 0.5
      %v544 = vmul.f32 %v495, 0.5
      %v545 = vtanh.pop %v497
      %v546 = vtanh.pop %v498
      %v547 = vtanh.pop %v499
      %v548 = vtanh.pop %v500
      %v549 = vtanh.pop %v501
      %v550 = vtanh.pop %v502
      %v551 = vtanh.pop %v503
      %v552 = vtanh.pop %v504
      %v553 = vtanh.pop %v505
      %v554 = vtanh.pop %v506
      %v555 = vtanh.pop %v507
      %v556 = vtanh.pop %v508
      %v557 = vtanh.pop %v509
      %v558 = vtanh.pop %v510
      %v559 = vtanh.pop %v511
      %v560 = vtanh.pop %v512
      %v561 = vtanh.pop %v513
      %v562 = vtanh.pop %v514
      %v563 = vtanh.pop %v515
      %v564 = vtanh.pop %v516
      %v565 = vtanh.pop %v517
      %v566 = vtanh.pop %v518
      %v567 = vtanh.pop %v519
      %v568 = vtanh.pop %v520
      %v569 = vtanh.pop %v521
      %v570 = vtanh.pop %v522
      %v571 = vtanh.pop %v523
      %v572 = vtanh.pop %v524
      %v573 = vtanh.pop %v525
      %v574 = vtanh.pop %v526
      %v575 = vtanh.pop %v527
      %v576 = vtanh.pop %v528
      %v577 = vtanh.pop %v529
      %v578 = vtanh.pop %v530
      %v579 = vtanh.pop %v531
      %v580 = vtanh.pop %v532
      %v581 = vtanh.pop %v533
      %v582 = vtanh.pop %v534
      %v583 = vtanh.pop %v535
      %v584 = vtanh.pop %v536
      %v585 = vtanh.pop %v537
      %v586 = vtanh.pop %v538
      %v587 = vtanh.pop %v539
      %v588 = vtanh.pop %v540
      %v589 = vtanh.pop %v541
      %v590 = vtanh.pop %v542
      %v591 = vtanh.pop %v543
      %v592 = vtanh.pop %v544
      %v593 = vmul.f32 %v545, 0.5
      %v594 = vmul.f32 %v546, 0.5
      %v595 = vmul.f32 %v547, 0.5
      %v596 = vmul.f32 %v548, 0.5
      %v597 = vmul.f32 %v549, 0.5
      %v598 = vmul.f32 %v550, 0.5
      %v599 = vmul.f32 %v551, 0.5
      %v600 = vmul.f32 %v552, 0.5
      %v601 = vmul.f32 %v553, 0.5
      %v602 = vmul.f32 %v554, 0.5
      %v603 = vmul.f32 %v555, 0.5
      %v604 = vmul.f32 %v556, 0.5
      %v605 = vmul.f32 %v557, 0.5
      %v606 = vmul.f32 %v558, 0.5
      %v607 = vmul.f32 %v559, 0.5
      %v608 = vmul.f32 %v560, 0.5
      %v609 = vmul.f32 %v561, 0.5
      %v610 = vmul.f32 %v562, 0.5
      %v611 = vmul.f32 %v563, 0.5
      %v612 = vmul.f32 %v564, 0.5
      %v613 = vmul.f32 %v565, 0.5
      %v614 = vmul.f32 %v566, 0.5
      %v615 = vmul.f32 %v567, 0.5
      %v616 = vmul.f32 %v568, 0.5
      %v617 = vmul.f32 %v569, 0.5
      %v618 = vmul.f32 %v570, 0.5
      %v619 = vmul.f32 %v571, 0.5
      %v620 = vmul.f32 %v572, 0.5
      %v621 = vmul.f32 %v573, 0.5
      %v622 = vmul.f32 %v574, 0.5
      %v623 = vmul.f32 %v575, 0.5
      %v624 = vmul.f32 %v576, 0.5
      %v625 = vmul.f32 %v577, 0.5
      %v626 = vmul.f32 %v578, 0.5
      %v627 = vmul.f32 %v579, 0.5
      %v628 = vmul.f32 %v580, 0.5
      %v629 = vmul.f32 %v581, 0.5
      %v630 = vmul.f32 %v582, 0.5
      %v631 = vmul.f32 %v583, 0.5
      %v632 = vmul.f32 %v584, 0.5
      %v633 = vmul.f32 %v585, 0.5
      %v634 = vmul.f32 %v586, 0.5
      %v635 = vmul.f32 %v587, 0.5
      %v636 = vmul.f32 %v588, 0.5
      %v637 = vmul.f32 %v589, 0.5
      %v638 = vmul.f32 %v590, 0.5
      %v639 = vmul.f32 %v591, 0.5
      %v640 = vmul.f32 %v592, 0.5
      %v641 = vadd.f32 %v593, 0.5
      %v642 = vadd.f32 %v594, 0.5
      %v643 = vadd.f32 %v595, 0.5
      %v644 = vadd.f32 %v596, 0.5
      %v645 = vadd.f32 %v597, 0.5
      %v646 = vadd.f32 %v598, 0.5
      %v647 = vadd.f32 %v599, 0.5
      %v648 = vadd.f32 %v600, 0.5
      %v649 = vadd.f32 %v601, 0.5
      %v650 = vadd.f32 %v602, 0.5
      %v651 = vadd.f32 %v603, 0.5
      %v652 = vadd.f32 %v604, 0.5
      %v653 = vadd.f32 %v605, 0.5
      %v654 = vadd.f32 %v606, 0.5
      %v655 = vadd.f32 %v607, 0.5
      %v656 = vadd.f32 %v608, 0.5
      %v657 = vadd.f32 %v609, 0.5
      %v658 = vadd.f32 %v610, 0.5
      %v659 = vadd.f32 %v611, 0.5
      %v660 = vadd.f32 %v612, 0.5
      %v661 = vadd.f32 %v613, 0.5
      %v662 = vadd.f32 %v614, 0.5
      %v663 = vadd.f32 %v615, 0.5
      %v664 = vadd.f32 %v616, 0.5
      %v665 = vadd.f32 %v617, 0.5
      %v666 = vadd.f32 %v618, 0.5
      %v667 = vadd.f32 %v619, 0.5
      %v668 = vadd.f32 %v620, 0.5
      %v669 = vadd.f32 %v621, 0.5
      %v670 = vadd.f32 %v622, 0.5
      %v671 = vadd.f32 %v623, 0.5
      %v672 = vadd.f32 %v624, 0.5
      %v673 = vadd.f32 %v625, 0.5
      %v674 = vadd.f32 %v626, 0.5
      %v675 = vadd.f32 %v627, 0.5
      %v676 = vadd.f32 %v628, 0.5
      %v677 = vadd.f32 %v629, 0.5
      %v678 = vadd.f32 %v630, 0.5
      %v679 = vadd.f32 %v631, 0.5
      %v680 = vadd.f32 %v632, 0.5
      %v681 = vadd.f32 %v633, 0.5
      %v682 = vadd.f32 %v634, 0.5
      %v683 = vadd.f32 %v635, 0.5
      %v684 = vadd.f32 %v636, 0.5
      %v685 = vadd.f32 %v637, 0.5
      %v686 = vadd.f32 %v638, 0.5
      %v687 = vadd.f32 %v639, 0.5
      %v688 = vadd.f32 %v640, 0.5
      %v689 = vld [vmem:[%s242] sm:$0xff]
      %v690 = vld [vmem:[%s242 + $0x8] sm:$0xff]
      %v691 = vld [vmem:[%s242 + $0x10] sm:$0xff]
      %v692 = vld [vmem:[%s242 + $0x18] sm:$0xff]
      %v693 = vld [vmem:[%s242 + $0x20] sm:$0xff]
      %v694 = vld [vmem:[%s242 + $0x28] sm:$0xff]
      %v695 = vld [vmem:[%s242 + $0x30] sm:$0xff]
      %v696 = vld [vmem:[%s242 + $0x38] sm:$0xff]
      %v697 = vld [vmem:[%s242 + $0x40] sm:$0xff]
      %v698 = vld [vmem:[%s242 + $0x48] sm:$0xff]
      %v699 = vld [vmem:[%s242 + $0x50] sm:$0xff]
      %v700 = vld [vmem:[%s242 + $0x58] sm:$0xff]
      %v701 = vld [vmem:[%s242 + $0x60] sm:$0xff]
      %v702 = vld [vmem:[%s242 + $0x68] sm:$0xff]
      %v703 = vld [vmem:[%s242 + $0x70] sm:$0xff]
      %v704 = vld [vmem:[%s242 + $0x78] sm:$0xff]
      %v705 = vld [vmem:[%s2] sm:$0xff]
      %v706 = vld [vmem:[%s2 + $0x8] sm:$0xff]
      %v707 = vld [vmem:[%s2 + $0x10] sm:$0xff]
      %vm708 = vcmask 64512
      %v710 = vsel %vm708, %v689, 0
      %v713 = vsel %vm708, %v690, 0
      %v716 = vsel %vm708, %v691, 0
      %v719 = vsel %vm708, %v692, 0
      %v722 = vsel %vm708, %v693, 0
      %v725 = vsel %vm708, %v694, 0
      %v728 = vsel %vm708, %v695, 0
      %v731 = vsel %vm708, %v696, 0
      %v734 = vsel %vm708, %v697, 0
      %v737 = vsel %vm708, %v698, 0
      %v740 = vsel %vm708, %v699, 0
      %v743 = vsel %vm708, %v700, 0
      %v746 = vsel %vm708, %v701, 0
      %v749 = vsel %vm708, %v702, 0
      %v752 = vsel %vm708, %v703, 0
      %v755 = vsel %vm708, %v704, 0
      %757 = vmatpush.msra.mxu0 0.0
      %758 = vmatpush.msra.mxu0 0.0
      %759 = vmatpush.msra.mxu0 0.0
      %760 = vmatpush.msra.mxu0 0.0
      %761 = vmatpush.msra.mxu0 0.0
      %762 = vmatpush.msra.mxu0 0.0
      %763 = vmatpush.msra.mxu0 0.0
      %764 = vmatpush.msra.mxu0 0.0
      %765 = vmatpush.msra.mxu0 0.0
      %766 = vmatpush.msra.mxu0 0.0
      %767 = vmatpush.msra.mxu0 0.0
      %768 = vmatpush.msra.mxu0 0.0
      %769 = vmatpush.msra.mxu0 0.0
      %770 = vmatpush.msra.mxu0 0.0
      %771 = vmatpush.msra.mxu0 0.0
      %772 = vmatpush.msra.mxu0 %v705
      %773 = vmatmul.f32.gmra.mxu0 %v710
      %v774 = vpop.f32.mrf.mxu0
      %v775 = vadd.f32 0.0, %v774
      %776 = vmatmul.f32.gmra.mxu0 %v713
      %v777 = vpop.f32.mrf.mxu0
      %v778 = vadd.f32 0.0, %v777
      %779 = vmatmul.f32.gmra.mxu0 %v716
      %v780 = vpop.f32.mrf.mxu0
      %v781 = vadd.f32 0.0, %v780
      %782 = vmatmul.f32.gmra.mxu0 %v719
      %v783 = vpop.f32.mrf.mxu0
      %v784 = vadd.f32 0.0, %v783
      %785 = vmatmul.f32.gmra.mxu0 %v722
      %v786 = vpop.f32.mrf.mxu0
      %v787 = vadd.f32 0.0, %v786
      %788 = vmatmul.f32.gmra.mxu0 %v725
      %v789 = vpop.f32.mrf.mxu0
      %v790 = vadd.f32 0.0, %v789
      %791 = vmatmul.f32.gmra.mxu0 %v728
      %v792 = vpop.f32.mrf.mxu0
      %v793 = vadd.f32 0.0, %v792
      %794 = vmatmul.f32.gmra.mxu0 %v731
      %v795 = vpop.f32.mrf.mxu0
      %v796 = vadd.f32 0.0, %v795
      %797 = vmatmul.f32.gmra.mxu0 %v734
      %v798 = vpop.f32.mrf.mxu0
      %v799 = vadd.f32 0.0, %v798
      %800 = vmatmul.f32.gmra.mxu0 %v737
      %v801 = vpop.f32.mrf.mxu0
      %v802 = vadd.f32 0.0, %v801
      %803 = vmatmul.f32.gmra.mxu0 %v740
      %v804 = vpop.f32.mrf.mxu0
      %v805 = vadd.f32 0.0, %v804
      %806 = vmatmul.f32.gmra.mxu0 %v743
      %v807 = vpop.f32.mrf.mxu0
      %v808 = vadd.f32 0.0, %v807
      %809 = vmatmul.f32.gmra.mxu0 %v746
      %v810 = vpop.f32.mrf.mxu0
      %v811 = vadd.f32 0.0, %v810
      %812 = vmatmul.f32.gmra.mxu0 %v749
      %v813 = vpop.f32.mrf.mxu0
      %v814 = vadd.f32 0.0, %v813
      %815 = vmatmul.f32.gmra.mxu0 %v752
      %v816 = vpop.f32.mrf.mxu0
      %v817 = vadd.f32 0.0, %v816
      %818 = vmatmul.f32.gmra.mxu0 %v755
      %v819 = vpop.f32.mrf.mxu0
      %v820 = vadd.f32 0.0, %v819
      %821 = vdwg.mxu0
      %822 = vmatpush.msra.mxu0 0.0
      %823 = vmatpush.msra.mxu0 0.0
      %824 = vmatpush.msra.mxu0 0.0
      %825 = vmatpush.msra.mxu0 0.0
      %826 = vmatpush.msra.mxu0 0.0
      %827 = vmatpush.msra.mxu0 0.0
      %828 = vmatpush.msra.mxu0 0.0
      %829 = vmatpush.msra.mxu0 0.0
      %830 = vmatpush.msra.mxu0 0.0
      %831 = vmatpush.msra.mxu0 0.0
      %832 = vmatpush.msra.mxu0 0.0
      %833 = vmatpush.msra.mxu0 0.0
      %834 = vmatpush.msra.mxu0 0.0
      %835 = vmatpush.msra.mxu0 0.0
      %836 = vmatpush.msra.mxu0 0.0
      %837 = vmatpush.msra.mxu0 %v706
      %838 = vmatmul.f32.gmra.mxu0 %v710
      %v839 = vpop.f32.mrf.mxu0
      %v840 = vadd.f32 0.0, %v839
      %841 = vmatmul.f32.gmra.mxu0 %v713
      %v842 = vpop.f32.mrf.mxu0
      %v843 = vadd.f32 0.0, %v842
      %844 = vmatmul.f32.gmra.mxu0 %v716
      %v845 = vpop.f32.mrf.mxu0
      %v846 = vadd.f32 0.0, %v845
      %847 = vmatmul.f32.gmra.mxu0 %v719
      %v848 = vpop.f32.mrf.mxu0
      %v849 = vadd.f32 0.0, %v848
      %850 = vmatmul.f32.gmra.mxu0 %v722
      %v851 = vpop.f32.mrf.mxu0
      %v852 = vadd.f32 0.0, %v851
      %853 = vmatmul.f32.gmra.mxu0 %v725
      %v854 = vpop.f32.mrf.mxu0
      %v855 = vadd.f32 0.0, %v854
      %856 = vmatmul.f32.gmra.mxu0 %v728
      %v857 = vpop.f32.mrf.mxu0
      %v858 = vadd.f32 0.0, %v857
      %859 = vmatmul.f32.gmra.mxu0 %v731
      %v860 = vpop.f32.mrf.mxu0
      %v861 = vadd.f32 0.0, %v860
      %862 = vmatmul.f32.gmra.mxu0 %v734
      %v863 = vpop.f32.mrf.mxu0
      %v864 = vadd.f32 0.0, %v863
      %865 = vmatmul.f32.gmra.mxu0 %v737
      %v866 = vpop.f32.mrf.mxu0
      %v867 = vadd.f32 0.0, %v866
      %868 = vmatmul.f32.gmra.mxu0 %v740
      %v869 = vpop.f32.mrf.mxu0
      %v870 = vadd.f32 0.0, %v869
      %871 = vmatmul.f32.gmra.mxu0 %v743
      %v872 = vpop.f32.mrf.mxu0
      %v873 = vadd.f32 0.0, %v872
      %874 = vmatmul.f32.gmra.mxu0 %v746
      %v875 = vpop.f32.mrf.mxu0
      %v876 = vadd.f32 0.0, %v875
      %877 = vmatmul.f32.gmra.mxu0 %v749
      %v878 = vpop.f32.mrf.mxu0
      %v879 = vadd.f32 0.0, %v878
      %880 = vmatmul.f32.gmra.mxu0 %v752
      %v881 = vpop.f32.mrf.mxu0
      %v882 = vadd.f32 0.0, %v881
      %883 = vmatmul.f32.gmra.mxu0 %v755
      %v884 = vpop.f32.mrf.mxu0
      %v885 = vadd.f32 0.0, %v884
      %886 = vdwg.mxu0
      %887 = vmatpush.msra.mxu0 0.0
      %888 = vmatpush.msra.mxu0 0.0
      %889 = vmatpush.msra.mxu0 0.0
      %890 = vmatpush.msra.mxu0 0.0
      %891 = vmatpush.msra.mxu0 0.0
      %892 = vmatpush.msra.mxu0 0.0
      %893 = vmatpush.msra.mxu0 0.0
      %894 = vmatpush.msra.mxu0 0.0
      %895 = vmatpush.msra.mxu0 0.0
      %896 = vmatpush.msra.mxu0 0.0
      %897 = vmatpush.msra.mxu0 0.0
      %898 = vmatpush.msra.mxu0 0.0
      %899 = vmatpush.msra.mxu0 0.0
      %900 = vmatpush.msra.mxu0 0.0
      %901 = vmatpush.msra.mxu0 0.0
      %902 = vmatpush.msra.mxu0 %v707
      %903 = vmatmul.f32.gmra.mxu0 %v710
      %v904 = vpop.f32.mrf.mxu0
      %v905 = vadd.f32 0.0, %v904
      %906 = vmatmul.f32.gmra.mxu0 %v713
      %v907 = vpop.f32.mrf.mxu0
      %v908 = vadd.f32 0.0, %v907
      %909 = vmatmul.f32.gmra.mxu0 %v716
      %v910 = vpop.f32.mrf.mxu0
      %v911 = vadd.f32 0.0, %v910
      %912 = vmatmul.f32.gmra.mxu0 %v719
      %v913 = vpop.f32.mrf.mxu0
      %v914 = vadd.f32 0.0, %v913
      %915 = vmatmul.f32.gmra.mxu0 %v722
      %v916 = vpop.f32.mrf.mxu0
      %v917 = vadd.f32 0.0, %v916
      %918 = vmatmul.f32.gmra.mxu0 %v725
      %v919 = vpop.f32.mrf.mxu0
      %v920 = vadd.f32 0.0, %v919
      %921 = vmatmul.f32.gmra.mxu0 %v728
      %v922 = vpop.f32.mrf.mxu0
      %v923 = vadd.f32 0.0, %v922
      %924 = vmatmul.f32.gmra.mxu0 %v731
      %v925 = vpop.f32.mrf.mxu0
      %v926 = vadd.f32 0.0, %v925
      %927 = vmatmul.f32.gmra.mxu0 %v734
      %v928 = vpop.f32.mrf.mxu0
      %v929 = vadd.f32 0.0, %v928
      %930 = vmatmul.f32.gmra.mxu0 %v737
      %v931 = vpop.f32.mrf.mxu0
      %v932 = vadd.f32 0.0, %v931
      %933 = vmatmul.f32.gmra.mxu0 %v740
      %v934 = vpop.f32.mrf.mxu0
      %v935 = vadd.f32 0.0, %v934
      %936 = vmatmul.f32.gmra.mxu0 %v743
      %v937 = vpop.f32.mrf.mxu0
      %v938 = vadd.f32 0.0, %v937
      %939 = vmatmul.f32.gmra.mxu0 %v746
      %v940 = vpop.f32.mrf.mxu0
      %v941 = vadd.f32 0.0, %v940
      %942 = vmatmul.f32.gmra.mxu0 %v749
      %v943 = vpop.f32.mrf.mxu0
      %v944 = vadd.f32 0.0, %v943
      %945 = vmatmul.f32.gmra.mxu0 %v752
      %v946 = vpop.f32.mrf.mxu0
      %v947 = vadd.f32 0.0, %v946
      %948 = vmatmul.f32.gmra.mxu0 %v755
      %v949 = vpop.f32.mrf.mxu0
      %v950 = vadd.f32 0.0, %v949
      %951 = vdwg.mxu0
      %s952 = scalar_lea.vmem %s2, 1
      %v953 = vld [vmem:[%s952] ss:$8 sm:$0x7]
      %s954 = scalar_lea.vmem %s2, 2
      %v955 = vld [vmem:[%s954] ss:$8 sm:$0x7]
      %v957 = vperm.slane %v955, 0
      %v958 = vperm.slane %v955, 1
      %v959 = vperm.slane %v955, 2
      %v963 = vmul.f32 %v957, %v641
      %v964 = vmul.f32 %v958, %v642
      %v965 = vmul.f32 %v959, %v643
      %v966 = vmul.f32 %v957, %v644
      %v967 = vmul.f32 %v958, %v645
      %v968 = vmul.f32 %v959, %v646
      %v969 = vmul.f32 %v957, %v647
      %v970 = vmul.f32 %v958, %v648
      %v971 = vmul.f32 %v959, %v649
      %v972 = vmul.f32 %v957, %v650
      %v973 = vmul.f32 %v958, %v651
      %v974 = vmul.f32 %v959, %v652
      %v975 = vmul.f32 %v957, %v653
      %v976 = vmul.f32 %v958, %v654
      %v977 = vmul.f32 %v959, %v655
      %v978 = vmul.f32 %v957, %v656
      %v979 = vmul.f32 %v958, %v657
      %v980 = vmul.f32 %v959, %v658
      %v981 = vmul.f32 %v957, %v659
      %v982 = vmul.f32 %v958, %v660
      %v983 = vmul.f32 %v959, %v661
      %v984 = vmul.f32 %v957, %v662
      %v985 = vmul.f32 %v958, %v663
      %v986 = vmul.f32 %v959, %v664
      %v987 = vmul.f32 %v957, %v665
      %v988 = vmul.f32 %v958, %v666
      %v989 = vmul.f32 %v959, %v667
      %v990 = vmul.f32 %v957, %v668
      %v991 = vmul.f32 %v958, %v669
      %v992 = vmul.f32 %v959, %v670
      %v993 = vmul.f32 %v957, %v671
      %v994 = vmul.f32 %v958, %v672
      %v995 = vmul.f32 %v959, %v673
      %v996 = vmul.f32 %v957, %v674
      %v997 = vmul.f32 %v958, %v675
      %v998 = vmul.f32 %v959, %v676
      %v999 = vmul.f32 %v957, %v677
      %v1000 = vmul.f32 %v958, %v678
      %v1001 = vmul.f32 %v959, %v679
      %v1002 = vmul.f32 %v957, %v680
      %v1003 = vmul.f32 %v958, %v681
      %v1004 = vmul.f32 %v959, %v682
      %v1005 = vmul.f32 %v957, %v683
      %v1006 = vmul.f32 %v958, %v684
      %v1007 = vmul.f32 %v959, %v685
      %v1008 = vmul.f32 %v957, %v686
      %v1009 = vmul.f32 %v958, %v687
      %v1010 = vmul.f32 %v959, %v688
      %v1012 = vperm.slane %v953, 0
      %v1013 = vperm.slane %v953, 1
      %v1014 = vperm.slane %v953, 2
      %v1018 = vadd.f32 %v1012, %v963
      %v1019 = vadd.f32 %v1013, %v964
      %v1020 = vadd.f32 %v1014, %v965
      %v1021 = vadd.f32 %v1012, %v966
      %v1022 = vadd.f32 %v1013, %v967
      %v1023 = vadd.f32 %v1014, %v968
      %v1024 = vadd.f32 %v1012, %v969
      %v1025 = vadd.f32 %v1013, %v970
      %v1026 = vadd.f32 %v1014, %v971
      %v1027 = vadd.f32 %v1012, %v972
      %v1028 = vadd.f32 %v1013, %v973
      %v1029 = vadd.f32 %v1014, %v974
      %v1030 = vadd.f32 %v1012, %v975
      %v1031 = vadd.f32 %v1013, %v976
      %v1032 = vadd.f32 %v1014, %v977
      %v1033 = vadd.f32 %v1012, %v978
      %v1034 = vadd.f32 %v1013, %v979
      %v1035 = vadd.f32 %v1014, %v980
      %v1036 = vadd.f32 %v1012, %v981
      %v1037 = vadd.f32 %v1013, %v982
      %v1038 = vadd.f32 %v1014, %v983
      %v1039 = vadd.f32 %v1012, %v984
      %v1040 = vadd.f32 %v1013, %v985
      %v1041 = vadd.f32 %v1014, %v986
      %v1042 = vadd.f32 %v1012, %v987
      %v1043 = vadd.f32 %v1013, %v988
      %v1044 = vadd.f32 %v1014, %v989
      %v1045 = vadd.f32 %v1012, %v990
      %v1046 = vadd.f32 %v1013, %v991
      %v1047 = vadd.f32 %v1014, %v992
      %v1048 = vadd.f32 %v1012, %v993
      %v1049 = vadd.f32 %v1013, %v994
      %v1050 = vadd.f32 %v1014, %v995
      %v1051 = vadd.f32 %v1012, %v996
      %v1052 = vadd.f32 %v1013, %v997
      %v1053 = vadd.f32 %v1014, %v998
      %v1054 = vadd.f32 %v1012, %v999
      %v1055 = vadd.f32 %v1013, %v1000
      %v1056 = vadd.f32 %v1014, %v1001
      %v1057 = vadd.f32 %v1012, %v1002
      %v1058 = vadd.f32 %v1013, %v1003
      %v1059 = vadd.f32 %v1014, %v1004
      %v1060 = vadd.f32 %v1012, %v1005
      %v1061 = vadd.f32 %v1013, %v1006
      %v1062 = vadd.f32 %v1014, %v1007
      %v1063 = vadd.f32 %v1012, %v1008
      %v1064 = vadd.f32 %v1013, %v1009
      %v1065 = vadd.f32 %v1014, %v1010
      %v1066 = vmul.f32 %v641, %v1018
      %v1067 = vmul.f32 %v642, %v1019
      %v1068 = vmul.f32 %v643, %v1020
      %v1069 = vmul.f32 %v644, %v1021
      %v1070 = vmul.f32 %v645, %v1022
      %v1071 = vmul.f32 %v646, %v1023
      %v1072 = vmul.f32 %v647, %v1024
      %v1073 = vmul.f32 %v648, %v1025
      %v1074 = vmul.f32 %v649, %v1026
      %v1075 = vmul.f32 %v650, %v1027
      %v1076 = vmul.f32 %v651, %v1028
      %v1077 = vmul.f32 %v652, %v1029
      %v1078 = vmul.f32 %v653, %v1030
      %v1079 = vmul.f32 %v654, %v1031
      %v1080 = vmul.f32 %v655, %v1032
      %v1081 = vmul.f32 %v656, %v1033
      %v1082 = vmul.f32 %v657, %v1034
      %v1083 = vmul.f32 %v658, %v1035
      %v1084 = vmul.f32 %v659, %v1036
      %v1085 = vmul.f32 %v660, %v1037
      %v1086 = vmul.f32 %v661, %v1038
      %v1087 = vmul.f32 %v662, %v1039
      %v1088 = vmul.f32 %v663, %v1040
      %v1089 = vmul.f32 %v664, %v1041
      %v1090 = vmul.f32 %v665, %v1042
      %v1091 = vmul.f32 %v666, %v1043
      %v1092 = vmul.f32 %v667, %v1044
      %v1093 = vmul.f32 %v668, %v1045
      %v1094 = vmul.f32 %v669, %v1046
      %v1095 = vmul.f32 %v670, %v1047
      %v1096 = vmul.f32 %v671, %v1048
      %v1097 = vmul.f32 %v672, %v1049
      %v1098 = vmul.f32 %v673, %v1050
      %v1099 = vmul.f32 %v674, %v1051
      %v1100 = vmul.f32 %v675, %v1052
      %v1101 = vmul.f32 %v676, %v1053
      %v1102 = vmul.f32 %v677, %v1054
      %v1103 = vmul.f32 %v678, %v1055
      %v1104 = vmul.f32 %v679, %v1056
      %v1105 = vmul.f32 %v680, %v1057
      %v1106 = vmul.f32 %v681, %v1058
      %v1107 = vmul.f32 %v682, %v1059
      %v1108 = vmul.f32 %v683, %v1060
      %v1109 = vmul.f32 %v684, %v1061
      %v1110 = vmul.f32 %v685, %v1062
      %v1111 = vmul.f32 %v686, %v1063
      %v1112 = vmul.f32 %v687, %v1064
      %v1113 = vmul.f32 %v688, %v1065
      %v1114 = vadd.f32 %v1066, %v775
      %v1115 = vadd.f32 %v1067, %v840
      %v1116 = vadd.f32 %v1068, %v905
      %v1117 = vadd.f32 %v1069, %v778
      %v1118 = vadd.f32 %v1070, %v843
      %v1119 = vadd.f32 %v1071, %v908
      %v1120 = vadd.f32 %v1072, %v781
      %v1121 = vadd.f32 %v1073, %v846
      %v1122 = vadd.f32 %v1074, %v911
      %v1123 = vadd.f32 %v1075, %v784
      %v1124 = vadd.f32 %v1076, %v849
      %v1125 = vadd.f32 %v1077, %v914
      %v1126 = vadd.f32 %v1078, %v787
      %v1127 = vadd.f32 %v1079, %v852
      %v1128 = vadd.f32 %v1080, %v917
      %v1129 = vadd.f32 %v1081, %v790
      %v1130 = vadd.f32 %v1082, %v855
      %v1131 = vadd.f32 %v1083, %v920
      %v1132 = vadd.f32 %v1084, %v793
      %v1133 = vadd.f32 %v1085, %v858
      %v1134 = vadd.f32 %v1086, %v923
      %v1135 = vadd.f32 %v1087, %v796
      %v1136 = vadd.f32 %v1088, %v861
      %v1137 = vadd.f32 %v1089, %v926
      %v1138 = vadd.f32 %v1090, %v799
      %v1139 = vadd.f32 %v1091, %v864
      %v1140 = vadd.f32 %v1092, %v929
      %v1141 = vadd.f32 %v1093, %v802
      %v1142 = vadd.f32 %v1094, %v867
      %v1143 = vadd.f32 %v1095, %v932
      %v1144 = vadd.f32 %v1096, %v805
      %v1145 = vadd.f32 %v1097, %v870
      %v1146 = vadd.f32 %v1098, %v935
      %v1147 = vadd.f32 %v1099, %v808
      %v1148 = vadd.f32 %v1100, %v873
      %v1149 = vadd.f32 %v1101, %v938
      %v1150 = vadd.f32 %v1102, %v811
      %v1151 = vadd.f32 %v1103, %v876
      %v1152 = vadd.f32 %v1104, %v941
      %v1153 = vadd.f32 %v1105, %v814
      %v1154 = vadd.f32 %v1106, %v879
      %v1155 = vadd.f32 %v1107, %v944
      %v1156 = vadd.f32 %v1108, %v817
      %v1157 = vadd.f32 %v1109, %v882
      %v1158 = vadd.f32 %v1110, %v947
      %v1159 = vadd.f32 %v1111, %v820
      %v1160 = vadd.f32 %v1112, %v885
      %v1161 = vadd.f32 %v1113, %v950
      %vm1162 = vcmask 695296
      %1163 = vst.msk [vmem:[%s252] sm:$0xff] %vm1162, %v1114
      %1164 = vst.msk [vmem:[%s252 + $0x8] sm:$0xff] %vm1162, %v1117
      %1165 = vst.msk [vmem:[%s252 + $0x10] sm:$0xff] %vm1162, %v1120
      %1166 = vst.msk [vmem:[%s252 + $0x18] sm:$0xff] %vm1162, %v1123
      %1167 = vst.msk [vmem:[%s252 + $0x20] sm:$0xff] %vm1162, %v1126
      %1168 = vst.msk [vmem:[%s252 + $0x28] sm:$0xff] %vm1162, %v1129
      %1169 = vst.msk [vmem:[%s252 + $0x30] sm:$0xff] %vm1162, %v1132
      %1170 = vst.msk [vmem:[%s252 + $0x38] sm:$0xff] %vm1162, %v1135
      %1171 = vst.msk [vmem:[%s252 + $0x40] sm:$0xff] %vm1162, %v1138
      %1172 = vst.msk [vmem:[%s252 + $0x48] sm:$0xff] %vm1162, %v1141
      %1173 = vst.msk [vmem:[%s252 + $0x50] sm:$0xff] %vm1162, %v1144
      %1174 = vst.msk [vmem:[%s252 + $0x58] sm:$0xff] %vm1162, %v1147
      %1175 = vst.msk [vmem:[%s252 + $0x60] sm:$0xff] %vm1162, %v1150
      %1176 = vst.msk [vmem:[%s252 + $0x68] sm:$0xff] %vm1162, %v1153
      %1177 = vst.msk [vmem:[%s252 + $0x70] sm:$0xff] %vm1162, %v1156
      %1178 = vst.msk [vmem:[%s252 + $0x78] sm:$0xff] %vm1162, %v1159
      %s1179 = scalar_lea.vmem %s252, 128
      %1180 = vst.msk [vmem:[%s1179] sm:$0xff] %vm1162, %v1115
      %1181 = vst.msk [vmem:[%s1179 + $0x8] sm:$0xff] %vm1162, %v1118
      %1182 = vst.msk [vmem:[%s1179 + $0x10] sm:$0xff] %vm1162, %v1121
      %1183 = vst.msk [vmem:[%s1179 + $0x18] sm:$0xff] %vm1162, %v1124
      %1184 = vst.msk [vmem:[%s1179 + $0x20] sm:$0xff] %vm1162, %v1127
      %1185 = vst.msk [vmem:[%s1179 + $0x28] sm:$0xff] %vm1162, %v1130
      %1186 = vst.msk [vmem:[%s1179 + $0x30] sm:$0xff] %vm1162, %v1133
      %1187 = vst.msk [vmem:[%s1179 + $0x38] sm:$0xff] %vm1162, %v1136
      %1188 = vst.msk [vmem:[%s1179 + $0x40] sm:$0xff] %vm1162, %v1139
      %1189 = vst.msk [vmem:[%s1179 + $0x48] sm:$0xff] %vm1162, %v1142
      %1190 = vst.msk [vmem:[%s1179 + $0x50] sm:$0xff] %vm1162, %v1145
      %1191 = vst.msk [vmem:[%s1179 + $0x58] sm:$0xff] %vm1162, %v1148
      %1192 = vst.msk [vmem:[%s1179 + $0x60] sm:$0xff] %vm1162, %v1151
      %1193 = vst.msk [vmem:[%s1179 + $0x68] sm:$0xff] %vm1162, %v1154
      %1194 = vst.msk [vmem:[%s1179 + $0x70] sm:$0xff] %vm1162, %v1157
      %1195 = vst.msk [vmem:[%s1179 + $0x78] sm:$0xff] %vm1162, %v1160
      %s1196 = scalar_lea.vmem %s252, 256
      %1197 = vst.msk [vmem:[%s1196] sm:$0xff] %vm1162, %v1116
      %1198 = vst.msk [vmem:[%s1196 + $0x8] sm:$0xff] %vm1162, %v1119
      %1199 = vst.msk [vmem:[%s1196 + $0x10] sm:$0xff] %vm1162, %v1122
      %1200 = vst.msk [vmem:[%s1196 + $0x18] sm:$0xff] %vm1162, %v1125
      %1201 = vst.msk [vmem:[%s1196 + $0x20] sm:$0xff] %vm1162, %v1128
      %1202 = vst.msk [vmem:[%s1196 + $0x28] sm:$0xff] %vm1162, %v1131
      %1203 = vst.msk [vmem:[%s1196 + $0x30] sm:$0xff] %vm1162, %v1134
      %1204 = vst.msk [vmem:[%s1196 + $0x38] sm:$0xff] %vm1162, %v1137
      %1205 = vst.msk [vmem:[%s1196 + $0x40] sm:$0xff] %vm1162, %v1140
      %1206 = vst.msk [vmem:[%s1196 + $0x48] sm:$0xff] %vm1162, %v1143
      %1207 = vst.msk [vmem:[%s1196 + $0x50] sm:$0xff] %vm1162, %v1146
      %1208 = vst.msk [vmem:[%s1196 + $0x58] sm:$0xff] %vm1162, %v1149
      %1209 = vst.msk [vmem:[%s1196 + $0x60] sm:$0xff] %vm1162, %v1152
      %1210 = vst.msk [vmem:[%s1196 + $0x68] sm:$0xff] %vm1162, %v1155
      %1211 = vst.msk [vmem:[%s1196 + $0x70] sm:$0xff] %vm1162, %v1158
      %1212 = vst.msk [vmem:[%s1196 + $0x78] sm:$0xff] %vm1162, %v1161
      %s1213 = smul.u32 16, %s20
      %p1214 = scmp.lt.s32.totalorder %s19, 1
      %s1215 = scalar_select %p1214, %s19, 1
      %p1216 = scmp.lt.s32.totalorder %s1213, 15
      %s1217 = scalar_select %p1216, %s1213, 15
      %s1218 = smul.addr %s1215, 48
      %s1219 = sadd.s32 %s1217, %s1218
      %s1220 = smul.addr %s1219, 8
      %s1221 = scalar_lea.vmem %s4, %s1220
      // Predicated region
      $region37: #{detect_forward.3} parent=35 // pred_check
        %p1222 = pneg %p143
      $region38: #{detect_forward.3} parent=35 // pred_check_branch
        %1224 = sbr.rel (%p1222) target = $region40
      $region39: #{detect_forward.3} parent=35 // pred_region
        %s1225 = smul.u32 16, %s20
      $region40: #{detect_forward.3} parent=35 // pred_fallthru
        _
    $region36: #{detect_forward.3} parent=5 // pred_fallthru
      _
    %p1226 = scmp.le.s32.totalorder 2, %s10
    // Predicated region
    $region41: #{detect_forward.3} parent=5 // pred_check
      %p1227 = pneg %p1226
    $region42: #{detect_forward.3} parent=5 // pred_check_branch
      %1229 = sbr.rel (%p1227) target = $region44
    $region43: #{detect_forward.3} parent=5 // pred_region
      %s1230 = ssub.s32 %s10, 2
      // Predicated region
      $region45: #{detect_forward.3} parent=43 // pred_check
        %p1231 = pneg %p149
      $region46: #{detect_forward.3} parent=43 // pred_check_branch
        %1233 = sbr.rel (%p1231) target = $region48
      $region47: #{detect_forward.3} parent=43 // pred_region
        %s1234 = smul.u32 16, %s22
        %p1235 = scmp.lt.s32.totalorder %s21, 1
        %s1236 = scalar_select %p1235, %s21, 1
        %p1237 = scmp.lt.s32.totalorder %s1234, 15
        %s1238 = scalar_select %p1237, %s1234, 15
        %s1239 = smul.addr %s1236, 48
        %s1240 = sadd.s32 %s1238, %s1239
        %s1241 = smul.addr %s1240, 8
        %s1242 = scalar_lea.vmem %s4, %s1241
      $region48: #{detect_forward.3} parent=43 // pred_fallthru
        _
    $region44: #{detect_forward.3} parent=5 // pred_fallthru
      _
  $region6: #{detect_forward.3} parent=0 // loop_footer
    %s14 = sadd.s32 1, %s10
  $region7: #{detect_forward.3} parent=0 // loop_footer_branch
    %9 = sbr.rel target = $region3
  $region8: #{detect_forward.3} parent=0 // loop_exit
    _

</llo_original>
